<compile_context>
chip_gen: v6e
topology: v6e:2x2x1
jax: 0.10.0
libtpu: 0.0.40
codegen_flags: <defaults>
</compile_context>

<pallas_src>
import math
import functools

import jax
import jax.numpy as jnp
from jax import lax
from jax.experimental import pallas as pl
from jax.experimental.pallas import tpu as pltpu


# ---------------------------------------------------------------------------
# In-kernel helpers
# ---------------------------------------------------------------------------

def _ln(x, g, b, eps=1e-5):
    """LayerNorm over the last dim (torch.nn.LayerNorm, eps=1e-5)."""
    mu = jnp.mean(x, axis=-1, keepdims=True)
    var = jnp.mean(jnp.square(x - mu), axis=-1, keepdims=True)
    return (x - mu) * lax.rsqrt(var + eps) * g + b


def _mha(xq, xk, xv, w_ref, bias, base, nhead, BB, Lq, Lkv, mask_ref=None):
    """Multi-head attention for BB folded batches.

    xq : (BB*Lq, D) query input, xk/xv : (BB*Lkv, D) key/value inputs.
    w_ref : (1, 12, D, D) per-layer matmul slab ref; rows base..base+3 = Wq,Wk,Wv,Wo.
    bias  : (19, D) loaded bias/LN slab value; rows base..base+3 = bq,bk,bv,bo.
    mask_ref : (BB, 1, Lkv) additive key-padding mask ref, or None.
    """
    D = xq.shape[-1]
    Dh = D // nhead
    scale = 1.0 / math.sqrt(Dh)

    # Full-width projections: one (., D) x (D, D) matmul each (not H narrow ones).
    q = jnp.dot(xq, w_ref[0, base + 0], preferred_element_type=jnp.float32) \
        + bias[base + 0:base + 1, :]
    k = jnp.dot(xk, w_ref[0, base + 1], preferred_element_type=jnp.float32) \
        + bias[base + 1:base + 2, :]
    v = jnp.dot(xv, w_ref[0, base + 2], preferred_element_type=jnp.float32) \
        + bias[base + 2:base + 3, :]
    wo = w_ref[0, base + 3]                                   # (D, D)

    per_batch = []
    for b in range(BB):                                       # static unroll
        qb = q[b * Lq:(b + 1) * Lq, :]
        kb = k[b * Lkv:(b + 1) * Lkv, :]
        vb = v[b * Lkv:(b + 1) * Lkv, :]
        acc = None
        for h in range(nhead):                                # static unroll
            lo, hi = h * Dh, (h + 1) * Dh
            s = lax.dot_general(qb[:, lo:hi], kb[:, lo:hi],
                                (((1,), (1,)), ((), ())),
                                preferred_element_type=jnp.float32) * scale
            if mask_ref is not None:
                s = s + mask_ref[b]                           # (1, Lkv) broadcast
            s = s - jnp.max(s, axis=-1, keepdims=True)
            p = jnp.exp(s)
            p = p / jnp.sum(p, axis=-1, keepdims=True)        # exact divide (parity)
            oh = jnp.dot(p, vb[:, lo:hi], preferred_element_type=jnp.float32)
            # concat-of-heads folded into the output projection as a sum of
            # per-head (Dh, D) row blocks of Wo (no lane concat needed).
            contrib = jnp.dot(oh, wo[lo:hi, :], preferred_element_type=jnp.float32)
            acc = contrib if acc is None else acc + contrib
        per_batch.append(acc)
    out = per_batch[0] if BB == 1 else jnp.concatenate(per_batch, axis=0)
    return out + bias[base + 3:base + 4, :]


# ---------------------------------------------------------------------------
# Fully fused decoder kernel: (self-attn + cross-attn + FFN + 3 LNs) + heads,
# one grid step per (batch_block, layer); x carried across layers in VMEM.
# ---------------------------------------------------------------------------

def _fused_decoder_kernel(nhead, BB, Lq, Lk, ds, with_state_refine,
                          xq_ref, qp_ref, memk_ref, memv_ref, mask_ref, ref0_ref,
                          attn_w_ref, vec_b_ref, ffw1_ref, ffb1_ref, ffw2_ref,
                          head_w_ref, head_b_ref, norm_ref,
                          out_ref,
                          x_vmem, ref_vmem):
    layer = pl.program_id(1)

    # Layer 0: load object queries / reference points into the VMEM carries.
    @pl.when(layer == 0)
    def _():
        x_vmem[...] = xq_ref[...]
        ref_vmem[...] = ref0_ref[...]

    x = x_vmem[...]                        # (BB*Lq, D)
    qpos = qp_ref[...]                     # (BB*Lq, D)
    memk = memk_ref[...]                   # (BB*Lk, D) = memory + pos  (hoisted add)
    memv = memv_ref[...]                   # (BB*Lk, D) = memory
    vb = vec_b_ref[0]                      # (19, D) bias / LayerNorm slab

    # ---- self-attention (q = k = x + query_pos, v = x); dropout = identity (eval)
    qk_in = x + qpos
    sa = _mha(qk_in, qk_in, x, attn_w_ref, vb, 0, nhead, BB, Lq, Lq)
    x = _ln(x + sa, vb[13:14, :], vb[14:15, :])

    # ---- cross-attention (q = x + query_pos, k = memory + pos, v = memory)
    ca = _mha(x + qpos, memk, memv, attn_w_ref, vb, 4, nhead, BB, Lq, Lk,
              mask_ref=mask_ref)
    x = _ln(x + ca, vb[15:16, :], vb[16:17, :])

    # ---- feed-forward (ReLU, dropout = identity)
    h = jnp.maximum(
        jnp.dot(x, ffw1_ref[0], preferred_element_type=jnp.float32) + ffb1_ref[0], 0.0)
    h = jnp.dot(h, ffw2_ref[0], preferred_element_type=jnp.float32) + vb[12:13, :]
    x = _ln(x + h, vb[17:18, :], vb[18:19, :])

    x_vmem[...] = x                        # carry to next layer; never leaves VMEM

    # ---- prediction heads on the shared norm(x)
    xn = _ln(x, norm_ref[0:1, :], norm_ref[1:2, :])
    hb = head_b_ref[0]                     # (3, ds)

    hp = jnp.maximum(jnp.dot(xn, attn_w_ref[0, 8],
                             preferred_element_type=jnp.float32) + vb[8:9, :], 0.0)
    hp = jnp.maximum(jnp.dot(hp, attn_w_ref[0, 9],
                             preferred_element_type=jnp.float32) + vb[9:10, :], 0.0)
    deltas = jnp.dot(hp, head_w_ref[0, 0],
                     preferred_element_type=jnp.float32) + hb[0:1, :]

    hu = jnp.maximum(jnp.dot(xn, attn_w_ref[0, 10],
                             preferred_element_type=jnp.float32) + vb[10:11, :], 0.0)
    hu = jnp.maximum(jnp.dot(hu, attn_w_ref[0, 11],
                             preferred_element_type=jnp.float32) + vb[11:12, :], 0.0)
    unc = jnp.dot(hu, head_w_ref[0, 1],
                  preferred_element_type=jnp.float32) + hb[1:2, :]

    # classifier weight is zero-padded to ds columns; only column 0 is the logit.
    logit = jnp.dot(xn, head_w_ref[0, 2],
                    preferred_element_type=jnp.float32) + hb[2:3, :]

    # normalized state = deltas + inverse_sigmoid(reference_points)
    r = jnp.clip(ref_vmem[...], 0.0, 1.0)
    inv_sig = jnp.log(jnp.maximum(r, 1e-5)) - jnp.log(jnp.maximum(1.0 - r, 1e-5))
    state = deltas + inv_sig

    if with_state_refine:
        # Literal translation of `reference_points = state.detach()` in the module.
        ref_vmem[...] = state

    out_ref[0, 0] = state
    out_ref[0, 1] = unc
    out_ref[0, 2] = logit
    # TODO(synk): per-head attention maps (only consumed when debug=True) are not materialized.


# ---------------------------------------------------------------------------
# Wrapper: one pallas_call for the full decoder forward
# ---------------------------------------------------------------------------

def transformer_decoder_forward(params, object_queries, encoder_embeddings,
                                encoder_embeddings_padding_mask=None,
                                encoder_embeddings_positional_encoding=None,
                                object_queries_positional_encoding=None,
                                reference_points=None,
                                nhead=4, with_state_refine=False,
                                num_batch_blocks=None):
    Lq, B, D = object_queries.shape
    Lk = encoder_embeddings.shape[0]
    ds = reference_points.shape[-1]
    num_layers = params["attn_w"].shape[0]
    assert D % nhead == 0

    if num_batch_blocks is None:
        # 2 blocks -> both v7x TensorCores get work ("parallel" axis);
        # on v5e/v6e pass num_batch_blocks=1 to fold the whole batch per grid step.
        num_batch_blocks = 2 if (B % 2 == 0 and B >= 2) else 1
    assert B % num_batch_blocks == 0
    BB = B // num_batch_blocks

    f32 = jnp.float32
    # One-time layout change: batch-major, row-flattened (B*L, D) activations.
    x0 = jnp.transpose(object_queries, (1, 0, 2)).reshape(B * Lq, D).astype(f32)
    qpos = (jnp.zeros((B * Lq, D), f32)
            if object_queries_positional_encoding is None else
            jnp.transpose(object_queries_positional_encoding, (1, 0, 2)
                          ).reshape(B * Lq, D).astype(f32))
    memv = jnp.transpose(encoder_embeddings, (1, 0, 2)).reshape(B * Lk, D).astype(f32)
    mpos = (jnp.zeros((B * Lk, D), f32)
            if encoder_embeddings_positional_encoding is None else
            jnp.transpose(encoder_embeddings_positional_encoding, (1, 0, 2)
                          ).reshape(B * Lk, D).astype(f32))
    memk = memv + mpos                      # hoisted: constant across layers

    if encoder_embeddings_padding_mask is None:
        add_mask = jnp.zeros((B, 1, Lk), f32)
    else:
        add_mask = jnp.where(encoder_embeddings_padding_mask,
                             -1e9, 0.0).astype(f32)[:, None, :]

    if reference_points is None:
        ref0 = jnp.full((B * Lq, ds), 0.5, f32)
    else:
        ref0 = jnp.transpose(reference_points, (1, 0, 2)).reshape(B * Lq, ds).astype(f32)

    kernel = functools.partial(_fused_decoder_kernel, nhead, BB, Lq, Lk, ds,
                               bool(with_state_refine))

    in_specs = [
        pl.BlockSpec((BB * Lq, D), lambda nb, l: (nb, 0)),       # object queries
        pl.BlockSpec((BB * Lq, D), lambda nb, l: (nb, 0)),       # query pos enc
        pl.BlockSpec((BB * Lk, D), lambda nb, l: (nb, 0)),       # memory + pos (K)
        pl.BlockSpec((BB * Lk, D), lambda nb, l: (nb, 0)),       # memory (V)
        pl.BlockSpec((BB, 1, Lk), lambda nb, l: (nb, 0, 0)),     # additive key mask
        pl.BlockSpec((BB * Lq, ds), lambda nb, l: (nb, 0)),      # reference points
        pl.BlockSpec((1,) + params["attn_w"].shape[1:], lambda nb, l: (l, 0, 0, 0)),
        pl.BlockSpec((1,) + params["vec_b"].shape[1:], lambda nb, l: (l, 0, 0)),
        pl.BlockSpec((1,) + params["ff_w1"].shape[1:], lambda nb, l: (l, 0, 0)),
        pl.BlockSpec((1,) + params["ff_b1"].shape[1:], lambda nb, l: (l, 0, 0)),
        pl.BlockSpec((1,) + params["ff_w2"].shape[1:], lambda nb, l: (l, 0, 0)),
        pl.BlockSpec((1,) + params["head_w"].shape[1:], lambda nb, l: (l, 0, 0, 0)),
        pl.BlockSpec((1,) + params["head_b"].shape[1:], lambda nb, l: (l, 0, 0)),
        pl.BlockSpec(params["norm"].shape, lambda nb, l: (0, 0)),
    ]
    out_spec = pl.BlockSpec((1, 3, BB * Lq, ds), lambda nb, l: (l, 0, nb, 0))

    packed = pl.pallas_call(
        kernel,
        out_shape=jax.ShapeDtypeStruct((num_layers, 3, B * Lq, ds), f32),
        grid=(num_batch_blocks, num_layers),
        in_specs=in_specs,
        out_specs=out_spec,
        scratch_shapes=[pltpu.VMEM((BB * Lq, D), f32),      # x carried across layers
                        pltpu.VMEM((BB * Lq, ds), f32)],    # reference points carry
        compiler_params=pltpu.CompilerParams(
            dimension_semantics=("parallel", "arbitrary")),
    )(x0, qpos, memk, memv, add_mask, ref0,
      params["attn_w"], params["vec_b"], params["ff_w1"], params["ff_b1"],
      params["ff_w2"], params["head_w"], params["head_b"], params["norm"])

    packed = packed.reshape(num_layers, 3, B, Lq, ds)
    inter_states = packed[:, 0]                  # (L, B, Lq, ds)
    inter_unc = packed[:, 1]                     # (L, B, Lq, ds)
    inter_logits = packed[:, 2][..., 0:1]        # (L, B, Lq, 1)
    debug_dict = {"intermediate_attention": []}
    return inter_states, inter_unc, inter_logits, debug_dict


# ---------------------------------------------------------------------------
# Deterministic synthetic parameters, pre-packed into the kernel's slabs
# ---------------------------------------------------------------------------

def init_params(key, num_layers, d_model, nhead, dff, d_state):
    keys = iter(jax.random.split(key, 1024))

    def dense(fan_in, fan_out):
        lim = 1.0 / math.sqrt(fan_in)
        w = jax.random.uniform(next(keys), (fan_in, fan_out), jnp.float32, -lim, lim)
        b = jax.random.uniform(next(keys), (fan_out,), jnp.float32, -lim, lim)
        return w, b

    attn_w, vec_b, ff_w1, ff_b1, ff_w2, head_w, head_b = [], [], [], [], [], [], []
    for _ in range(num_layers):
        sa = [dense(d_model, d_model) for _ in range(4)]     # q, k, v, o
        ca = [dense(d_model, d_model) for _ in range(4)]
        pw1 = dense(d_model, d_model); pw2 = dense(d_model, d_model)
        uw1 = dense(d_model, d_model); uw2 = dense(d_model, d_model)
        # matmul slab rows: 0-3 self-attn, 4-7 cross-attn, 8-9 pos MLP, 10-11 unc MLP
        attn_w.append(jnp.stack([w for (w, _) in sa + ca]
                                + [pw1[0], pw2[0], uw1[0], uw2[0]]))

        f1 = dense(d_model, dff); f2 = dense(dff, d_model)
        ff_w1.append(f1[0]); ff_b1.append(f1[1][None, :]); ff_w2.append(f2[0])

        ln = [jnp.ones((d_model,), jnp.float32), jnp.zeros((d_model,), jnp.float32)] * 3
        # bias/LN slab rows: sa(0-3) ca(4-7) pos_b1 pos_b2 unc_b1 unc_b2 ff_b2 ln1g..ln3b
        vec_b.append(jnp.stack([b for (_, b) in sa + ca]
                               + [pw1[1], pw2[1], uw1[1], uw2[1], f2[1]] + ln))

        pw3 = dense(d_model, d_state); uw3 = dense(d_model, d_state)
        cw = dense(d_model, 1)
        cls_w_pad = jnp.zeros((d_model, d_state), jnp.float32).at[:, 0:1].set(cw[0])
        cls_b_pad = jnp.zeros((d_state,), jnp.float32).at[0].set(cw[1][0])
        head_w.append(jnp.stack([pw3[0], uw3[0], cls_w_pad]))     # (3, D, ds)
        head_b.append(jnp.stack([pw3[1], uw3[1], cls_b_pad]))     # (3, ds)

    return dict(
        attn_w=jnp.stack(attn_w), vec_b=jnp.stack(vec_b),
        ff_w1=jnp.stack(ff_w1), ff_b1=jnp.stack(ff_b1), ff_w2=jnp.stack(ff_w2),
        head_w=jnp.stack(head_w), head_b=jnp.stack(head_b),
        norm=jnp.stack([jnp.ones((d_model,), jnp.float32),
                        jnp.zeros((d_model,), jnp.float32)]))


# ---------------------------------------------------------------------------
# Pure-JAX reference (same math, standard layout) for correctness checking
# ---------------------------------------------------------------------------

def _reference_forward(params, object_queries, encoder_embeddings, padding_mask,
                       enc_pos, query_pos, reference_points, nhead, with_state_refine):
    PH = jax.lax.Precision.HIGHEST
    Lq, B, D = object_queries.shape
    Lk = encoder_embeddings.shape[0]
    L = params["attn_w"].shape[0]
    Dh = D // nhead

    def mm(a, b):
        return jnp.matmul(a, b, precision=PH)

    def ln(x, g, b, eps=1e-5):
        mu = x.mean(-1, keepdims=True)
        var = ((x - mu) ** 2).mean(-1, keepdims=True)
        return (x - mu) / jnp.sqrt(var + eps) * g + b

    def mha(xq, xk, xv, W, bias, base, mask=None):
        q = mm(xq, W[base + 0]) + bias[base + 0]
        k = mm(xk, W[base + 1]) + bias[base + 1]
        v = mm(xv, W[base + 2]) + bias[base + 2]
        Lq_, Lk_ = q.shape[1], k.shape[1]
        qh = q.reshape(B, Lq_, nhead, Dh).transpose(0, 2, 1, 3)
        kh = k.reshape(B, Lk_, nhead, Dh).transpose(0, 2, 1, 3)
        vh = v.reshape(B, Lk_, nhead, Dh).transpose(0, 2, 1, 3)
        s = jnp.einsum("bhqd,bhkd->bhqk", qh, kh, precision=PH) / math.sqrt(Dh)
        if mask is not None:
            s = s + mask[:, None, :, :]
        p = jax.nn.softmax(s, axis=-1)
        o = jnp.einsum("bhqk,bhkd->bhqd", p, vh, precision=PH)
        o = o.transpose(0, 2, 1, 3).reshape(B, Lq_, D)
        return mm(o, W[base + 3]) + bias[base + 3]

    x = jnp.transpose(object_queries, (1, 0, 2))
    qp = jnp.zeros_like(x) if query_pos is None else jnp.transpose(query_pos, (1, 0, 2))
    mv = jnp.transpose(encoder_embeddings, (1, 0, 2))
    mp = jnp.zeros_like(mv) if enc_pos is None else jnp.transpose(enc_pos, (1, 0, 2))
    mk = mv + mp
    mask = (jnp.zeros((B, 1, Lk), jnp.float32) if padding_mask is None
            else jnp.where(padding_mask, -1e9, 0.0).astype(jnp.float32)[:, None, :])
    ref = jnp.transpose(reference_points, (1, 0, 2))

    states, uncs, logits = [], [], []
    for l in range(L):
        W, bias = params["attn_w"][l], params["vec_b"][l]
        sa = mha(x + qp, x + qp, x, W, bias, 0)
        x = ln(x + sa, bias[13], bias[14])
        ca = mha(x + qp, mk, mv, W, bias, 4, mask=mask)
        x = ln(x + ca, bias[15], bias[16])
        h = jax.nn.relu(mm(x, params["ff_w1"][l]) + params["ff_b1"][l])
        h = mm(h, params["ff_w2"][l]) + bias[12]
        x = ln(x + h, bias[17], bias[18])

        xn = ln(x, params["norm"][0], params["norm"][1])
        hp = jax.nn.relu(mm(xn, W[8]) + bias[8])
        hp = jax.nn.relu(mm(hp, W[9]) + bias[9])
        deltas = mm(hp, params["head_w"][l][0]) + params["head_b"][l][0]
        hu = jax.nn.relu(mm(xn, W[10]) + bias[10])
        hu = jax.nn.relu(mm(hu, W[11]) + bias[11])
        un = mm(hu, params["head_w"][l][1]) + params["head_b"][l][1]
        lg = mm(xn, params["head_w"][l][2]) + params["head_b"][l][2]
        r = jnp.clip(ref, 0.0, 1.0)
        inv = jnp.log(jnp.maximum(r, 1e-5)) - jnp.log(jnp.maximum(1.0 - r, 1e-5))
        st = deltas + inv
        if with_state_refine:
            ref = jax.lax.stop_gradient(st)
        states.append(st); uncs.append(un); logits.append(lg[..., 0:1])
    return jnp.stack(states), jnp.stack(uncs), jnp.stack(logits)


# ---------------------------------------------------------------------------
# Main
# ---------------------------------------------------------------------------

if __name__ == "__main__":
    num_layers = 2
    d_model, nhead, dff, d_state = 32, 4, 64, 4
    B, Lq, Lk = 2, 8, 16

    root = jax.random.PRNGKey(0)
    kp, k1, k2, k3, k4, k5 = jax.random.split(root, 6)

    params = init_params(kp, num_layers, d_model, nhead, dff, d_state)

    object_queries = jax.random.normal(k1, (Lq, B, d_model), jnp.float32)
    encoder_embeddings = jax.random.normal(k2, (Lk, B, d_model), jnp.float32)
    enc_pos = jax.random.normal(k3, (Lk, B, d_model), jnp.float32)
    query_pos = jax.random.normal(k4, (Lq, B, d_model), jnp.float32)
    reference_points = jax.random.uniform(k5, (Lq, B, d_state), jnp.float32, 0.1, 0.9)
    padding_mask = jnp.zeros((B, Lk), jnp.bool_).at[:, -2:].set(True)  # last 2 keys padded

    states, uncs, logits, dbg = transformer_decoder_forward(
        params, object_queries, encoder_embeddings,
        encoder_embeddings_padding_mask=padding_mask,
        encoder_embeddings_positional_encoding=enc_pos,
        object_queries_positional_encoding=query_pos,
        reference_points=reference_points,
        nhead=nhead, with_state_refine=False)
    jax.block_until_ready((states, uncs, logits))

    assert states.shape == (num_layers, B, Lq, d_state)
    assert uncs.shape == (num_layers, B, Lq, d_state)
    assert logits.shape == (num_layers, B, Lq, 1)
    assert bool(jnp.all(jnp.isfinite(states)))
    assert bool(jnp.all(jnp.isfinite(uncs)))
    assert bool(jnp.all(jnp.isfinite(logits)))

    # Parity check against a pure-JAX reference of the same forward pass.
    r_states, r_uncs, r_logits = _reference_forward(
        params, object_queries, encoder_embeddings, padding_mask,
        enc_pos, query_pos, reference_points, nhead, False)
    assert float(jnp.max(jnp.abs(states - r_states))) < 5e-2
    assert float(jnp.max(jnp.abs(uncs - r_uncs))) < 5e-2
    assert float(jnp.max(jnp.abs(logits - r_logits))) < 5e-2

    print("KERNEL_OK")
</pallas_src>

<mosaic_0001>
module attributes {stable_mosaic.version = 11 : i64} {
  func.func @_fused_decoder_kernel(%arg0: i32, %arg1: i32, %arg2: memref<8x32xf32, #tpu.memory_space<vmem>>, %arg3: memref<8x32xf32, #tpu.memory_space<vmem>>, %arg4: memref<16x32xf32, #tpu.memory_space<vmem>>, %arg5: memref<16x32xf32, #tpu.memory_space<vmem>>, %arg6: memref<1x1x16xf32, #tpu.memory_space<vmem>>, %arg7: memref<8x4xf32, #tpu.memory_space<vmem>>, %arg8: memref<1x12x32x32xf32, #tpu.memory_space<vmem>>, %arg9: memref<1x19x32xf32, #tpu.memory_space<vmem>>, %arg10: memref<1x32x64xf32, #tpu.memory_space<vmem>>, %arg11: memref<1x1x64xf32, #tpu.memory_space<vmem>>, %arg12: memref<1x64x32xf32, #tpu.memory_space<vmem>>, %arg13: memref<1x3x32x4xf32, #tpu.memory_space<vmem>>, %arg14: memref<1x3x4xf32, #tpu.memory_space<vmem>>, %arg15: memref<2x32xf32, #tpu.memory_space<vmem>>, %arg16: memref<1x3x8x4xf32, #tpu.memory_space<vmem>>, %arg17: memref<8x32xf32, #tpu.memory_space<vmem>>, %arg18: memref<8x4xf32, #tpu.memory_space<vmem>>) attributes {dimension_semantics = [#tpu.dimension_semantics<parallel>, #tpu.dimension_semantics<arbitrary>], iteration_bounds = array<i64: 2, 2>, scalar_prefetch = 0 : i64, scratch_operands = 2 : i64, tpu.core_type = #tpu.core_type<tc>, window_params = [{transform_indices = @transform_0, window_bounds = array<i64: 8, 32>}, {transform_indices = @transform_1, window_bounds = array<i64: 8, 32>}, {transform_indices = @transform_2, window_bounds = array<i64: 16, 32>}, {transform_indices = @transform_3, window_bounds = array<i64: 16, 32>}, {transform_indices = @transform_4, window_bounds = array<i64: 1, 1, 16>}, {transform_indices = @transform_5, window_bounds = array<i64: 8, 4>}, {transform_indices = @transform_6, window_bounds = array<i64: 1, 12, 32, 32>}, {transform_indices = @transform_7, window_bounds = array<i64: 1, 19, 32>}, {transform_indices = @transform_8, window_bounds = array<i64: 1, 32, 64>}, {transform_indices = @transform_9, window_bounds = array<i64: 1, 1, 64>}, {transform_indices = @transform_10, window_bounds = array<i64: 1, 64, 32>}, {transform_indices = @transform_11, window_bounds = array<i64: 1, 3, 32, 4>}, {transform_indices = @transform_12, window_bounds = array<i64: 1, 3, 4>}, {pipeline_mode = #tpu.pipeline_mode<synchronous>, transform_indices = @transform_13, window_bounds = array<i64: 2, 32>}, {transform_indices = @transform_14, window_bounds = array<i64: 1, 3, 8, 4>}]} {
    %c0_i32 = arith.constant 0 : i32
    %0 = arith.cmpi eq, %arg1, %c0_i32 : i32
    %1 = arith.extui %0 : i1 to i32
    %c0_i32_0 = arith.constant 0 : i32
    %2 = arith.cmpi ne, %1, %c0_i32_0 : i32
    scf.if %2 {
      %c0_196 = arith.constant 0 : index
      %c0_197 = arith.constant 0 : index
      %414 = vector.load %arg2[%c0_196, %c0_197] : memref<8x32xf32, #tpu.memory_space<vmem>>, vector<8x32xf32>
      %c0_198 = arith.constant 0 : index
      %c0_199 = arith.constant 0 : index
      %415 = vector.load %arg17[%c0_198, %c0_199] : memref<8x32xf32, #tpu.memory_space<vmem>>, vector<8x32xf32>
      tpu.vector_store %arg17[%c0_198, %c0_199], %414 {strides = array<i32>} : memref<8x32xf32, #tpu.memory_space<vmem>>, vector<8x32xf32>,
      %c0_200 = arith.constant 0 : index
      %c0_201 = arith.constant 0 : index
      %416 = vector.load %arg7[%c0_200, %c0_201] : memref<8x4xf32, #tpu.memory_space<vmem>>, vector<8x4xf32>
      %c0_202 = arith.constant 0 : index
      %c0_203 = arith.constant 0 : index
      %417 = vector.load %arg18[%c0_202, %c0_203] : memref<8x4xf32, #tpu.memory_space<vmem>>, vector<8x4xf32>
      tpu.vector_store %arg18[%c0_202, %c0_203], %416 {strides = array<i32>} : memref<8x4xf32, #tpu.memory_space<vmem>>, vector<8x4xf32>,
    } else {
    }
    %c0 = arith.constant 0 : index
    %c0_1 = arith.constant 0 : index
    %3 = vector.load %arg17[%c0, %c0_1] : memref<8x32xf32, #tpu.memory_space<vmem>>, vector<8x32xf32>
    %c0_2 = arith.constant 0 : index
    %c0_3 = arith.constant 0 : index
    %4 = vector.load %arg3[%c0_2, %c0_3] : memref<8x32xf32, #tpu.memory_space<vmem>>, vector<8x32xf32>
    %c0_4 = arith.constant 0 : index
    %c0_5 = arith.constant 0 : index
    %5 = vector.load %arg4[%c0_4, %c0_5] : memref<16x32xf32, #tpu.memory_space<vmem>>, vector<16x32xf32>
    %c0_6 = arith.constant 0 : index
    %c0_7 = arith.constant 0 : index
    %6 = vector.load %arg5[%c0_6, %c0_7] : memref<16x32xf32, #tpu.memory_space<vmem>>, vector<16x32xf32>
    %c0_8 = arith.constant 0 : index
    %c0_9 = arith.constant 0 : index
    %c0_10 = arith.constant 0 : index
    %7 = vector.load %arg9[%c0_8, %c0_9, %c0_10] : memref<1x19x32xf32, #tpu.memory_space<vmem>>, vector<1x19x32xf32>
    %8 = vector.shape_cast %7 : vector<1x19x32xf32> to vector<19x32xf32>
    %9 = arith.addf %3, %4 : vector<8x32xf32>
    %c0_11 = arith.constant 0 : index
    %c0_12 = arith.constant 0 : index
    %c0_13 = arith.constant 0 : index
    %c0_14 = arith.constant 0 : index
    %10 = vector.load %arg8[%c0_11, %c0_12, %c0_13, %c0_14] : memref<1x12x32x32xf32, #tpu.memory_space<vmem>>, vector<1x1x32x32xf32>
    %11 = vector.shape_cast %10 : vector<1x1x32x32xf32> to vector<32x32xf32>
    %cst = arith.constant dense<0.000000e+00> : vector<8x32xf32>
    %12 = tpu.matmul %9, %11, %cst {dimension_numbers = #tpu.dot_dimension_numbers<[1], [0], [0], [1], [0, 0, 1, 1], [], []>} : vector<8x32xf32>, vector<32x32xf32>, vector<8x32xf32> -> vector<8x32xf32>
    %13 = vector.extract_strided_slice %8 {offsets = [0, 0], sizes = [1, 32], strides = [1, 1]} : vector<19x32xf32> to vector<1x32xf32>
    %14 = vector.broadcast %13 : vector<1x32xf32> to vector<8x32xf32>
    %15 = arith.addf %12, %14 : vector<8x32xf32>
    %c0_15 = arith.constant 0 : index
    %c1 = arith.constant 1 : index
    %c0_16 = arith.constant 0 : index
    %c0_17 = arith.constant 0 : index
    %16 = vector.load %arg8[%c0_15, %c1, %c0_16, %c0_17] : memref<1x12x32x32xf32, #tpu.memory_space<vmem>>, vector<1x1x32x32xf32>
    %17 = vector.shape_cast %16 : vector<1x1x32x32xf32> to vector<32x32xf32>
    %cst_18 = arith.constant dense<0.000000e+00> : vector<8x32xf32>
    %18 = tpu.matmul %9, %17, %cst_18 {dimension_numbers = #tpu.dot_dimension_numbers<[1], [0], [0], [1], [0, 0, 1, 1], [], []>} : vector<8x32xf32>, vector<32x32xf32>, vector<8x32xf32> -> vector<8x32xf32>
    %19 = vector.extract_strided_slice %8 {offsets = [1, 0], sizes = [1, 32], strides = [1, 1]} : vector<19x32xf32> to vector<1x32xf32>
    %20 = vector.broadcast %19 : vector<1x32xf32> to vector<8x32xf32>
    %21 = arith.addf %18, %20 : vector<8x32xf32>
    %c0_19 = arith.constant 0 : index
    %c2 = arith.constant 2 : index
    %c0_20 = arith.constant 0 : index
    %c0_21 = arith.constant 0 : index
    %22 = vector.load %arg8[%c0_19, %c2, %c0_20, %c0_21] : memref<1x12x32x32xf32, #tpu.memory_space<vmem>>, vector<1x1x32x32xf32>
    %23 = vector.shape_cast %22 : vector<1x1x32x32xf32> to vector<32x32xf32>
    %cst_22 = arith.constant dense<0.000000e+00> : vector<8x32xf32>
    %24 = tpu.matmul %3, %23, %cst_22 {dimension_numbers = #tpu.dot_dimension_numbers<[1], [0], [0], [1], [0, 0, 1, 1], [], []>} : vector<8x32xf32>, vector<32x32xf32>, vector<8x32xf32> -> vector<8x32xf32>
    %25 = vector.extract_strided_slice %8 {offsets = [2, 0], sizes = [1, 32], strides = [1, 1]} : vector<19x32xf32> to vector<1x32xf32>
    %26 = vector.broadcast %25 : vector<1x32xf32> to vector<8x32xf32>
    %27 = arith.addf %24, %26 : vector<8x32xf32>
    %c0_23 = arith.constant 0 : index
    %c3 = arith.constant 3 : index
    %c0_24 = arith.constant 0 : index
    %c0_25 = arith.constant 0 : index
    %28 = vector.load %arg8[%c0_23, %c3, %c0_24, %c0_25] : memref<1x12x32x32xf32, #tpu.memory_space<vmem>>, vector<1x1x32x32xf32>
    %29 = vector.shape_cast %28 : vector<1x1x32x32xf32> to vector<32x32xf32>
    %30 = vector.extract_strided_slice %15 {offsets = [0, 0], sizes = [8, 8], strides = [1, 1]} : vector<8x32xf32> to vector<8x8xf32>
    %31 = vector.extract_strided_slice %21 {offsets = [0, 0], sizes = [8, 8], strides = [1, 1]} : vector<8x32xf32> to vector<8x8xf32>
    %cst_26 = arith.constant dense<0.000000e+00> : vector<8x8xf32>
    %32 = tpu.matmul %30, %31, %cst_26 {dimension_numbers = #tpu.dot_dimension_numbers<[1], [1], [0], [0], [0, 0, 1, 0], [], []>} : vector<8x8xf32>, vector<8x8xf32>, vector<8x8xf32> -> vector<8x8xf32>
    %cst_27 = arith.constant 0.353553385 : f32
    %33 = vector.broadcast %cst_27 : f32 to vector<8x8xf32>
    %34 = arith.mulf %32, %33 : vector<8x8xf32>
    %cst_28 = arith.constant dense<0xFF800000> : vector<8xf32>
    %35 = vector.multi_reduction <maximumf>, %34, %cst_28 [1] : vector<8x8xf32> to vector<8xf32>
    %36 = vector.shape_cast %35 : vector<8xf32> to vector<8x1xf32>
    %37 = vector.broadcast %36 : vector<8x1xf32> to vector<8x8xf32>
    %38 = arith.subf %34, %37 : vector<8x8xf32>
    %39 = math.exp %38 : vector<8x8xf32>
    %cst_29 = arith.constant dense<0.000000e+00> : vector<8xf32>
    %40 = vector.multi_reduction <add>, %39, %cst_29 [1] : vector<8x8xf32> to vector<8xf32>
    %41 = vector.shape_cast %40 : vector<8xf32> to vector<8x1xf32>
    %42 = vector.broadcast %41 : vector<8x1xf32> to vector<8x8xf32>
    %43 = arith.divf %39, %42 : vector<8x8xf32>
    %44 = vector.extract_strided_slice %27 {offsets = [0, 0], sizes = [8, 8], strides = [1, 1]} : vector<8x32xf32> to vector<8x8xf32>
    %cst_30 = arith.constant dense<0.000000e+00> : vector<8x8xf32>
    %45 = tpu.matmul %43, %44, %cst_30 {dimension_numbers = #tpu.dot_dimension_numbers<[1], [0], [0], [1], [0, 0, 1, 1], [], []>} : vector<8x8xf32>, vector<8x8xf32>, vector<8x8xf32> -> vector<8x8xf32>
    %46 = vector.extract_strided_slice %29 {offsets = [0, 0], sizes = [8, 32], strides = [1, 1]} : vector<32x32xf32> to vector<8x32xf32>
    %cst_31 = arith.constant dense<0.000000e+00> : vector<8x32xf32>
    %47 = tpu.matmul %45, %46, %cst_31 {dimension_numbers = #tpu.dot_dimension_numbers<[1], [0], [0], [1], [0, 0, 1, 1], [], []>} : vector<8x8xf32>, vector<8x32xf32>, vector<8x32xf32> -> vector<8x32xf32>
    %48 = vector.extract_strided_slice %15 {offsets = [0, 8], sizes = [8, 8], strides = [1, 1]} : vector<8x32xf32> to vector<8x8xf32>
    %49 = vector.extract_strided_slice %21 {offsets = [0, 8], sizes = [8, 8], strides = [1, 1]} : vector<8x32xf32> to vector<8x8xf32>
    %cst_32 = arith.constant dense<0.000000e+00> : vector<8x8xf32>
    %50 = tpu.matmul %48, %49, %cst_32 {dimension_numbers = #tpu.dot_dimension_numbers<[1], [1], [0], [0], [0, 0, 1, 0], [], []>} : vector<8x8xf32>, vector<8x8xf32>, vector<8x8xf32> -> vector<8x8xf32>
    %cst_33 = arith.constant 0.353553385 : f32
    %51 = vector.broadcast %cst_33 : f32 to vector<8x8xf32>
    %52 = arith.mulf %50, %51 : vector<8x8xf32>
    %cst_34 = arith.constant dense<0xFF800000> : vector<8xf32>
    %53 = vector.multi_reduction <maximumf>, %52, %cst_34 [1] : vector<8x8xf32> to vector<8xf32>
    %54 = vector.shape_cast %53 : vector<8xf32> to vector<8x1xf32>
    %55 = vector.broadcast %54 : vector<8x1xf32> to vector<8x8xf32>
    %56 = arith.subf %52, %55 : vector<8x8xf32>
    %57 = math.exp %56 : vector<8x8xf32>
    %cst_35 = arith.constant dense<0.000000e+00> : vector<8xf32>
    %58 = vector.multi_reduction <add>, %57, %cst_35 [1] : vector<8x8xf32> to vector<8xf32>
    %59 = vector.shape_cast %58 : vector<8xf32> to vector<8x1xf32>
    %60 = vector.broadcast %59 : vector<8x1xf32> to vector<8x8xf32>
    %61 = arith.divf %57, %60 : vector<8x8xf32>
    %62 = vector.extract_strided_slice %27 {offsets = [0, 8], sizes = [8, 8], strides = [1, 1]} : vector<8x32xf32> to vector<8x8xf32>
    %cst_36 = arith.constant dense<0.000000e+00> : vector<8x8xf32>
    %63 = tpu.matmul %61, %62, %cst_36 {dimension_numbers = #tpu.dot_dimension_numbers<[1], [0], [0], [1], [0, 0, 1, 1], [], []>} : vector<8x8xf32>, vector<8x8xf32>, vector<8x8xf32> -> vector<8x8xf32>
    %64 = vector.extract_strided_slice %29 {offsets = [8, 0], sizes = [8, 32], strides = [1, 1]} : vector<32x32xf32> to vector<8x32xf32>
    %cst_37 = arith.constant dense<0.000000e+00> : vector<8x32xf32>
    %65 = tpu.matmul %63, %64, %cst_37 {dimension_numbers = #tpu.dot_dimension_numbers<[1], [0], [0], [1], [0, 0, 1, 1], [], []>} : vector<8x8xf32>, vector<8x32xf32>, vector<8x32xf32> -> vector<8x32xf32>
    %66 = arith.addf %47, %65 : vector<8x32xf32>
    %67 = vector.extract_strided_slice %15 {offsets = [0, 16], sizes = [8, 8], strides = [1, 1]} : vector<8x32xf32> to vector<8x8xf32>
    %68 = vector.extract_strided_slice %21 {offsets = [0, 16], sizes = [8, 8], strides = [1, 1]} : vector<8x32xf32> to vector<8x8xf32>
    %cst_38 = arith.constant dense<0.000000e+00> : vector<8x8xf32>
    %69 = tpu.matmul %67, %68, %cst_38 {dimension_numbers = #tpu.dot_dimension_numbers<[1], [1], [0], [0], [0, 0, 1, 0], [], []>} : vector<8x8xf32>, vector<8x8xf32>, vector<8x8xf32> -> vector<8x8xf32>
    %cst_39 = arith.constant 0.353553385 : f32
    %70 = vector.broadcast %cst_39 : f32 to vector<8x8xf32>
    %71 = arith.mulf %69, %70 : vector<8x8xf32>
    %cst_40 = arith.constant dense<0xFF800000> : vector<8xf32>
    %72 = vector.multi_reduction <maximumf>, %71, %cst_40 [1] : vector<8x8xf32> to vector<8xf32>
    %73 = vector.shape_cast %72 : vector<8xf32> to vector<8x1xf32>
    %74 = vector.broadcast %73 : vector<8x1xf32> to vector<8x8xf32>
    %75 = arith.subf %71, %74 : vector<8x8xf32>
    %76 = math.exp %75 : vector<8x8xf32>
    %cst_41 = arith.constant dense<0.000000e+00> : vector<8xf32>
    %77 = vector.multi_reduction <add>, %76, %cst_41 [1] : vector<8x8xf32> to vector<8xf32>
    %78 = vector.shape_cast %77 : vector<8xf32> to vector<8x1xf32>
    %79 = vector.broadcast %78 : vector<8x1xf32> to vector<8x8xf32>
    %80 = arith.divf %76, %79 : vector<8x8xf32>
    %81 = vector.extract_strided_slice %27 {offsets = [0, 16], sizes = [8, 8], strides = [1, 1]} : vector<8x32xf32> to vector<8x8xf32>
    %cst_42 = arith.constant dense<0.000000e+00> : vector<8x8xf32>
    %82 = tpu.matmul %80, %81, %cst_42 {dimension_numbers = #tpu.dot_dimension_numbers<[1], [0], [0], [1], [0, 0, 1, 1], [], []>} : vector<8x8xf32>, vector<8x8xf32>, vector<8x8xf32> -> vector<8x8xf32>
    %83 = vector.extract_strided_slice %29 {offsets = [16, 0], sizes = [8, 32], strides = [1, 1]} : vector<32x32xf32> to vector<8x32xf32>
    %cst_43 = arith.constant dense<0.000000e+00> : vector<8x32xf32>
    %84 = tpu.matmul %82, %83, %cst_43 {dimension_numbers = #tpu.dot_dimension_numbers<[1], [0], [0], [1], [0, 0, 1, 1], [], []>} : vector<8x8xf32>, vector<8x32xf32>, vector<8x32xf32> -> vector<8x32xf32>
    %85 = arith.addf %66, %84 : vector<8x32xf32>
    %86 = vector.extract_strided_slice %15 {offsets = [0, 24], sizes = [8, 8], strides = [1, 1]} : vector<8x32xf32> to vector<8x8xf32>
    %87 = vector.extract_strided_slice %21 {offsets = [0, 24], sizes = [8, 8], strides = [1, 1]} : vector<8x32xf32> to vector<8x8xf32>
    %cst_44 = arith.constant dense<0.000000e+00> : vector<8x8xf32>
    %88 = tpu.matmul %86, %87, %cst_44 {dimension_numbers = #tpu.dot_dimension_numbers<[1], [1], [0], [0], [0, 0, 1, 0], [], []>} : vector<8x8xf32>, vector<8x8xf32>, vector<8x8xf32> -> vector<8x8xf32>
    %cst_45 = arith.constant 0.353553385 : f32
    %89 = vector.broadcast %cst_45 : f32 to vector<8x8xf32>
    %90 = arith.mulf %88, %89 : vector<8x8xf32>
    %cst_46 = arith.constant dense<0xFF800000> : vector<8xf32>
    %91 = vector.multi_reduction <maximumf>, %90, %cst_46 [1] : vector<8x8xf32> to vector<8xf32>
    %92 = vector.shape_cast %91 : vector<8xf32> to vector<8x1xf32>
    %93 = vector.broadcast %92 : vector<8x1xf32> to vector<8x8xf32>
    %94 = arith.subf %90, %93 : vector<8x8xf32>
    %95 = math.exp %94 : vector<8x8xf32>
    %cst_47 = arith.constant dense<0.000000e+00> : vector<8xf32>
    %96 = vector.multi_reduction <add>, %95, %cst_47 [1] : vector<8x8xf32> to vector<8xf32>
    %97 = vector.shape_cast %96 : vector<8xf32> to vector<8x1xf32>
    %98 = vector.broadcast %97 : vector<8x1xf32> to vector<8x8xf32>
    %99 = arith.divf %95, %98 : vector<8x8xf32>
    %100 = vector.extract_strided_slice %27 {offsets = [0, 24], sizes = [8, 8], strides = [1, 1]} : vector<8x32xf32> to vector<8x8xf32>
    %cst_48 = arith.constant dense<0.000000e+00> : vector<8x8xf32>
    %101 = tpu.matmul %99, %100, %cst_48 {dimension_numbers = #tpu.dot_dimension_numbers<[1], [0], [0], [1], [0, 0, 1, 1], [], []>} : vector<8x8xf32>, vector<8x8xf32>, vector<8x8xf32> -> vector<8x8xf32>
    %102 = vector.extract_strided_slice %29 {offsets = [24, 0], sizes = [8, 32], strides = [1, 1]} : vector<32x32xf32> to vector<8x32xf32>
    %cst_49 = arith.constant dense<0.000000e+00> : vector<8x32xf32>
    %103 = tpu.matmul %101, %102, %cst_49 {dimension_numbers = #tpu.dot_dimension_numbers<[1], [0], [0], [1], [0, 0, 1, 1], [], []>} : vector<8x8xf32>, vector<8x32xf32>, vector<8x32xf32> -> vector<8x32xf32>
    %104 = arith.addf %85, %103 : vector<8x32xf32>
    %105 = vector.extract_strided_slice %8 {offsets = [3, 0], sizes = [1, 32], strides = [1, 1]} : vector<19x32xf32> to vector<1x32xf32>
    %106 = vector.broadcast %105 : vector<1x32xf32> to vector<8x32xf32>
    %107 = arith.addf %104, %106 : vector<8x32xf32>
    %108 = arith.addf %3, %107 : vector<8x32xf32>
    %109 = vector.extract_strided_slice %8 {offsets = [13, 0], sizes = [1, 32], strides = [1, 1]} : vector<19x32xf32> to vector<1x32xf32>
    %110 = vector.extract_strided_slice %8 {offsets = [14, 0], sizes = [1, 32], strides = [1, 1]} : vector<19x32xf32> to vector<1x32xf32>
    %cst_50 = arith.constant dense<0.000000e+00> : vector<8xf32>
    %111 = vector.multi_reduction <add>, %108, %cst_50 [1] : vector<8x32xf32> to vector<8xf32>
    %112 = vector.shape_cast %111 : vector<8xf32> to vector<8x1xf32>
    %cst_51 = arith.constant 3.200000e+01 : f32
    %113 = vector.broadcast %cst_51 : f32 to vector<8x1xf32>
    %114 = arith.divf %112, %113 : vector<8x1xf32>
    %115 = vector.broadcast %114 : vector<8x1xf32> to vector<8x32xf32>
    %116 = arith.subf %108, %115 : vector<8x32xf32>
    %117 = arith.mulf %116, %116 : vector<8x32xf32>
    %cst_52 = arith.constant dense<0.000000e+00> : vector<8xf32>
    %118 = vector.multi_reduction <add>, %117, %cst_52 [1] : vector<8x32xf32> to vector<8xf32>
    %119 = vector.shape_cast %118 : vector<8xf32> to vector<8x1xf32>
    %cst_53 = arith.constant 3.200000e+01 : f32
    %120 = vector.broadcast %cst_53 : f32 to vector<8x1xf32>
    %121 = arith.divf %119, %120 : vector<8x1xf32>
    %122 = vector.broadcast %114 : vector<8x1xf32> to vector<8x32xf32>
    %123 = arith.subf %108, %122 : vector<8x32xf32>
    %cst_54 = arith.constant 9.99999974E-6 : f32
    %124 = vector.broadcast %cst_54 : f32 to vector<8x1xf32>
    %125 = arith.addf %121, %124 : vector<8x1xf32>
    %126 = math.rsqrt %125 : vector<8x1xf32>
    %127 = vector.broadcast %126 : vector<8x1xf32> to vector<8x32xf32>
    %128 = arith.mulf %123, %127 : vector<8x32xf32>
    %129 = vector.broadcast %109 : vector<1x32xf32> to vector<8x32xf32>
    %130 = arith.mulf %128, %129 : vector<8x32xf32>
    %131 = vector.broadcast %110 : vector<1x32xf32> to vector<8x32xf32>
    %132 = arith.addf %130, %131 : vector<8x32xf32>
    %133 = arith.addf %132, %4 : vector<8x32xf32>
    %c0_55 = arith.constant 0 : index
    %c4 = arith.constant 4 : index
    %c0_56 = arith.constant 0 : index
    %c0_57 = arith.constant 0 : index
    %134 = vector.load %arg8[%c0_55, %c4, %c0_56, %c0_57] : memref<1x12x32x32xf32, #tpu.memory_space<vmem>>, vector<1x1x32x32xf32>
    %135 = vector.shape_cast %134 : vector<1x1x32x32xf32> to vector<32x32xf32>
    %cst_58 = arith.constant dense<0.000000e+00> : vector<8x32xf32>
    %136 = tpu.matmul %133, %135, %cst_58 {dimension_numbers = #tpu.dot_dimension_numbers<[1], [0], [0], [1], [0, 0, 1, 1], [], []>} : vector<8x32xf32>, vector<32x32xf32>, vector<8x32xf32> -> vector<8x32xf32>
    %137 = vector.extract_strided_slice %8 {offsets = [4, 0], sizes = [1, 32], strides = [1, 1]} : vector<19x32xf32> to vector<1x32xf32>
    %138 = vector.broadcast %137 : vector<1x32xf32> to vector<8x32xf32>
    %139 = arith.addf %136, %138 : vector<8x32xf32>
    %c0_59 = arith.constant 0 : index
    %c5 = arith.constant 5 : index
    %c0_60 = arith.constant 0 : index
    %c0_61 = arith.constant 0 : index
    %140 = vector.load %arg8[%c0_59, %c5, %c0_60, %c0_61] : memref<1x12x32x32xf32, #tpu.memory_space<vmem>>, vector<1x1x32x32xf32>
    %141 = vector.shape_cast %140 : vector<1x1x32x32xf32> to vector<32x32xf32>
    %cst_62 = arith.constant dense<0.000000e+00> : vector<16x32xf32>
    %142 = tpu.matmul %5, %141, %cst_62 {dimension_numbers = #tpu.dot_dimension_numbers<[1], [0], [0], [1], [0, 0, 1, 1], [], []>} : vector<16x32xf32>, vector<32x32xf32>, vector<16x32xf32> -> vector<16x32xf32>
    %143 = vector.extract_strided_slice %8 {offsets = [5, 0], sizes = [1, 32], strides = [1, 1]} : vector<19x32xf32> to vector<1x32xf32>
    %144 = vector.broadcast %143 : vector<1x32xf32> to vector<16x32xf32>
    %145 = arith.addf %142, %144 : vector<16x32xf32>
    %c0_63 = arith.constant 0 : index
    %c6 = arith.constant 6 : index
    %c0_64 = arith.constant 0 : index
    %c0_65 = arith.constant 0 : index
    %146 = vector.load %arg8[%c0_63, %c6, %c0_64, %c0_65] : memref<1x12x32x32xf32, #tpu.memory_space<vmem>>, vector<1x1x32x32xf32>
    %147 = vector.shape_cast %146 : vector<1x1x32x32xf32> to vector<32x32xf32>
    %cst_66 = arith.constant dense<0.000000e+00> : vector<16x32xf32>
    %148 = tpu.matmul %6, %147, %cst_66 {dimension_numbers = #tpu.dot_dimension_numbers<[1], [0], [0], [1], [0, 0, 1, 1], [], []>} : vector<16x32xf32>, vector<32x32xf32>, vector<16x32xf32> -> vector<16x32xf32>
    %149 = vector.extract_strided_slice %8 {offsets = [6, 0], sizes = [1, 32], strides = [1, 1]} : vector<19x32xf32> to vector<1x32xf32>
    %150 = vector.broadcast %149 : vector<1x32xf32> to vector<16x32xf32>
    %151 = arith.addf %148, %150 : vector<16x32xf32>
    %c0_67 = arith.constant 0 : index
    %c7 = arith.constant 7 : index
    %c0_68 = arith.constant 0 : index
    %c0_69 = arith.constant 0 : index
    %152 = vector.load %arg8[%c0_67, %c7, %c0_68, %c0_69] : memref<1x12x32x32xf32, #tpu.memory_space<vmem>>, vector<1x1x32x32xf32>
    %153 = vector.shape_cast %152 : vector<1x1x32x32xf32> to vector<32x32xf32>
    %154 = vector.extract_strided_slice %139 {offsets = [0, 0], sizes = [8, 8], strides = [1, 1]} : vector<8x32xf32> to vector<8x8xf32>
    %155 = vector.extract_strided_slice %145 {offsets = [0, 0], sizes = [16, 8], strides = [1, 1]} : vector<16x32xf32> to vector<16x8xf32>
    %cst_70 = arith.constant dense<0.000000e+00> : vector<8x16xf32>
    %156 = tpu.matmul %154, %155, %cst_70 {dimension_numbers = #tpu.dot_dimension_numbers<[1], [1], [0], [0], [0, 0, 1, 0], [], []>} : vector<8x8xf32>, vector<16x8xf32>, vector<8x16xf32> -> vector<8x16xf32>
    %cst_71 = arith.constant 0.353553385 : f32
    %157 = vector.broadcast %cst_71 : f32 to vector<8x16xf32>
    %158 = arith.mulf %156, %157 : vector<8x16xf32>
    %c0_72 = arith.constant 0 : index
    %c0_73 = arith.constant 0 : index
    %c0_74 = arith.constant 0 : index
    %159 = vector.load %arg6[%c0_72, %c0_73, %c0_74] : memref<1x1x16xf32, #tpu.memory_space<vmem>>, vector<1x1x16xf32>
    %160 = vector.shape_cast %159 : vector<1x1x16xf32> to vector<1x16xf32>
    %161 = vector.broadcast %160 : vector<1x16xf32> to vector<8x16xf32>
    %162 = arith.addf %158, %161 : vector<8x16xf32>
    %cst_75 = arith.constant dense<0xFF800000> : vector<8xf32>
    %163 = vector.multi_reduction <maximumf>, %162, %cst_75 [1] : vector<8x16xf32> to vector<8xf32>
    %164 = vector.shape_cast %163 : vector<8xf32> to vector<8x1xf32>
    %165 = vector.broadcast %164 : vector<8x1xf32> to vector<8x16xf32>
    %166 = arith.subf %162, %165 : vector<8x16xf32>
    %167 = math.exp %166 : vector<8x16xf32>
    %cst_76 = arith.constant dense<0.000000e+00> : vector<8xf32>
    %168 = vector.multi_reduction <add>, %167, %cst_76 [1] : vector<8x16xf32> to vector<8xf32>
    %169 = vector.shape_cast %168 : vector<8xf32> to vector<8x1xf32>
    %170 = vector.broadcast %169 : vector<8x1xf32> to vector<8x16xf32>
    %171 = arith.divf %167, %170 : vector<8x16xf32>
    %172 = vector.extract_strided_slice %151 {offsets = [0, 0], sizes = [16, 8], strides = [1, 1]} : vector<16x32xf32> to vector<16x8xf32>
    %cst_77 = arith.constant dense<0.000000e+00> : vector<8x8xf32>
    %173 = tpu.matmul %171, %172, %cst_77 {dimension_numbers = #tpu.dot_dimension_numbers<[1], [0], [0], [1], [0, 0, 1, 1], [], []>} : vector<8x16xf32>, vector<16x8xf32>, vector<8x8xf32> -> vector<8x8xf32>
    %174 = vector.extract_strided_slice %153 {offsets = [0, 0], sizes = [8, 32], strides = [1, 1]} : vector<32x32xf32> to vector<8x32xf32>
    %cst_78 = arith.constant dense<0.000000e+00> : vector<8x32xf32>
    %175 = tpu.matmul %173, %174, %cst_78 {dimension_numbers = #tpu.dot_dimension_numbers<[1], [0], [0], [1], [0, 0, 1, 1], [], []>} : vector<8x8xf32>, vector<8x32xf32>, vector<8x32xf32> -> vector<8x32xf32>
    %176 = vector.extract_strided_slice %139 {offsets = [0, 8], sizes = [8, 8], strides = [1, 1]} : vector<8x32xf32> to vector<8x8xf32>
    %177 = vector.extract_strided_slice %145 {offsets = [0, 8], sizes = [16, 8], strides = [1, 1]} : vector<16x32xf32> to vector<16x8xf32>
    %cst_79 = arith.constant dense<0.000000e+00> : vector<8x16xf32>
    %178 = tpu.matmul %176, %177, %cst_79 {dimension_numbers = #tpu.dot_dimension_numbers<[1], [1], [0], [0], [0, 0, 1, 0], [], []>} : vector<8x8xf32>, vector<16x8xf32>, vector<8x16xf32> -> vector<8x16xf32>
    %cst_80 = arith.constant 0.353553385 : f32
    %179 = vector.broadcast %cst_80 : f32 to vector<8x16xf32>
    %180 = arith.mulf %178, %179 : vector<8x16xf32>
    %c0_81 = arith.constant 0 : index
    %c0_82 = arith.constant 0 : index
    %c0_83 = arith.constant 0 : index
    %181 = vector.load %arg6[%c0_81, %c0_82, %c0_83] : memref<1x1x16xf32, #tpu.memory_space<vmem>>, vector<1x1x16xf32>
    %182 = vector.shape_cast %181 : vector<1x1x16xf32> to vector<1x16xf32>
    %183 = vector.broadcast %182 : vector<1x16xf32> to vector<8x16xf32>
    %184 = arith.addf %180, %183 : vector<8x16xf32>
    %cst_84 = arith.constant dense<0xFF800000> : vector<8xf32>
    %185 = vector.multi_reduction <maximumf>, %184, %cst_84 [1] : vector<8x16xf32> to vector<8xf32>
    %186 = vector.shape_cast %185 : vector<8xf32> to vector<8x1xf32>
    %187 = vector.broadcast %186 : vector<8x1xf32> to vector<8x16xf32>
    %188 = arith.subf %184, %187 : vector<8x16xf32>
    %189 = math.exp %188 : vector<8x16xf32>
    %cst_85 = arith.constant dense<0.000000e+00> : vector<8xf32>
    %190 = vector.multi_reduction <add>, %189, %cst_85 [1] : vector<8x16xf32> to vector<8xf32>
    %191 = vector.shape_cast %190 : vector<8xf32> to vector<8x1xf32>
    %192 = vector.broadcast %191 : vector<8x1xf32> to vector<8x16xf32>
    %193 = arith.divf %189, %192 : vector<8x16xf32>
    %194 = vector.extract_strided_slice %151 {offsets = [0, 8], sizes = [16, 8], strides = [1, 1]} : vector<16x32xf32> to vector<16x8xf32>
    %cst_86 = arith.constant dense<0.000000e+00> : vector<8x8xf32>
    %195 = tpu.matmul %193, %194, %cst_86 {dimension_numbers = #tpu.dot_dimension_numbers<[1], [0], [0], [1], [0, 0, 1, 1], [], []>} : vector<8x16xf32>, vector<16x8xf32>, vector<8x8xf32> -> vector<8x8xf32>
    %196 = vector.extract_strided_slice %153 {offsets = [8, 0], sizes = [8, 32], strides = [1, 1]} : vector<32x32xf32> to vector<8x32xf32>
    %cst_87 = arith.constant dense<0.000000e+00> : vector<8x32xf32>
    %197 = tpu.matmul %195, %196, %cst_87 {dimension_numbers = #tpu.dot_dimension_numbers<[1], [0], [0], [1], [0, 0, 1, 1], [], []>} : vector<8x8xf32>, vector<8x32xf32>, vector<8x32xf32> -> vector<8x32xf32>
    %198 = arith.addf %175, %197 : vector<8x32xf32>
    %199 = vector.extract_strided_slice %139 {offsets = [0, 16], sizes = [8, 8], strides = [1, 1]} : vector<8x32xf32> to vector<8x8xf32>
    %200 = vector.extract_strided_slice %145 {offsets = [0, 16], sizes = [16, 8], strides = [1, 1]} : vector<16x32xf32> to vector<16x8xf32>
    %cst_88 = arith.constant dense<0.000000e+00> : vector<8x16xf32>
    %201 = tpu.matmul %199, %200, %cst_88 {dimension_numbers = #tpu.dot_dimension_numbers<[1], [1], [0], [0], [0, 0, 1, 0], [], []>} : vector<8x8xf32>, vector<16x8xf32>, vector<8x16xf32> -> vector<8x16xf32>
    %cst_89 = arith.constant 0.353553385 : f32
    %202 = vector.broadcast %cst_89 : f32 to vector<8x16xf32>
    %203 = arith.mulf %201, %202 : vector<8x16xf32>
    %c0_90 = arith.constant 0 : index
    %c0_91 = arith.constant 0 : index
    %c0_92 = arith.constant 0 : index
    %204 = vector.load %arg6[%c0_90, %c0_91, %c0_92] : memref<1x1x16xf32, #tpu.memory_space<vmem>>, vector<1x1x16xf32>
    %205 = vector.shape_cast %204 : vector<1x1x16xf32> to vector<1x16xf32>
    %206 = vector.broadcast %205 : vector<1x16xf32> to vector<8x16xf32>
    %207 = arith.addf %203, %206 : vector<8x16xf32>
    %cst_93 = arith.constant dense<0xFF800000> : vector<8xf32>
    %208 = vector.multi_reduction <maximumf>, %207, %cst_93 [1] : vector<8x16xf32> to vector<8xf32>
    %209 = vector.shape_cast %208 : vector<8xf32> to vector<8x1xf32>
    %210 = vector.broadcast %209 : vector<8x1xf32> to vector<8x16xf32>
    %211 = arith.subf %207, %210 : vector<8x16xf32>
    %212 = math.exp %211 : vector<8x16xf32>
    %cst_94 = arith.constant dense<0.000000e+00> : vector<8xf32>
    %213 = vector.multi_reduction <add>, %212, %cst_94 [1] : vector<8x16xf32> to vector<8xf32>
    %214 = vector.shape_cast %213 : vector<8xf32> to vector<8x1xf32>
    %215 = vector.broadcast %214 : vector<8x1xf32> to vector<8x16xf32>
    %216 = arith.divf %212, %215 : vector<8x16xf32>
    %217 = vector.extract_strided_slice %151 {offsets = [0, 16], sizes = [16, 8], strides = [1, 1]} : vector<16x32xf32> to vector<16x8xf32>
    %cst_95 = arith.constant dense<0.000000e+00> : vector<8x8xf32>
    %218 = tpu.matmul %216, %217, %cst_95 {dimension_numbers = #tpu.dot_dimension_numbers<[1], [0], [0], [1], [0, 0, 1, 1], [], []>} : vector<8x16xf32>, vector<16x8xf32>, vector<8x8xf32> -> vector<8x8xf32>
    %219 = vector.extract_strided_slice %153 {offsets = [16, 0], sizes = [8, 32], strides = [1, 1]} : vector<32x32xf32> to vector<8x32xf32>
    %cst_96 = arith.constant dense<0.000000e+00> : vector<8x32xf32>
    %220 = tpu.matmul %218, %219, %cst_96 {dimension_numbers = #tpu.dot_dimension_numbers<[1], [0], [0], [1], [0, 0, 1, 1], [], []>} : vector<8x8xf32>, vector<8x32xf32>, vector<8x32xf32> -> vector<8x32xf32>
    %221 = arith.addf %198, %220 : vector<8x32xf32>
    %222 = vector.extract_strided_slice %139 {offsets = [0, 24], sizes = [8, 8], strides = [1, 1]} : vector<8x32xf32> to vector<8x8xf32>
    %223 = vector.extract_strided_slice %145 {offsets = [0, 24], sizes = [16, 8], strides = [1, 1]} : vector<16x32xf32> to vector<16x8xf32>
    %cst_97 = arith.constant dense<0.000000e+00> : vector<8x16xf32>
    %224 = tpu.matmul %222, %223, %cst_97 {dimension_numbers = #tpu.dot_dimension_numbers<[1], [1], [0], [0], [0, 0, 1, 0], [], []>} : vector<8x8xf32>, vector<16x8xf32>, vector<8x16xf32> -> vector<8x16xf32>
    %cst_98 = arith.constant 0.353553385 : f32
    %225 = vector.broadcast %cst_98 : f32 to vector<8x16xf32>
    %226 = arith.mulf %224, %225 : vector<8x16xf32>
    %c0_99 = arith.constant 0 : index
    %c0_100 = arith.constant 0 : index
    %c0_101 = arith.constant 0 : index
    %227 = vector.load %arg6[%c0_99, %c0_100, %c0_101] : memref<1x1x16xf32, #tpu.memory_space<vmem>>, vector<1x1x16xf32>
    %228 = vector.shape_cast %227 : vector<1x1x16xf32> to vector<1x16xf32>
    %229 = vector.broadcast %228 : vector<1x16xf32> to vector<8x16xf32>
    %230 = arith.addf %226, %229 : vector<8x16xf32>
    %cst_102 = arith.constant dense<0xFF800000> : vector<8xf32>
    %231 = vector.multi_reduction <maximumf>, %230, %cst_102 [1] : vector<8x16xf32> to vector<8xf32>
    %232 = vector.shape_cast %231 : vector<8xf32> to vector<8x1xf32>
    %233 = vector.broadcast %232 : vector<8x1xf32> to vector<8x16xf32>
    %234 = arith.subf %230, %233 : vector<8x16xf32>
    %235 = math.exp %234 : vector<8x16xf32>
    %cst_103 = arith.constant dense<0.000000e+00> : vector<8xf32>
    %236 = vector.multi_reduction <add>, %235, %cst_103 [1] : vector<8x16xf32> to vector<8xf32>
    %237 = vector.shape_cast %236 : vector<8xf32> to vector<8x1xf32>
    %238 = vector.broadcast %237 : vector<8x1xf32> to vector<8x16xf32>
    %239 = arith.divf %235, %238 : vector<8x16xf32>
    %240 = vector.extract_strided_slice %151 {offsets = [0, 24], sizes = [16, 8], strides = [1, 1]} : vector<16x32xf32> to vector<16x8xf32>
    %cst_104 = arith.constant dense<0.000000e+00> : vector<8x8xf32>
    %241 = tpu.matmul %239, %240, %cst_104 {dimension_numbers = #tpu.dot_dimension_numbers<[1], [0], [0], [1], [0, 0, 1, 1], [], []>} : vector<8x16xf32>, vector<16x8xf32>, vector<8x8xf32> -> vector<8x8xf32>
    %242 = vector.extract_strided_slice %153 {offsets = [24, 0], sizes = [8, 32], strides = [1, 1]} : vector<32x32xf32> to vector<8x32xf32>
    %cst_105 = arith.constant dense<0.000000e+00> : vector<8x32xf32>
    %243 = tpu.matmul %241, %242, %cst_105 {dimension_numbers = #tpu.dot_dimension_numbers<[1], [0], [0], [1], [0, 0, 1, 1], [], []>} : vector<8x8xf32>, vector<8x32xf32>, vector<8x32xf32> -> vector<8x32xf32>
    %244 = arith.addf %221, %243 : vector<8x32xf32>
    %245 = vector.extract_strided_slice %8 {offsets = [7, 0], sizes = [1, 32], strides = [1, 1]} : vector<19x32xf32> to vector<1x32xf32>
    %246 = vector.broadcast %245 : vector<1x32xf32> to vector<8x32xf32>
    %247 = arith.addf %244, %246 : vector<8x32xf32>
    %248 = arith.addf %132, %247 : vector<8x32xf32>
    %249 = vector.extract_strided_slice %8 {offsets = [15, 0], sizes = [1, 32], strides = [1, 1]} : vector<19x32xf32> to vector<1x32xf32>
    %250 = vector.extract_strided_slice %8 {offsets = [16, 0], sizes = [1, 32], strides = [1, 1]} : vector<19x32xf32> to vector<1x32xf32>
    %cst_106 = arith.constant dense<0.000000e+00> : vector<8xf32>
    %251 = vector.multi_reduction <add>, %248, %cst_106 [1] : vector<8x32xf32> to vector<8xf32>
    %252 = vector.shape_cast %251 : vector<8xf32> to vector<8x1xf32>
    %cst_107 = arith.constant 3.200000e+01 : f32
    %253 = vector.broadcast %cst_107 : f32 to vector<8x1xf32>
    %254 = arith.divf %252, %253 : vector<8x1xf32>
    %255 = vector.broadcast %254 : vector<8x1xf32> to vector<8x32xf32>
    %256 = arith.subf %248, %255 : vector<8x32xf32>
    %257 = arith.mulf %256, %256 : vector<8x32xf32>
    %cst_108 = arith.constant dense<0.000000e+00> : vector<8xf32>
    %258 = vector.multi_reduction <add>, %257, %cst_108 [1] : vector<8x32xf32> to vector<8xf32>
    %259 = vector.shape_cast %258 : vector<8xf32> to vector<8x1xf32>
    %cst_109 = arith.constant 3.200000e+01 : f32
    %260 = vector.broadcast %cst_109 : f32 to vector<8x1xf32>
    %261 = arith.divf %259, %260 : vector<8x1xf32>
    %262 = vector.broadcast %254 : vector<8x1xf32> to vector<8x32xf32>
    %263 = arith.subf %248, %262 : vector<8x32xf32>
    %cst_110 = arith.constant 9.99999974E-6 : f32
    %264 = vector.broadcast %cst_110 : f32 to vector<8x1xf32>
    %265 = arith.addf %261, %264 : vector<8x1xf32>
    %266 = math.rsqrt %265 : vector<8x1xf32>
    %267 = vector.broadcast %266 : vector<8x1xf32> to vector<8x32xf32>
    %268 = arith.mulf %263, %267 : vector<8x32xf32>
    %269 = vector.broadcast %249 : vector<1x32xf32> to vector<8x32xf32>
    %270 = arith.mulf %268, %269 : vector<8x32xf32>
    %271 = vector.broadcast %250 : vector<1x32xf32> to vector<8x32xf32>
    %272 = arith.addf %270, %271 : vector<8x32xf32>
    %c0_111 = arith.constant 0 : index
    %c0_112 = arith.constant 0 : index
    %c0_113 = arith.constant 0 : index
    %273 = vector.load %arg10[%c0_111, %c0_112, %c0_113] : memref<1x32x64xf32, #tpu.memory_space<vmem>>, vector<1x32x64xf32>
    %274 = vector.shape_cast %273 : vector<1x32x64xf32> to vector<32x64xf32>
    %cst_114 = arith.constant dense<0.000000e+00> : vector<8x64xf32>
    %275 = tpu.matmul %272, %274, %cst_114 {dimension_numbers = #tpu.dot_dimension_numbers<[1], [0], [0], [1], [0, 0, 1, 1], [], []>} : vector<8x32xf32>, vector<32x64xf32>, vector<8x64xf32> -> vector<8x64xf32>
    %c0_115 = arith.constant 0 : index
    %c0_116 = arith.constant 0 : index
    %c0_117 = arith.constant 0 : index
    %276 = vector.load %arg11[%c0_115, %c0_116, %c0_117] : memref<1x1x64xf32, #tpu.memory_space<vmem>>, vector<1x1x64xf32>
    %277 = vector.shape_cast %276 : vector<1x1x64xf32> to vector<1x64xf32>
    %278 = vector.broadcast %277 : vector<1x64xf32> to vector<8x64xf32>
    %279 = arith.addf %275, %278 : vector<8x64xf32>
    %cst_118 = arith.constant 0.000000e+00 : f32
    %280 = vector.broadcast %cst_118 : f32 to vector<8x64xf32>
    %281 = arith.maximumf %279, %280 : vector<8x64xf32>
    %c0_119 = arith.constant 0 : index
    %c0_120 = arith.constant 0 : index
    %c0_121 = arith.constant 0 : index
    %282 = vector.load %arg12[%c0_119, %c0_120, %c0_121] : memref<1x64x32xf32, #tpu.memory_space<vmem>>, vector<1x64x32xf32>
    %283 = vector.shape_cast %282 : vector<1x64x32xf32> to vector<64x32xf32>
    %cst_122 = arith.constant dense<0.000000e+00> : vector<8x32xf32>
    %284 = tpu.matmul %281, %283, %cst_122 {dimension_numbers = #tpu.dot_dimension_numbers<[1], [0], [0], [1], [0, 0, 1, 1], [], []>} : vector<8x64xf32>, vector<64x32xf32>, vector<8x32xf32> -> vector<8x32xf32>
    %285 = vector.extract_strided_slice %8 {offsets = [12, 0], sizes = [1, 32], strides = [1, 1]} : vector<19x32xf32> to vector<1x32xf32>
    %286 = vector.broadcast %285 : vector<1x32xf32> to vector<8x32xf32>
    %287 = arith.addf %284, %286 : vector<8x32xf32>
    %288 = arith.addf %272, %287 : vector<8x32xf32>
    %289 = vector.extract_strided_slice %8 {offsets = [17, 0], sizes = [1, 32], strides = [1, 1]} : vector<19x32xf32> to vector<1x32xf32>
    %290 = vector.extract_strided_slice %8 {offsets = [18, 0], sizes = [1, 32], strides = [1, 1]} : vector<19x32xf32> to vector<1x32xf32>
    %cst_123 = arith.constant dense<0.000000e+00> : vector<8xf32>
    %291 = vector.multi_reduction <add>, %288, %cst_123 [1] : vector<8x32xf32> to vector<8xf32>
    %292 = vector.shape_cast %291 : vector<8xf32> to vector<8x1xf32>
    %cst_124 = arith.constant 3.200000e+01 : f32
    %293 = vector.broadcast %cst_124 : f32 to vector<8x1xf32>
    %294 = arith.divf %292, %293 : vector<8x1xf32>
    %295 = vector.broadcast %294 : vector<8x1xf32> to vector<8x32xf32>
    %296 = arith.subf %288, %295 : vector<8x32xf32>
    %297 = arith.mulf %296, %296 : vector<8x32xf32>
    %cst_125 = arith.constant dense<0.000000e+00> : vector<8xf32>
    %298 = vector.multi_reduction <add>, %297, %cst_125 [1] : vector<8x32xf32> to vector<8xf32>
    %299 = vector.shape_cast %298 : vector<8xf32> to vector<8x1xf32>
    %cst_126 = arith.constant 3.200000e+01 : f32
    %300 = vector.broadcast %cst_126 : f32 to vector<8x1xf32>
    %301 = arith.divf %299, %300 : vector<8x1xf32>
    %302 = vector.broadcast %294 : vector<8x1xf32> to vector<8x32xf32>
    %303 = arith.subf %288, %302 : vector<8x32xf32>
    %cst_127 = arith.constant 9.99999974E-6 : f32
    %304 = vector.broadcast %cst_127 : f32 to vector<8x1xf32>
    %305 = arith.addf %301, %304 : vector<8x1xf32>
    %306 = math.rsqrt %305 : vector<8x1xf32>
    %307 = vector.broadcast %306 : vector<8x1xf32> to vector<8x32xf32>
    %308 = arith.mulf %303, %307 : vector<8x32xf32>
    %309 = vector.broadcast %289 : vector<1x32xf32> to vector<8x32xf32>
    %310 = arith.mulf %308, %309 : vector<8x32xf32>
    %311 = vector.broadcast %290 : vector<1x32xf32> to vector<8x32xf32>
    %312 = arith.addf %310, %311 : vector<8x32xf32>
    %c0_128 = arith.constant 0 : index
    %c0_129 = arith.constant 0 : index
    %313 = vector.load %arg17[%c0_128, %c0_129] : memref<8x32xf32, #tpu.memory_space<vmem>>, vector<8x32xf32>
    tpu.vector_store %arg17[%c0_128, %c0_129], %312 {strides = array<i32>} : memref<8x32xf32, #tpu.memory_space<vmem>>, vector<8x32xf32>,
    %c0_130 = arith.constant 0 : index
    %c0_131 = arith.constant 0 : index
    %314 = vector.load %arg15[%c0_130, %c0_131] : memref<2x32xf32, #tpu.memory_space<vmem>>, vector<1x32xf32>
    %c1_132 = arith.constant 1 : index
    %c0_133 = arith.constant 0 : index
    %315 = vector.load %arg15[%c1_132, %c0_133] : memref<2x32xf32, #tpu.memory_space<vmem>>, vector<1x32xf32>
    %cst_134 = arith.constant dense<0.000000e+00> : vector<8xf32>
    %316 = vector.multi_reduction <add>, %312, %cst_134 [1] : vector<8x32xf32> to vector<8xf32>
    %317 = vector.shape_cast %316 : vector<8xf32> to vector<8x1xf32>
    %cst_135 = arith.constant 3.200000e+01 : f32
    %318 = vector.broadcast %cst_135 : f32 to vector<8x1xf32>
    %319 = arith.divf %317, %318 : vector<8x1xf32>
    %320 = vector.broadcast %319 : vector<8x1xf32> to vector<8x32xf32>
    %321 = arith.subf %312, %320 : vector<8x32xf32>
    %322 = arith.mulf %321, %321 : vector<8x32xf32>
    %cst_136 = arith.constant dense<0.000000e+00> : vector<8xf32>
    %323 = vector.multi_reduction <add>, %322, %cst_136 [1] : vector<8x32xf32> to vector<8xf32>
    %324 = vector.shape_cast %323 : vector<8xf32> to vector<8x1xf32>
    %cst_137 = arith.constant 3.200000e+01 : f32
    %325 = vector.broadcast %cst_137 : f32 to vector<8x1xf32>
    %326 = arith.divf %324, %325 : vector<8x1xf32>
    %327 = vector.broadcast %319 : vector<8x1xf32> to vector<8x32xf32>
    %328 = arith.subf %312, %327 : vector<8x32xf32>
    %cst_138 = arith.constant 9.99999974E-6 : f32
    %329 = vector.broadcast %cst_138 : f32 to vector<8x1xf32>
    %330 = arith.addf %326, %329 : vector<8x1xf32>
    %331 = math.rsqrt %330 : vector<8x1xf32>
    %332 = vector.broadcast %331 : vector<8x1xf32> to vector<8x32xf32>
    %333 = arith.mulf %328, %332 : vector<8x32xf32>
    %334 = vector.broadcast %314 : vector<1x32xf32> to vector<8x32xf32>
    %335 = arith.mulf %333, %334 : vector<8x32xf32>
    %336 = vector.broadcast %315 : vector<1x32xf32> to vector<8x32xf32>
    %337 = arith.addf %335, %336 : vector<8x32xf32>
    %c0_139 = arith.constant 0 : index
    %c0_140 = arith.constant 0 : index
    %c0_141 = arith.constant 0 : index
    %338 = vector.load %arg14[%c0_139, %c0_140, %c0_141] : memref<1x3x4xf32, #tpu.memory_space<vmem>>, vector<1x3x4xf32>
    %339 = vector.shape_cast %338 : vector<1x3x4xf32> to vector<3x4xf32>
    %c0_142 = arith.constant 0 : index
    %c8 = arith.constant 8 : index
    %c0_143 = arith.constant 0 : index
    %c0_144 = arith.constant 0 : index
    %340 = vector.load %arg8[%c0_142, %c8, %c0_143, %c0_144] : memref<1x12x32x32xf32, #tpu.memory_space<vmem>>, vector<1x1x32x32xf32>
    %341 = vector.shape_cast %340 : vector<1x1x32x32xf32> to vector<32x32xf32>
    %cst_145 = arith.constant dense<0.000000e+00> : vector<8x32xf32>
    %342 = tpu.matmul %337, %341, %cst_145 {dimension_numbers = #tpu.dot_dimension_numbers<[1], [0], [0], [1], [0, 0, 1, 1], [], []>} : vector<8x32xf32>, vector<32x32xf32>, vector<8x32xf32> -> vector<8x32xf32>
    %343 = vector.extract_strided_slice %8 {offsets = [8, 0], sizes = [1, 32], strides = [1, 1]} : vector<19x32xf32> to vector<1x32xf32>
    %344 = vector.broadcast %343 : vector<1x32xf32> to vector<8x32xf32>
    %345 = arith.addf %342, %344 : vector<8x32xf32>
    %cst_146 = arith.constant 0.000000e+00 : f32
    %346 = vector.broadcast %cst_146 : f32 to vector<8x32xf32>
    %347 = arith.maximumf %345, %346 : vector<8x32xf32>
    %c0_147 = arith.constant 0 : index
    %c9 = arith.constant 9 : index
    %c0_148 = arith.constant 0 : index
    %c0_149 = arith.constant 0 : index
    %348 = vector.load %arg8[%c0_147, %c9, %c0_148, %c0_149] : memref<1x12x32x32xf32, #tpu.memory_space<vmem>>, vector<1x1x32x32xf32>
    %349 = vector.shape_cast %348 : vector<1x1x32x32xf32> to vector<32x32xf32>
    %cst_150 = arith.constant dense<0.000000e+00> : vector<8x32xf32>
    %350 = tpu.matmul %347, %349, %cst_150 {dimension_numbers = #tpu.dot_dimension_numbers<[1], [0], [0], [1], [0, 0, 1, 1], [], []>} : vector<8x32xf32>, vector<32x32xf32>, vector<8x32xf32> -> vector<8x32xf32>
    %351 = vector.extract_strided_slice %8 {offsets = [9, 0], sizes = [1, 32], strides = [1, 1]} : vector<19x32xf32> to vector<1x32xf32>
    %352 = vector.broadcast %351 : vector<1x32xf32> to vector<8x32xf32>
    %353 = arith.addf %350, %352 : vector<8x32xf32>
    %cst_151 = arith.constant 0.000000e+00 : f32
    %354 = vector.broadcast %cst_151 : f32 to vector<8x32xf32>
    %355 = arith.maximumf %353, %354 : vector<8x32xf32>
    %c0_152 = arith.constant 0 : index
    %c0_153 = arith.constant 0 : index
    %c0_154 = arith.constant 0 : index
    %c0_155 = arith.constant 0 : index
    %356 = vector.load %arg13[%c0_152, %c0_153, %c0_154, %c0_155] : memref<1x3x32x4xf32, #tpu.memory_space<vmem>>, vector<1x1x32x4xf32>
    %357 = vector.shape_cast %356 : vector<1x1x32x4xf32> to vector<32x4xf32>
    %cst_156 = arith.constant dense<0.000000e+00> : vector<8x4xf32>
    %358 = tpu.matmul %355, %357, %cst_156 {dimension_numbers = #tpu.dot_dimension_numbers<[1], [0], [0], [1], [0, 0, 1, 1], [], []>} : vector<8x32xf32>, vector<32x4xf32>, vector<8x4xf32> -> vector<8x4xf32>
    %359 = vector.extract_strided_slice %339 {offsets = [0, 0], sizes = [1, 4], strides = [1, 1]} : vector<3x4xf32> to vector<1x4xf32>
    %360 = vector.broadcast %359 : vector<1x4xf32> to vector<8x4xf32>
    %361 = arith.addf %358, %360 : vector<8x4xf32>
    %c0_157 = arith.constant 0 : index
    %c10 = arith.constant 10 : index
    %c0_158 = arith.constant 0 : index
    %c0_159 = arith.constant 0 : index
    %362 = vector.load %arg8[%c0_157, %c10, %c0_158, %c0_159] : memref<1x12x32x32xf32, #tpu.memory_space<vmem>>, vector<1x1x32x32xf32>
    %363 = vector.shape_cast %362 : vector<1x1x32x32xf32> to vector<32x32xf32>
    %cst_160 = arith.constant dense<0.000000e+00> : vector<8x32xf32>
    %364 = tpu.matmul %337, %363, %cst_160 {dimension_numbers = #tpu.dot_dimension_numbers<[1], [0], [0], [1], [0, 0, 1, 1], [], []>} : vector<8x32xf32>, vector<32x32xf32>, vector<8x32xf32> -> vector<8x32xf32>
    %365 = vector.extract_strided_slice %8 {offsets = [10, 0], sizes = [1, 32], strides = [1, 1]} : vector<19x32xf32> to vector<1x32xf32>
    %366 = vector.broadcast %365 : vector<1x32xf32> to vector<8x32xf32>
    %367 = arith.addf %364, %366 : vector<8x32xf32>
    %cst_161 = arith.constant 0.000000e+00 : f32
    %368 = vector.broadcast %cst_161 : f32 to vector<8x32xf32>
    %369 = arith.maximumf %367, %368 : vector<8x32xf32>
    %c0_162 = arith.constant 0 : index
    %c11 = arith.constant 11 : index
    %c0_163 = arith.constant 0 : index
    %c0_164 = arith.constant 0 : index
    %370 = vector.load %arg8[%c0_162, %c11, %c0_163, %c0_164] : memref<1x12x32x32xf32, #tpu.memory_space<vmem>>, vector<1x1x32x32xf32>
    %371 = vector.shape_cast %370 : vector<1x1x32x32xf32> to vector<32x32xf32>
    %cst_165 = arith.constant dense<0.000000e+00> : vector<8x32xf32>
    %372 = tpu.matmul %369, %371, %cst_165 {dimension_numbers = #tpu.dot_dimension_numbers<[1], [0], [0], [1], [0, 0, 1, 1], [], []>} : vector<8x32xf32>, vector<32x32xf32>, vector<8x32xf32> -> vector<8x32xf32>
    %373 = vector.extract_strided_slice %8 {offsets = [11, 0], sizes = [1, 32], strides = [1, 1]} : vector<19x32xf32> to vector<1x32xf32>
    %374 = vector.broadcast %373 : vector<1x32xf32> to vector<8x32xf32>
    %375 = arith.addf %372, %374 : vector<8x32xf32>
    %cst_166 = arith.constant 0.000000e+00 : f32
    %376 = vector.broadcast %cst_166 : f32 to vector<8x32xf32>
    %377 = arith.maximumf %375, %376 : vector<8x32xf32>
    %c0_167 = arith.constant 0 : index
    %c1_168 = arith.constant 1 : index
    %c0_169 = arith.constant 0 : index
    %c0_170 = arith.constant 0 : index
    %378 = vector.load %arg13[%c0_167, %c1_168, %c0_169, %c0_170] : memref<1x3x32x4xf32, #tpu.memory_space<vmem>>, vector<1x1x32x4xf32>
    %379 = vector.shape_cast %378 : vector<1x1x32x4xf32> to vector<32x4xf32>
    %cst_171 = arith.constant dense<0.000000e+00> : vector<8x4xf32>
    %380 = tpu.matmul %377, %379, %cst_171 {dimension_numbers = #tpu.dot_dimension_numbers<[1], [0], [0], [1], [0, 0, 1, 1], [], []>} : vector<8x32xf32>, vector<32x4xf32>, vector<8x4xf32> -> vector<8x4xf32>
    %381 = vector.extract_strided_slice %339 {offsets = [1, 0], sizes = [1, 4], strides = [1, 1]} : vector<3x4xf32> to vector<1x4xf32>
    %382 = vector.broadcast %381 : vector<1x4xf32> to vector<8x4xf32>
    %383 = arith.addf %380, %382 : vector<8x4xf32>
    %c0_172 = arith.constant 0 : index
    %c2_173 = arith.constant 2 : index
    %c0_174 = arith.constant 0 : index
    %c0_175 = arith.constant 0 : index
    %384 = vector.load %arg13[%c0_172, %c2_173, %c0_174, %c0_175] : memref<1x3x32x4xf32, #tpu.memory_space<vmem>>, vector<1x1x32x4xf32>
    %385 = vector.shape_cast %384 : vector<1x1x32x4xf32> to vector<32x4xf32>
    %cst_176 = arith.constant dense<0.000000e+00> : vector<8x4xf32>
    %386 = tpu.matmul %337, %385, %cst_176 {dimension_numbers = #tpu.dot_dimension_numbers<[1], [0], [0], [1], [0, 0, 1, 1], [], []>} : vector<8x32xf32>, vector<32x4xf32>, vector<8x4xf32> -> vector<8x4xf32>
    %387 = vector.extract_strided_slice %339 {offsets = [2, 0], sizes = [1, 4], strides = [1, 1]} : vector<3x4xf32> to vector<1x4xf32>
    %388 = vector.broadcast %387 : vector<1x4xf32> to vector<8x4xf32>
    %389 = arith.addf %386, %388 : vector<8x4xf32>
    %c0_177 = arith.constant 0 : index
    %c0_178 = arith.constant 0 : index
    %390 = vector.load %arg18[%c0_177, %c0_178] : memref<8x4xf32, #tpu.memory_space<vmem>>, vector<8x4xf32>
    %cst_179 = arith.constant 0.000000e+00 : f32
    %cst_180 = arith.constant 1.000000e+00 : f32
    %391 = vector.broadcast %cst_179 : f32 to vector<8x4xf32>
    %392 = arith.maximumf %391, %390 : vector<8x4xf32>
    %393 = vector.broadcast %cst_180 : f32 to vector<8x4xf32>
    %394 = arith.minimumf %393, %392 : vector<8x4xf32>
    %cst_181 = arith.constant 9.99999974E-6 : f32
    %395 = vector.broadcast %cst_181 : f32 to vector<8x4xf32>
    %396 = arith.maximumf %394, %395 : vector<8x4xf32>
    %397 = math.log %396 : vector<8x4xf32>
    %cst_182 = arith.constant 1.000000e+00 : f32
    %398 = vector.broadcast %cst_182 : f32 to vector<8x4xf32>
    %399 = arith.subf %398, %394 : vector<8x4xf32>
    %cst_183 = arith.constant 9.99999974E-6 : f32
    %400 = vector.broadcast %cst_183 : f32 to vector<8x4xf32>
    %401 = arith.maximumf %399, %400 : vector<8x4xf32>
    %402 = math.log %401 : vector<8x4xf32>
    %403 = arith.subf %397, %402 : vector<8x4xf32>
    %404 = arith.addf %361, %403 : vector<8x4xf32>
    %c0_184 = arith.constant 0 : index
    %c0_185 = arith.constant 0 : index
    %c0_186 = arith.constant 0 : index
    %c0_187 = arith.constant 0 : index
    %405 = vector.load %arg16[%c0_184, %c0_185, %c0_186, %c0_187] : memref<1x3x8x4xf32, #tpu.memory_space<vmem>>, vector<1x1x8x4xf32>
    %406 = vector.shape_cast %405 : vector<1x1x8x4xf32> to vector<8x4xf32>
    %407 = vector.shape_cast %404 : vector<8x4xf32> to vector<1x1x8x4xf32>
    tpu.vector_store %arg16[%c0_184, %c0_185, %c0_186, %c0_187], %407 {strides = array<i32>} : memref<1x3x8x4xf32, #tpu.memory_space<vmem>>, vector<1x1x8x4xf32>,
    %c0_188 = arith.constant 0 : index
    %c1_189 = arith.constant 1 : index
    %c0_190 = arith.constant 0 : index
    %c0_191 = arith.constant 0 : index
    %408 = vector.load %arg16[%c0_188, %c1_189, %c0_190, %c0_191] : memref<1x3x8x4xf32, #tpu.memory_space<vmem>>, vector<1x1x8x4xf32>
    %409 = vector.shape_cast %408 : vector<1x1x8x4xf32> to vector<8x4xf32>
    %410 = vector.shape_cast %383 : vector<8x4xf32> to vector<1x1x8x4xf32>
    tpu.vector_store %arg16[%c0_188, %c1_189, %c0_190, %c0_191], %410 {strides = array<i32>} : memref<1x3x8x4xf32, #tpu.memory_space<vmem>>, vector<1x1x8x4xf32>,
    %c0_192 = arith.constant 0 : index
    %c2_193 = arith.constant 2 : index
    %c0_194 = arith.constant 0 : index
    %c0_195 = arith.constant 0 : index
    %411 = vector.load %arg16[%c0_192, %c2_193, %c0_194, %c0_195] : memref<1x3x8x4xf32, #tpu.memory_space<vmem>>, vector<1x1x8x4xf32>
    %412 = vector.shape_cast %411 : vector<1x1x8x4xf32> to vector<8x4xf32>
    %413 = vector.shape_cast %389 : vector<8x4xf32> to vector<1x1x8x4xf32>
    tpu.vector_store %arg16[%c0_192, %c2_193, %c0_194, %c0_195], %413 {strides = array<i32>} : memref<1x3x8x4xf32, #tpu.memory_space<vmem>>, vector<1x1x8x4xf32>,
    return
  }
  func.func @transform_0(%arg0: i32, %arg1: i32) -> (i32, i32) {
    %c0_i32 = arith.constant 0 : i32
    %c0_i32_0 = arith.constant 0 : i32
    return %arg0, %c0_i32 : i32, i32
  }
  func.func @transform_1(%arg0: i32, %arg1: i32) -> (i32, i32) {
    %c0_i32 = arith.constant 0 : i32
    %c0_i32_0 = arith.constant 0 : i32
    return %arg0, %c0_i32 : i32, i32
  }
  func.func @transform_2(%arg0: i32, %arg1: i32) -> (i32, i32) {
    %c0_i32 = arith.constant 0 : i32
    %c0_i32_0 = arith.constant 0 : i32
    return %arg0, %c0_i32 : i32, i32
  }
  func.func @transform_3(%arg0: i32, %arg1: i32) -> (i32, i32) {
    %c0_i32 = arith.constant 0 : i32
    %c0_i32_0 = arith.constant 0 : i32
    return %arg0, %c0_i32 : i32, i32
  }
  func.func @transform_4(%arg0: i32, %arg1: i32) -> (i32, i32, i32) {
    %c0_i32 = arith.constant 0 : i32
    %c0_i32_0 = arith.constant 0 : i32
    %c0_i32_1 = arith.constant 0 : i32
    return %arg0, %c0_i32, %c0_i32_0 : i32, i32, i32
  }
  func.func @transform_5(%arg0: i32, %arg1: i32) -> (i32, i32) {
    %c0_i32 = arith.constant 0 : i32
    %c0_i32_0 = arith.constant 0 : i32
    return %arg0, %c0_i32 : i32, i32
  }
  func.func @transform_6(%arg0: i32, %arg1: i32) -> (i32, i32, i32, i32) {
    %c0_i32 = arith.constant 0 : i32
    %c0_i32_0 = arith.constant 0 : i32
    %c0_i32_1 = arith.constant 0 : i32
    %c0_i32_2 = arith.constant 0 : i32
    return %arg1, %c0_i32, %c0_i32_0, %c0_i32_1 : i32, i32, i32, i32
  }
  func.func @transform_7(%arg0: i32, %arg1: i32) -> (i32, i32, i32) {
    %c0_i32 = arith.constant 0 : i32
    %c0_i32_0 = arith.constant 0 : i32
    %c0_i32_1 = arith.constant 0 : i32
    return %arg1, %c0_i32, %c0_i32_0 : i32, i32, i32
  }
  func.func @transform_8(%arg0: i32, %arg1: i32) -> (i32, i32, i32) {
    %c0_i32 = arith.constant 0 : i32
    %c0_i32_0 = arith.constant 0 : i32
    %c0_i32_1 = arith.constant 0 : i32
    return %arg1, %c0_i32, %c0_i32_0 : i32, i32, i32
  }
  func.func @transform_9(%arg0: i32, %arg1: i32) -> (i32, i32, i32) {
    %c0_i32 = arith.constant 0 : i32
    %c0_i32_0 = arith.constant 0 : i32
    %c0_i32_1 = arith.constant 0 : i32
    return %arg1, %c0_i32, %c0_i32_0 : i32, i32, i32
  }
  func.func @transform_10(%arg0: i32, %arg1: i32) -> (i32, i32, i32) {
    %c0_i32 = arith.constant 0 : i32
    %c0_i32_0 = arith.constant 0 : i32
    %c0_i32_1 = arith.constant 0 : i32
    return %arg1, %c0_i32, %c0_i32_0 : i32, i32, i32
  }
  func.func @transform_11(%arg0: i32, %arg1: i32) -> (i32, i32, i32, i32) {
    %c0_i32 = arith.constant 0 : i32
    %c0_i32_0 = arith.constant 0 : i32
    %c0_i32_1 = arith.constant 0 : i32
    %c0_i32_2 = arith.constant 0 : i32
    return %arg1, %c0_i32, %c0_i32_0, %c0_i32_1 : i32, i32, i32, i32
  }
  func.func @transform_12(%arg0: i32, %arg1: i32) -> (i32, i32, i32) {
    %c0_i32 = arith.constant 0 : i32
    %c0_i32_0 = arith.constant 0 : i32
    %c0_i32_1 = arith.constant 0 : i32
    return %arg1, %c0_i32, %c0_i32_0 : i32, i32, i32
  }
  func.func @transform_13(%arg0: i32, %arg1: i32) -> (i32, i32) {
    %c0_i32 = arith.constant 0 : i32
    %c0_i32_0 = arith.constant 0 : i32
    %c0_i32_1 = arith.constant 0 : i32
    return %c0_i32, %c0_i32_0 : i32, i32
  }
  func.func @transform_14(%arg0: i32, %arg1: i32) -> (i32, i32, i32, i32) {
    %c0_i32 = arith.constant 0 : i32
    %c0_i32_0 = arith.constant 0 : i32
    %c0_i32_1 = arith.constant 0 : i32
    return %arg1, %c0_i32, %arg0, %c0_i32_0 : i32, i32, i32, i32
  }
}

</mosaic_0001>

<llo_original>
// kernel: tpu_custom_call.1
$region0: #{tpu_custom_call.1}
  #allocation0 [shape = 'u32[]', space=smem, size = 0x4, offset = 0x4, fixed_abs, tag = 'smem constant byte address 0x4 - core index']
  #allocation1 [shape = 'u32[144,128]{1,0:T(1,128)}', space=vmem, size = 0x12000, scoped, tag = 'internal scratch']
  #allocation2 [shape = 'f32[8,32]{1,0:T(8,128)}', space=vmem, size = 0x1000, scoped, tag = 'scratch operand']
  #allocation3 [shape = 'f32[8,4]{1,0:T(8,128)}', space=vmem, size = 0x1000, scoped, tag = 'scratch operand']
  %s0 = inlined_call_operand.vmem [shape: f32[16,32], index: 0, kind: input, shape index: {}]
  %s1 = inlined_call_operand.vmem [shape: f32[16,32], index: 1, kind: input, shape index: {}]
  %s2 = inlined_call_operand.vmem [shape: f32[32,32], index: 2, kind: input, shape index: {}]
  %s3 = inlined_call_operand.vmem [shape: f32[32,32], index: 3, kind: input, shape index: {}]
  %s4 = inlined_call_operand.vmem [shape: f32[2,1,16], index: 4, kind: input, shape index: {}]
  %s5 = inlined_call_operand.vmem [shape: f32[16,4], index: 5, kind: input, shape index: {}]
  %s6 = inlined_call_operand.hbm [shape: f32[2,12,32,32], index: 6, kind: input, shape index: {}]
  %s7 = inlined_call_operand.vmem [shape: f32[2,19,32], index: 7, kind: input, shape index: {}]
  %s8 = inlined_call_operand.vmem [shape: f32[2,32,64], index: 8, kind: input, shape index: {}]
  %s9 = inlined_call_operand.vmem [shape: f32[2,1,64], index: 9, kind: input, shape index: {}]
  %s10 = inlined_call_operand.vmem [shape: f32[2,64,32], index: 10, kind: input, shape index: {}]
  %s11 = inlined_call_operand.vmem [shape: f32[2,3,32,4], index: 11, kind: input, shape index: {}]
  %s12 = inlined_call_operand.vmem [shape: f32[2,3,4], index: 12, kind: input, shape index: {}]
  %s13 = inlined_call_operand.vmem [shape: f32[2,32], index: 13, kind: input, shape index: {}]
  %s14 = inlined_call_operand.vmem [shape: f32[2,3,16,4], index: 14, kind: output, shape index: {}]
  %s15 = sld [smem:[#allocation0]]
  $region131: #{tpu_custom_call.1} parent=0
    _
  %s17 = ssub.s32 1, %s15
  %s18 = scalar_select 0, %s17, %s15
  $region1: #{tpu_custom_call.1} parent=0
    #allocation4 [shape = 'u8[393216]{0}', space=vmem, size = 0x60000, scoped, tag = 'input window, operand 6']
    #allocation5 [shape = 's32[2]{0}', space=sflag, size = 0x8, scoped, tag = 'scoped memory for tpu_custom_call.1']
    #allocation6 [shape = 'u8[24576]{0}', space=vmem, size = 0x6000, scoped, tag = 'output window, operand 0']
    %19 = vsyncpa [#allocation5], 0
    %s20 = scalar_lea.sflag [#allocation5], 1
    %21 = vsyncpa %s20, 0
    loop: start=0, step=1, limit=6
    $region2: #{tpu_custom_call.1} parent=1 // loop_pre_header
      _
    $region3: #{tpu_custom_call.1} parent=1 // loop_header
      %s23 = sphi 0, %s27
      %p24 = scmp.ge.s32.totalorder %s23, 6
      %s30 = sphi 0, %s42
      %s31 = sphi 0, %s38
      %s32 = sphi 0, %s30
      %s33 = sphi 0, %s31
      %s34 = sphi 0, %s32
      %s35 = sphi 0, %s33
      %s45 = sphi 0, %s47
      %s48 = sphi 0, %s45
      %s49 = sphi 0, %s48
      %s65 = sphi 0, %s49
      %s71 = sphi 0, %s73
      %s74 = sphi 0, %s71
      %s75 = sphi 0, %s74
      %s91 = sphi 0, %s75
      %s97 = sphi 0, %s99
      %s100 = sphi 0, %s97
      %s101 = sphi 0, %s100
      %s117 = sphi 0, %s101
      %s123 = sphi 0, %s125
      %s126 = sphi 0, %s123
      %s127 = sphi 0, %s126
      %s143 = sphi 0, %s127
      %s149 = sphi 0, %s151
      %s152 = sphi 0, %s149
      %s153 = sphi 0, %s152
      %s169 = sphi 0, %s153
      %s175 = sphi 0, %s177
      %s178 = sphi 0, %s175
      %s179 = sphi 0, %s178
      %s195 = sphi 0, %s179
      %s201 = sphi 0, %s203
      %s204 = sphi 0, %s201
      %s205 = sphi 0, %s204
      %s221 = sphi 0, %s205
      %s227 = sphi 0, %s229
      %s230 = sphi 0, %s227
      %s231 = sphi 0, %s230
      %s247 = sphi 0, %s231
      %s253 = sphi 0, %s255
      %s256 = sphi 0, %s253
      %s257 = sphi 0, %s256
      %s273 = sphi 0, %s257
      %s279 = sphi 0, %s281
      %s282 = sphi 0, %s279
      %s283 = sphi 0, %s282
      %s299 = sphi 0, %s283
      %s305 = sphi 0, %s307
      %s308 = sphi 0, %s305
      %s309 = sphi 0, %s308
      %s325 = sphi 0, %s309
      %s331 = sphi 0, %s333
      %s334 = sphi 0, %s331
      %s335 = sphi 0, %s334
      %s351 = sphi 0, %s335
      %s357 = sphi 0, %s359
      %s360 = sphi 0, %s357
      %s361 = sphi 0, %s360
      %s377 = sphi 0, %s361
      %s381 = sphi 0, %s381
      %s383 = sphi 0, %s381
      %s384 = sphi 0, %s383
      %s398 = sphi 0, %s384
      %s406 = sphi 0, %s408
      %s409 = sphi 0, %s406
      %s410 = sphi 0, %s409
      %s426 = sphi 0, %s410
    $region4: #{tpu_custom_call.1} parent=1 // loop_header_branch
      %26 = sbr.rel (%p24) target = $region8
    $region5: #{tpu_custom_call.1} parent=1 // loop_body
      %s28 = ssub.s32 %s23, 1
      %s29 = ssub.s32 %s23, 2
      %s36 = sadd.s32 1, %s31
      %p37 = scmp.ge.s32.totalorder %s36, 2
      %s38 = scalar_select %p37, 0, %s36
      %s39 = sadd.s32 1, %s30
      %s40 = scalar_select %p37, %s39, %s30
      %p41 = scmp.ge.s32.totalorder %s40, 2
      %s42 = scalar_select %p41, 0, %s40
      %s43 = ssub.s32 %s30, %s42
      %p44 = scmp.eq.s32.totalorder %s43, 0
      %s46 = sadd.s32 %s45, 1
      %s47 = scalar_select %p44, %s45, %s46
      %p50 = pneg %p44
      %p51 = scmp.eq.s32.totalorder %s23, 3
      %p52 = por %p50, %p51
      %p53 = scmp.ne.s32.totalorder %s45, %s48
      %p54 = scmp.eq.s32.totalorder %s23, 0
      %p55 = por %p53, %p54
      %p56 = scmp.ne.s32.totalorder %s45, %s48
      %p57 = scmp.eq.s32.totalorder %s28, 3
      %p58 = por %p56, %p57
      %p59 = scmp.ne.s32.totalorder %s48, %s49
      %p60 = scmp.eq.s32.totalorder %s28, 0
      %p61 = por %p59, %p60
      %p62 = scmp.ne.s32.totalorder %s48, %s49
      %p63 = scmp.eq.s32.totalorder %s29, 3
      %p64 = por %p62, %p63
      %p66 = scmp.ne.s32.totalorder %s49, %s65
      %p67 = scmp.eq.s32.totalorder %s29, 0
      %p68 = por %p66, %p67
      %s69 = ssub.s32 %s30, %s42
      %p70 = scmp.eq.s32.totalorder %s69, 0
      %s72 = sadd.s32 %s71, 1
      %s73 = scalar_select %p70, %s71, %s72
      %p76 = pneg %p70
      %p77 = scmp.eq.s32.totalorder %s23, 3
      %p78 = por %p76, %p77
      %p79 = scmp.ne.s32.totalorder %s71, %s74
      %p80 = scmp.eq.s32.totalorder %s23, 0
      %p81 = por %p79, %p80
      %p82 = scmp.ne.s32.totalorder %s71, %s74
      %p83 = scmp.eq.s32.totalorder %s28, 3
      %p84 = por %p82, %p83
      %p85 = scmp.ne.s32.totalorder %s74, %s75
      %p86 = scmp.eq.s32.totalorder %s28, 0
      %p87 = por %p85, %p86
      %p88 = scmp.ne.s32.totalorder %s74, %s75
      %p89 = scmp.eq.s32.totalorder %s29, 3
      %p90 = por %p88, %p89
      %p92 = scmp.ne.s32.totalorder %s75, %s91
      %p93 = scmp.eq.s32.totalorder %s29, 0
      %p94 = por %p92, %p93
      %s95 = ssub.s32 %s30, %s42
      %p96 = scmp.eq.s32.totalorder %s95, 0
      %s98 = sadd.s32 %s97, 1
      %s99 = scalar_select %p96, %s97, %s98
      %p102 = pneg %p96
      %p103 = scmp.eq.s32.totalorder %s23, 3
      %p104 = por %p102, %p103
      %p105 = scmp.ne.s32.totalorder %s97, %s100
      %p106 = scmp.eq.s32.totalorder %s23, 0
      %p107 = por %p105, %p106
      %p108 = scmp.ne.s32.totalorder %s97, %s100
      %p109 = scmp.eq.s32.totalorder %s28, 3
      %p110 = por %p108, %p109
      %p111 = scmp.ne.s32.totalorder %s100, %s101
      %p112 = scmp.eq.s32.totalorder %s28, 0
      %p113 = por %p111, %p112
      %p114 = scmp.ne.s32.totalorder %s100, %s101
      %p115 = scmp.eq.s32.totalorder %s29, 3
      %p116 = por %p114, %p115
      %p118 = scmp.ne.s32.totalorder %s101, %s117
      %p119 = scmp.eq.s32.totalorder %s29, 0
      %p120 = por %p118, %p119
      %s121 = ssub.s32 %s30, %s42
      %p122 = scmp.eq.s32.totalorder %s121, 0
      %s124 = sadd.s32 %s123, 1
      %s125 = scalar_select %p122, %s123, %s124
      %p128 = pneg %p122
      %p129 = scmp.eq.s32.totalorder %s23, 3
      %p130 = por %p128, %p129
      %p131 = scmp.ne.s32.totalorder %s123, %s126
      %p132 = scmp.eq.s32.totalorder %s23, 0
      %p133 = por %p131, %p132
      %p134 = scmp.ne.s32.totalorder %s123, %s126
      %p135 = scmp.eq.s32.totalorder %s28, 3
      %p136 = por %p134, %p135
      %p137 = scmp.ne.s32.totalorder %s126, %s127
      %p138 = scmp.eq.s32.totalorder %s28, 0
      %p139 = por %p137, %p138
      %p140 = scmp.ne.s32.totalorder %s126, %s127
      %p141 = scmp.eq.s32.totalorder %s29, 3
      %p142 = por %p140, %p141
      %p144 = scmp.ne.s32.totalorder %s127, %s143
      %p145 = scmp.eq.s32.totalorder %s29, 0
      %p146 = por %p144, %p145
      %s147 = ssub.s32 %s30, %s42
      %p148 = scmp.eq.s32.totalorder %s147, 0
      %s150 = sadd.s32 %s149, 1
      %s151 = scalar_select %p148, %s149, %s150
      %p154 = pneg %p148
      %p155 = scmp.eq.s32.totalorder %s23, 3
      %p156 = por %p154, %p155
      %p157 = scmp.ne.s32.totalorder %s149, %s152
      %p158 = scmp.eq.s32.totalorder %s23, 0
      %p159 = por %p157, %p158
      %p160 = scmp.ne.s32.totalorder %s149, %s152
      %p161 = scmp.eq.s32.totalorder %s28, 3
      %p162 = por %p160, %p161
      %p163 = scmp.ne.s32.totalorder %s152, %s153
      %p164 = scmp.eq.s32.totalorder %s28, 0
      %p165 = por %p163, %p164
      %p166 = scmp.ne.s32.totalorder %s152, %s153
      %p167 = scmp.eq.s32.totalorder %s29, 3
      %p168 = por %p166, %p167
      %p170 = scmp.ne.s32.totalorder %s153, %s169
      %p171 = scmp.eq.s32.totalorder %s29, 0
      %p172 = por %p170, %p171
      %s173 = ssub.s32 %s30, %s42
      %p174 = scmp.eq.s32.totalorder %s173, 0
      %s176 = sadd.s32 %s175, 1
      %s177 = scalar_select %p174, %s175, %s176
      %p180 = pneg %p174
      %p181 = scmp.eq.s32.totalorder %s23, 3
      %p182 = por %p180, %p181
      %p183 = scmp.ne.s32.totalorder %s175, %s178
      %p184 = scmp.eq.s32.totalorder %s23, 0
      %p185 = por %p183, %p184
      %p186 = scmp.ne.s32.totalorder %s175, %s178
      %p187 = scmp.eq.s32.totalorder %s28, 3
      %p188 = por %p186, %p187
      %p189 = scmp.ne.s32.totalorder %s178, %s179
      %p190 = scmp.eq.s32.totalorder %s28, 0
      %p191 = por %p189, %p190
      %p192 = scmp.ne.s32.totalorder %s178, %s179
      %p193 = scmp.eq.s32.totalorder %s29, 3
      %p194 = por %p192, %p193
      %p196 = scmp.ne.s32.totalorder %s179, %s195
      %p197 = scmp.eq.s32.totalorder %s29, 0
      %p198 = por %p196, %p197
      %s199 = ssub.s32 %s31, %s38
      %p200 = scmp.eq.s32.totalorder %s199, 0
      %s202 = sadd.s32 %s201, 1
      %s203 = scalar_select %p200, %s201, %s202
      %p206 = pneg %p200
      %p207 = scmp.eq.s32.totalorder %s23, 3
      %p208 = por %p206, %p207
      %p209 = scmp.ne.s32.totalorder %s201, %s204
      %p210 = scmp.eq.s32.totalorder %s23, 0
      %p211 = por %p209, %p210
      %p212 = scmp.ne.s32.totalorder %s201, %s204
      %p213 = scmp.eq.s32.totalorder %s28, 3
      %p214 = por %p212, %p213
      %p215 = scmp.ne.s32.totalorder %s204, %s205
      %p216 = scmp.eq.s32.totalorder %s28, 0
      %p217 = por %p215, %p216
      %p218 = scmp.ne.s32.totalorder %s204, %s205
      %p219 = scmp.eq.s32.totalorder %s29, 3
      %p220 = por %p218, %p219
      %p222 = scmp.ne.s32.totalorder %s205, %s221
      %p223 = scmp.eq.s32.totalorder %s29, 0
      %p224 = por %p222, %p223
      %s225 = ssub.s32 %s31, %s38
      %p226 = scmp.eq.s32.totalorder %s225, 0
      %s228 = sadd.s32 %s227, 1
      %s229 = scalar_select %p226, %s227, %s228
      %p232 = pneg %p226
      %p233 = scmp.eq.s32.totalorder %s23, 3
      %p234 = por %p232, %p233
      %p235 = scmp.ne.s32.totalorder %s227, %s230
      %p236 = scmp.eq.s32.totalorder %s23, 0
      %p237 = por %p235, %p236
      %p238 = scmp.ne.s32.totalorder %s227, %s230
      %p239 = scmp.eq.s32.totalorder %s28, 3
      %p240 = por %p238, %p239
      %p241 = scmp.ne.s32.totalorder %s230, %s231
      %p242 = scmp.eq.s32.totalorder %s28, 0
      %p243 = por %p241, %p242
      %p244 = scmp.ne.s32.totalorder %s230, %s231
      %p245 = scmp.eq.s32.totalorder %s29, 3
      %p246 = por %p244, %p245
      %p248 = scmp.ne.s32.totalorder %s231, %s247
      %p249 = scmp.eq.s32.totalorder %s29, 0
      %p250 = por %p248, %p249
      %s251 = ssub.s32 %s31, %s38
      %p252 = scmp.eq.s32.totalorder %s251, 0
      %s254 = sadd.s32 %s253, 1
      %s255 = scalar_select %p252, %s253, %s254
      %p258 = pneg %p252
      %p259 = scmp.eq.s32.totalorder %s23, 3
      %p260 = por %p258, %p259
      %p261 = scmp.ne.s32.totalorder %s253, %s256
      %p262 = scmp.eq.s32.totalorder %s23, 0
      %p263 = por %p261, %p262
      %p264 = scmp.ne.s32.totalorder %s253, %s256
      %p265 = scmp.eq.s32.totalorder %s28, 3
      %p266 = por %p264, %p265
      %p267 = scmp.ne.s32.totalorder %s256, %s257
      %p268 = scmp.eq.s32.totalorder %s28, 0
      %p269 = por %p267, %p268
      %p270 = scmp.ne.s32.totalorder %s256, %s257
      %p271 = scmp.eq.s32.totalorder %s29, 3
      %p272 = por %p270, %p271
      %p274 = scmp.ne.s32.totalorder %s257, %s273
      %p275 = scmp.eq.s32.totalorder %s29, 0
      %p276 = por %p274, %p275
      %s277 = ssub.s32 %s31, %s38
      %p278 = scmp.eq.s32.totalorder %s277, 0
      %s280 = sadd.s32 %s279, 1
      %s281 = scalar_select %p278, %s279, %s280
      %p284 = pneg %p278
      %p285 = scmp.eq.s32.totalorder %s23, 3
      %p286 = por %p284, %p285
      %p287 = scmp.ne.s32.totalorder %s279, %s282
      %p288 = scmp.eq.s32.totalorder %s23, 0
      %p289 = por %p287, %p288
      %p290 = scmp.ne.s32.totalorder %s279, %s282
      %p291 = scmp.eq.s32.totalorder %s28, 3
      %p292 = por %p290, %p291
      %p293 = scmp.ne.s32.totalorder %s282, %s283
      %p294 = scmp.eq.s32.totalorder %s28, 0
      %p295 = por %p293, %p294
      %p296 = scmp.ne.s32.totalorder %s282, %s283
      %p297 = scmp.eq.s32.totalorder %s29, 3
      %p298 = por %p296, %p297
      %p300 = scmp.ne.s32.totalorder %s283, %s299
      %p301 = scmp.eq.s32.totalorder %s29, 0
      %p302 = por %p300, %p301
      %s303 = ssub.s32 %s31, %s38
      %p304 = scmp.eq.s32.totalorder %s303, 0
      %s306 = sadd.s32 %s305, 1
      %s307 = scalar_select %p304, %s305, %s306
      %p310 = pneg %p304
      %p311 = scmp.eq.s32.totalorder %s23, 3
      %p312 = por %p310, %p311
      %p313 = scmp.ne.s32.totalorder %s305, %s308
      %p314 = scmp.eq.s32.totalorder %s23, 0
      %p315 = por %p313, %p314
      %p316 = scmp.ne.s32.totalorder %s305, %s308
      %p317 = scmp.eq.s32.totalorder %s28, 3
      %p318 = por %p316, %p317
      %p319 = scmp.ne.s32.totalorder %s308, %s309
      %p320 = scmp.eq.s32.totalorder %s28, 0
      %p321 = por %p319, %p320
      %p322 = scmp.ne.s32.totalorder %s308, %s309
      %p323 = scmp.eq.s32.totalorder %s29, 3
      %p324 = por %p322, %p323
      %p326 = scmp.ne.s32.totalorder %s309, %s325
      %p327 = scmp.eq.s32.totalorder %s29, 0
      %p328 = por %p326, %p327
      %s329 = ssub.s32 %s31, %s38
      %p330 = scmp.eq.s32.totalorder %s329, 0
      %s332 = sadd.s32 %s331, 1
      %s333 = scalar_select %p330, %s331, %s332
      %p336 = pneg %p330
      %p337 = scmp.eq.s32.totalorder %s23, 3
      %p338 = por %p336, %p337
      %p339 = scmp.ne.s32.totalorder %s331, %s334
      %p340 = scmp.eq.s32.totalorder %s23, 0
      %p341 = por %p339, %p340
      %p342 = scmp.ne.s32.totalorder %s331, %s334
      %p343 = scmp.eq.s32.totalorder %s28, 3
      %p344 = por %p342, %p343
      %p345 = scmp.ne.s32.totalorder %s334, %s335
      %p346 = scmp.eq.s32.totalorder %s28, 0
      %p347 = por %p345, %p346
      %p348 = scmp.ne.s32.totalorder %s334, %s335
      %p349 = scmp.eq.s32.totalorder %s29, 3
      %p350 = por %p348, %p349
      %p352 = scmp.ne.s32.totalorder %s335, %s351
      %p353 = scmp.eq.s32.totalorder %s29, 0
      %p354 = por %p352, %p353
      %s355 = ssub.s32 %s31, %s38
      %p356 = scmp.eq.s32.totalorder %s355, 0
      %s358 = sadd.s32 %s357, 1
      %s359 = scalar_select %p356, %s357, %s358
      %p362 = pneg %p356
      %p363 = scmp.eq.s32.totalorder %s23, 3
      %p364 = por %p362, %p363
      %p365 = scmp.ne.s32.totalorder %s357, %s360
      %p366 = scmp.eq.s32.totalorder %s23, 0
      %p367 = por %p365, %p366
      %p368 = scmp.ne.s32.totalorder %s357, %s360
      %p369 = scmp.eq.s32.totalorder %s28, 3
      %p370 = por %p368, %p369
      %p371 = scmp.ne.s32.totalorder %s360, %s361
      %p372 = scmp.eq.s32.totalorder %s28, 0
      %p373 = por %p371, %p372
      %p374 = scmp.ne.s32.totalorder %s360, %s361
      %p375 = scmp.eq.s32.totalorder %s29, 3
      %p376 = por %p374, %p375
      %p378 = scmp.ne.s32.totalorder %s361, %s377
      %p379 = scmp.eq.s32.totalorder %s29, 0
      %p380 = por %p378, %p379
      %s382 = sadd.s32 %s381, 1
      %p385 = scmp.eq.s32.totalorder %s23, 3
      %p386 = scmp.ne.s32.totalorder %s381, %s383
      %p387 = scmp.eq.s32.totalorder %s23, 0
      %p388 = por %p386, %p387
      %p389 = scmp.ne.s32.totalorder %s381, %s383
      %p390 = scmp.eq.s32.totalorder %s28, 3
      %p391 = por %p389, %p390
      %p392 = scmp.ne.s32.totalorder %s383, %s384
      %p393 = scmp.eq.s32.totalorder %s28, 0
      %p394 = por %p392, %p393
      %p395 = scmp.ne.s32.totalorder %s383, %s384
      %p396 = scmp.eq.s32.totalorder %s29, 3
      %p397 = por %p395, %p396
      %p399 = scmp.ne.s32.totalorder %s384, %s398
      %p400 = scmp.eq.s32.totalorder %s29, 0
      %p401 = por %p399, %p400
      %s402 = ssub.s32 %s31, %s38
      %s403 = ssub.s32 %s30, %s42
      %s404 = sor.u32 %s402, %s403
      %p405 = scmp.eq.s32.totalorder %s404, 0
      %s407 = sadd.s32 %s406, 1
      %s408 = scalar_select %p405, %s406, %s407
      %p411 = pneg %p405
      %p412 = scmp.eq.s32.totalorder %s23, 3
      %p413 = por %p411, %p412
      %p414 = scmp.ne.s32.totalorder %s406, %s409
      %p415 = scmp.eq.s32.totalorder %s23, 0
      %p416 = por %p414, %p415
      %p417 = scmp.ne.s32.totalorder %s406, %s409
      %p418 = scmp.eq.s32.totalorder %s28, 3
      %p419 = por %p417, %p418
      %p420 = scmp.ne.s32.totalorder %s409, %s410
      %p421 = scmp.eq.s32.totalorder %s28, 0
      %p422 = por %p420, %p421
      %p423 = scmp.ne.s32.totalorder %s409, %s410
      %p424 = scmp.eq.s32.totalorder %s29, 3
      %p425 = por %p423, %p424
      %p427 = scmp.ne.s32.totalorder %s410, %s426
      %p428 = scmp.eq.s32.totalorder %s29, 0
      %p429 = por %p427, %p428
      %p430 = scmp.le.s32.totalorder 1, %s23
      %p431 = scmp.lt.s32.totalorder %s23, 5
      %p432 = pnand %p430, %p431
      %p433 = pneg %p432
      // Predicated region
      $region9: #{tpu_custom_call.1} parent=5 // pred_check
        _
      $region10: #{tpu_custom_call.1} parent=5 // pred_check_branch
        %435 = sbr.rel (%p432) target = $region12
      $region11: #{tpu_custom_call.1} parent=5 // pred_region
        %s436 = ssub.s32 %s23, 1
        // Predicated region
        $region13: #{tpu_custom_call.1} parent=11 // pred_check
          %p437 = pneg %p394
        $region14: #{tpu_custom_call.1} parent=11 // pred_check_branch
          %439 = sbr.rel (%p437) target = $region16
        $region15: #{tpu_custom_call.1} parent=11 // pred_region
          _
        $region16: #{tpu_custom_call.1} parent=11 // pred_fallthru
          _
      $region12: #{tpu_custom_call.1} parent=5 // pred_fallthru
        _
      %p440 = scmp.lt.s32.totalorder %s23, 4
      // Predicated region
      $region17: #{tpu_custom_call.1} parent=5 // pred_check
        %p441 = pneg %p440
      $region18: #{tpu_custom_call.1} parent=5 // pred_check_branch
        %443 = sbr.rel (%p441) target = $region20
      $region19: #{tpu_custom_call.1} parent=5 // pred_region
        // Predicated region
        $region21: #{tpu_custom_call.1} parent=19 // pred_check
          %p444 = pneg %p55
        $region22: #{tpu_custom_call.1} parent=19 // pred_check_branch
          %446 = sbr.rel (%p444) target = $region24
        $region23: #{tpu_custom_call.1} parent=19 // pred_region
          %p447 = scmp.lt.s32.totalorder %s30, 1
          %s448 = scalar_select %p447, %s30, 1
          %s449 = smul.addr %s448, 8
          %s450 = scalar_lea.vmem %s0, %s449
        $region24: #{tpu_custom_call.1} parent=19 // pred_fallthru
          _
        // Predicated region
        $region25: #{tpu_custom_call.1} parent=19 // pred_check
          %p451 = pneg %p81
        $region26: #{tpu_custom_call.1} parent=19 // pred_check_branch
          %453 = sbr.rel (%p451) target = $region28
        $region27: #{tpu_custom_call.1} parent=19 // pred_region
          %p454 = scmp.lt.s32.totalorder %s30, 1
          %s455 = scalar_select %p454, %s30, 1
          %s456 = smul.addr %s455, 8
          %s457 = scalar_lea.vmem %s1, %s456
        $region28: #{tpu_custom_call.1} parent=19 // pred_fallthru
          _
        // Predicated region
        $region29: #{tpu_custom_call.1} parent=19 // pred_check
          %p458 = pneg %p107
        $region30: #{tpu_custom_call.1} parent=19 // pred_check_branch
          %460 = sbr.rel (%p458) target = $region32
        $region31: #{tpu_custom_call.1} parent=19 // pred_region
          %s461 = smul.u32 2, %s30
          %p462 = scmp.lt.s32.totalorder %s461, 3
          %s463 = scalar_select %p462, %s461, 3
          %s464 = smul.addr %s463, 8
          %s465 = scalar_lea.vmem %s2, %s464
          %s466 = smul.u32 2, %s30
        $region32: #{tpu_custom_call.1} parent=19 // pred_fallthru
          _
        // Predicated region
        $region33: #{tpu_custom_call.1} parent=19 // pred_check
          %p467 = pneg %p133
        $region34: #{tpu_custom_call.1} parent=19 // pred_check_branch
          %469 = sbr.rel (%p467) target = $region36
        $region35: #{tpu_custom_call.1} parent=19 // pred_region
          %s470 = smul.u32 2, %s30
          %p471 = scmp.lt.s32.totalorder %s470, 3
          %s472 = scalar_select %p471, %s470, 3
          %s473 = smul.addr %s472, 8
          %s474 = scalar_lea.vmem %s3, %s473
          %s475 = smul.u32 2, %s30
        $region36: #{tpu_custom_call.1} parent=19 // pred_fallthru
          _
        // Predicated region
        $region37: #{tpu_custom_call.1} parent=19 // pred_check
          %p476 = pneg %p159
        $region38: #{tpu_custom_call.1} parent=19 // pred_check_branch
          %478 = sbr.rel (%p476) target = $region40
        $region39: #{tpu_custom_call.1} parent=19 // pred_region
          %p479 = scmp.lt.s32.totalorder %s30, 1
          %s480 = scalar_select %p479, %s30, 1
          %s481 = scalar_lea.vmem %s4, %s480
        $region40: #{tpu_custom_call.1} parent=19 // pred_fallthru
          _
        // Predicated region
        $region41: #{tpu_custom_call.1} parent=19 // pred_check
          %p482 = pneg %p185
        $region42: #{tpu_custom_call.1} parent=19 // pred_check_branch
          %484 = sbr.rel (%p482) target = $region44
        $region43: #{tpu_custom_call.1} parent=19 // pred_region
          %p485 = scmp.lt.s32.totalorder %s30, 1
          %s486 = scalar_select %p485, %s30, 1
          %s487 = smul.addr %s486, 8
          %s488 = scalar_lea.vmem %s5, %s487
        $region44: #{tpu_custom_call.1} parent=19 // pred_fallthru
          _
        // Predicated region
        $region45: #{tpu_custom_call.1} parent=19 // pred_check
          %p489 = pneg %p211
        $region46: #{tpu_custom_call.1} parent=19 // pred_check_branch
          %491 = sbr.rel (%p489) target = $region48
        $region47: #{tpu_custom_call.1} parent=19 // pred_region
          %s492 = sand.u32 %s201, 1
          %s493 = scalar_lea.sflag [#allocation5], %s492
          %s494 = sand.u32 %s201, 1
          %s495 = smul.addr %s494, 384
          %s496 = scalar_lea.vmem [#allocation4], %s495
          %s498 = ssub.s32 6144, 6144
          %499 = vsyncadd %s493, %s498
          %s500 = smul.addr %s31, 48
          %s501 = smul.addr %s500, 128
          %s502 = scalar_lea.hbm %s6, %s501
          %s503 = sshll.u32 %s496, 4
          %s504 = int_to_ptr.vmem [resolvable:$true] %s503
          %509 = dma.hbm_to_vmem [thread:$0]  %s502, 6144, %s504, %s493, 128, 128, 8
        $region48: #{tpu_custom_call.1} parent=19 // pred_fallthru
          _
        // Predicated region
        $region49: #{tpu_custom_call.1} parent=19 // pred_check
          %p510 = pneg %p237
        $region50: #{tpu_custom_call.1} parent=19 // pred_check_branch
          %512 = sbr.rel (%p510) target = $region52
        $region51: #{tpu_custom_call.1} parent=19 // pred_region
          %p513 = scmp.lt.s32.totalorder %s31, 1
          %s514 = scalar_select %p513, %s31, 1
          %s515 = smul.addr %s514, 3
          %s516 = smul.addr %s515, 8
          %s517 = scalar_lea.vmem %s7, %s516
        $region52: #{tpu_custom_call.1} parent=19 // pred_fallthru
          _
        // Predicated region
        $region53: #{tpu_custom_call.1} parent=19 // pred_check
          %p518 = pneg %p263
        $region54: #{tpu_custom_call.1} parent=19 // pred_check_branch
          %520 = sbr.rel (%p518) target = $region56
        $region55: #{tpu_custom_call.1} parent=19 // pred_region
          %p521 = scmp.lt.s32.totalorder %s31, 1
          %s522 = scalar_select %p521, %s31, 1
          %s523 = smul.addr %s522, 4
          %s524 = smul.addr %s523, 8
          %s525 = scalar_lea.vmem %s8, %s524
        $region56: #{tpu_custom_call.1} parent=19 // pred_fallthru
          _
        // Predicated region
        $region57: #{tpu_custom_call.1} parent=19 // pred_check
          %p526 = pneg %p289
        $region58: #{tpu_custom_call.1} parent=19 // pred_check_branch
          %528 = sbr.rel (%p526) target = $region60
        $region59: #{tpu_custom_call.1} parent=19 // pred_region
          %p529 = scmp.lt.s32.totalorder %s31, 1
          %s530 = scalar_select %p529, %s31, 1
          %s531 = scalar_lea.vmem %s9, %s530
        $region60: #{tpu_custom_call.1} parent=19 // pred_fallthru
          _
        // Predicated region
        $region61: #{tpu_custom_call.1} parent=19 // pred_check
          %p532 = pneg %p315
        $region62: #{tpu_custom_call.1} parent=19 // pred_check_branch
          %534 = sbr.rel (%p532) target = $region64
        $region63: #{tpu_custom_call.1} parent=19 // pred_region
          %p535 = scmp.lt.s32.totalorder %s31, 1
          %s536 = scalar_select %p535, %s31, 1
          %s537 = smul.addr %s536, 8
          %s538 = smul.addr %s537, 8
          %s539 = scalar_lea.vmem %s10, %s538
        $region64: #{tpu_custom_call.1} parent=19 // pred_fallthru
          _
        // Predicated region
        $region65: #{tpu_custom_call.1} parent=19 // pred_check
          %p540 = pneg %p341
        $region66: #{tpu_custom_call.1} parent=19 // pred_check_branch
          %542 = sbr.rel (%p540) target = $region68
        $region67: #{tpu_custom_call.1} parent=19 // pred_region
          %p543 = scmp.lt.s32.totalorder %s31, 1
          %s544 = scalar_select %p543, %s31, 1
          %s545 = smul.addr %s544, 12
          %s546 = smul.addr %s545, 8
          %s547 = scalar_lea.vmem %s11, %s546
        $region68: #{tpu_custom_call.1} parent=19 // pred_fallthru
          _
        // Predicated region
        $region69: #{tpu_custom_call.1} parent=19 // pred_check
          %p548 = pneg %p367
        $region70: #{tpu_custom_call.1} parent=19 // pred_check_branch
          %550 = sbr.rel (%p548) target = $region72
        $region71: #{tpu_custom_call.1} parent=19 // pred_region
          %p551 = scmp.lt.s32.totalorder %s31, 1
          %s552 = scalar_select %p551, %s31, 1
          %s553 = smul.addr %s552, 4
          %s554 = scalar_lea.vmem %s12, %s553
        $region72: #{tpu_custom_call.1} parent=19 // pred_fallthru
          _
      $region20: #{tpu_custom_call.1} parent=5 // pred_fallthru
        _
      %p555 = scmp.le.s32.totalorder 1, %s23
      %p556 = scmp.lt.s32.totalorder %s23, 5
      %p557 = pnand %p555, %p556
      %p558 = pneg %p557
      // Predicated region
      $region73: #{tpu_custom_call.1} parent=5 // pred_check
        _
      $region74: #{tpu_custom_call.1} parent=5 // pred_check_branch
        %560 = sbr.rel (%p557) target = $region76
      $region75: #{tpu_custom_call.1} parent=5 // pred_region
        %s561 = ssub.s32 %s23, 1
        %s562 = sand.u32 %s204, 1
        %s563 = scalar_lea.sflag [#allocation5], %s562
        %s564 = sand.u32 %s204, 1
        %s565 = smul.addr %s564, 384
        %s566 = scalar_lea.vmem [#allocation4], %s565
        // Predicated region
        $region77: #{tpu_custom_call.1} parent=75 // pred_check
          %p567 = pneg %p217
        $region78: #{tpu_custom_call.1} parent=75 // pred_check_branch
          %569 = sbr.rel (%p567) target = $region80
        $region79: #{tpu_custom_call.1} parent=75 // pred_region
          %570 = dma.done %s563, 6144
        $region80: #{tpu_custom_call.1} parent=75 // pred_fallthru
          _
        %p571 = scmp.lt.s32.totalorder %s32, 1
        %s572 = scalar_select %p571, %s32, 1
        %s573 = smul.addr %s572, 8
        %s574 = scalar_lea.vmem %s0, %s573
        %p575 = pneg %p61
        %p576 = pneg %p58
        %p577 = scmp.lt.s32.totalorder %s32, 1
        %s578 = scalar_select %p577, %s32, 1
        %s579 = smul.addr %s578, 8
        %s580 = scalar_lea.vmem %s1, %s579
        %p581 = pneg %p87
        %p582 = pneg %p84
        %s583 = smul.u32 2, %s32
        %p584 = scmp.lt.s32.totalorder %s583, 3
        %s585 = scalar_select %p584, %s583, 3
        %s586 = smul.addr %s585, 8
        %s587 = scalar_lea.vmem %s2, %s586
        %p588 = pneg %p113
        %p589 = pneg %p110
        %s590 = smul.u32 2, %s32
        %p591 = scmp.lt.s32.totalorder %s590, 3
        %s592 = scalar_select %p591, %s590, 3
        %s593 = smul.addr %s592, 8
        %s594 = scalar_lea.vmem %s3, %s593
        %p595 = pneg %p139
        %p596 = pneg %p136
        %p597 = scmp.lt.s32.totalorder %s32, 1
        %s598 = scalar_select %p597, %s32, 1
        %s599 = scalar_lea.vmem %s4, %s598
        %p600 = pneg %p165
        %p601 = pneg %p162
        %p602 = scmp.lt.s32.totalorder %s32, 1
        %s603 = scalar_select %p602, %s32, 1
        %s604 = smul.addr %s603, 8
        %s605 = scalar_lea.vmem %s5, %s604
        %p606 = pneg %p191
        %p607 = pneg %p188
        %s608 = sand.u32 %s204, 1
        %s609 = scalar_lea.sflag [#allocation5], %s608
        %s610 = sand.u32 %s204, 1
        %s611 = smul.addr %s610, 384
        %s612 = scalar_lea.vmem [#allocation4], %s611
        %p613 = pneg %p217
        %p614 = pneg %p214
        %p615 = scmp.lt.s32.totalorder %s33, 1
        %s616 = scalar_select %p615, %s33, 1
        %s617 = smul.addr %s616, 3
        %s618 = smul.addr %s617, 8
        %s619 = scalar_lea.vmem %s7, %s618
        %p620 = pneg %p243
        %p621 = pneg %p240
        %p622 = scmp.lt.s32.totalorder %s33, 1
        %s623 = scalar_select %p622, %s33, 1
        %s624 = smul.addr %s623, 4
        %s625 = smul.addr %s624, 8
        %s626 = scalar_lea.vmem %s8, %s625
        %p627 = pneg %p269
        %p628 = pneg %p266
        %p629 = scmp.lt.s32.totalorder %s33, 1
        %s630 = scalar_select %p629, %s33, 1
        %s631 = scalar_lea.vmem %s9, %s630
        %p632 = pneg %p295
        %p633 = pneg %p292
        %p634 = scmp.lt.s32.totalorder %s33, 1
        %s635 = scalar_select %p634, %s33, 1
        %s636 = smul.addr %s635, 8
        %s637 = smul.addr %s636, 8
        %s638 = scalar_lea.vmem %s10, %s637
        %p639 = pneg %p321
        %p640 = pneg %p318
        %p641 = scmp.lt.s32.totalorder %s33, 1
        %s642 = scalar_select %p641, %s33, 1
        %s643 = smul.addr %s642, 12
        %s644 = smul.addr %s643, 8
        %s645 = scalar_lea.vmem %s11, %s644
        %p646 = pneg %p347
        %p647 = pneg %p344
        %p648 = scmp.lt.s32.totalorder %s33, 1
        %s649 = scalar_select %p648, %s33, 1
        %s650 = smul.addr %s649, 4
        %s651 = scalar_lea.vmem %s12, %s650
        %p652 = pneg %p373
        %p653 = pneg %p370
        %p654 = pneg %p394
        %p655 = pneg %p391
        %p656 = pneg %p422
        %p657 = pneg %p419
        %s658 = sand.u32 %s409, 1
        %s659 = sand.u32 %s409, 1
        %s660 = smul.addr %s659, 24
        %s661 = scalar_lea.vmem [#allocation6], %s660
        %p662 = scmp.lt.s32.totalorder %s32, 1
        %s663 = scalar_select %p662, %s32, 1
        %s664 = smul.addr %s663, 8
        %s665 = scalar_lea.vmem %s0, %s664
        %p666 = scmp.lt.s32.totalorder %s32, 1
        %s667 = scalar_select %p666, %s32, 1
        %s668 = smul.addr %s667, 8
        %s669 = scalar_lea.vmem %s1, %s668
        %s670 = smul.u32 2, %s32
        %p671 = scmp.lt.s32.totalorder %s670, 3
        %s672 = scalar_select %p671, %s670, 3
        %s673 = smul.addr %s672, 8
        %s674 = scalar_lea.vmem %s2, %s673
        %s675 = smul.u32 2, %s32
        %s676 = smul.u32 2, %s32
        %p677 = scmp.lt.s32.totalorder %s676, 3
        %s678 = scalar_select %p677, %s676, 3
        %s679 = smul.addr %s678, 8
        %s680 = scalar_lea.vmem %s3, %s679
        %s681 = smul.u32 2, %s32
        %p682 = scmp.lt.s32.totalorder %s32, 1
        %s683 = scalar_select %p682, %s32, 1
        %s684 = scalar_lea.vmem %s4, %s683
        %p685 = scmp.lt.s32.totalorder %s32, 1
        %s686 = scalar_select %p685, %s32, 1
        %s687 = smul.addr %s686, 8
        %s688 = scalar_lea.vmem %s5, %s687
        %p689 = scmp.lt.s32.totalorder %s33, 1
        %s690 = scalar_select %p689, %s33, 1
        %s691 = smul.addr %s690, 3
        %s692 = smul.addr %s691, 8
        %s693 = scalar_lea.vmem %s7, %s692
        %p694 = scmp.lt.s32.totalorder %s33, 1
        %s695 = scalar_select %p694, %s33, 1
        %s696 = smul.addr %s695, 4
        %s697 = smul.addr %s696, 8
        %s698 = scalar_lea.vmem %s8, %s697
        %p699 = scmp.lt.s32.totalorder %s33, 1
        %s700 = scalar_select %p699, %s33, 1
        %s701 = scalar_lea.vmem %s9, %s700
        %p702 = scmp.lt.s32.totalorder %s33, 1
        %s703 = scalar_select %p702, %s33, 1
        %s704 = smul.addr %s703, 8
        %s705 = smul.addr %s704, 8
        %s706 = scalar_lea.vmem %s10, %s705
        %p707 = scmp.lt.s32.totalorder %s33, 1
        %s708 = scalar_select %p707, %s33, 1
        %s709 = smul.addr %s708, 12
        %s710 = smul.addr %s709, 8
        %s711 = scalar_lea.vmem %s11, %s710
        %p712 = scmp.lt.s32.totalorder %s33, 1
        %s713 = scalar_select %p712, %s33, 1
        %s714 = smul.addr %s713, 4
        %s715 = scalar_lea.vmem %s12, %s714
        %p716 = scmp.eq.s32.totalorder %s33, 0
        // Predicated region
        $region81: #{tpu_custom_call.1} parent=75 // pred_check
          %p717 = pneg %p716
        $region82: #{tpu_custom_call.1} parent=75 // pred_check_branch
          %719 = sbr.rel (%p717) target = $region84
        $region83: #{tpu_custom_call.1} parent=75 // pred_region
          %v720 = vld [vmem:[%s665] sm:$0xff]
          %vm721 = vcmask 261120
          %722 = vst.msk [vmem:[#allocation2] sm:$0xff] %vm721, %v720
          %v723 = vld [vmem:[%s688] sm:$0xff]
          %vm724 = vcmask 31744
          %725 = vst.msk [vmem:[#allocation3] sm:$0xff] %vm724, %v723
        $region84: #{tpu_custom_call.1} parent=75 // pred_fallthru
          _
        %v726 = vld [vmem:[#allocation2] sm:$0xff]
        %v727 = vld [vmem:[%s669] sm:$0xff]
        %v728 = vld [vmem:[%s674] sm:$0xff]
        %v729 = vld [vmem:[%s674 + $0x8] sm:$0xff]
        %v730 = vld [vmem:[%s680] sm:$0xff]
        %v731 = vld [vmem:[%s680 + $0x8] sm:$0xff]
        %v732 = vld [vmem:[%s693] sm:$0xff]
        %v733 = vld [vmem:[%s693 + $0x8] sm:$0xff]
        %v734 = vld [vmem:[%s693 + $0x10] sm:$0x7]
        %v735 = vadd.f32 %v726, %v727
        %v736 = vld [vmem:[%s566] sm:$0xff]
        %v737 = vld [vmem:[%s566 + $0x8] sm:$0xff]
        %v738 = vld [vmem:[%s566 + $0x10] sm:$0xff]
        %v739 = vld [vmem:[%s566 + $0x18] sm:$0xff]
        %v740 = vlaneseq
        %v741 = vshrl.u32 %v740, 7
        %v742 = vsub.s32 0, %v741
        %v743 = vrot.slane %v732, %v742
        %vm744 = vcmask 261120
        %v746 = vsel %vm744, %v735, 0
        %748 = vmatprep.subr.mxu0 0.0
        %749 = vmatpush1.msra.mxu0 0.0
        %750 = vmatprep.subr.mxu0 0.0
        %751 = vmatpush1.msra.mxu0 0.0
        %752 = vmatprep.subr.mxu0 0.0
        %753 = vmatpush1.msra.mxu0 0.0
        %754 = vmatprep.subr.mxu0 0.0
        %755 = vmatpush1.msra.mxu0 0.0
        %756 = vmatprep.subr.mxu0 0.0
        %757 = vmatpush1.msra.mxu0 0.0
        %758 = vmatprep.subr.mxu0 0.0
        %759 = vmatpush1.msra.mxu0 0.0
        %760 = vmatprep.subr.mxu0 0.0
        %761 = vmatpush1.msra.mxu0 0.0
        %762 = vmatprep.subr.mxu0 0.0
        %763 = vmatpush1.msra.mxu0 0.0
        %764 = vmatprep.subr.mxu0 0.0
        %765 = vmatpush1.msra.mxu0 0.0
        %766 = vmatprep.subr.mxu0 0.0
        %767 = vmatpush1.msra.mxu0 0.0
        %768 = vmatprep.subr.mxu0 0.0
        %769 = vmatpush1.msra.mxu0 0.0
        %770 = vmatprep.subr.mxu0 0.0
        %771 = vmatpush1.msra.mxu0 0.0
        %772 = vmatprep.subr.mxu0 0.0
        %773 = vmatpush1.msra.mxu0 %v739
        %774 = vmatprep.subr.mxu0 0.0
        %775 = vmatpush1.msra.mxu0 %v738
        %776 = vmatprep.subr.mxu0 0.0
        %777 = vmatpush1.msra.mxu0 %v737
        %778 = vmatprep.subr.mxu0 0.0
        %779 = vmatpush1.msra.mxu0 %v736
        %780 = vmatprep.subr.mxu0 0.0
        %781 = vmatpush2.msra.mxu0 0.0
        %782 = vmatprep.subr.mxu0 0.0
        %783 = vmatpush2.msra.mxu0 0.0
        %784 = vmatprep.subr.mxu0 0.0
        %785 = vmatpush2.msra.mxu0 0.0
        %786 = vmatprep.subr.mxu0 0.0
        %787 = vmatpush2.msra.mxu0 0.0
        %788 = vmatprep.subr.mxu0 0.0
        %789 = vmatpush2.msra.mxu0 0.0
        %790 = vmatprep.subr.mxu0 0.0
        %791 = vmatpush2.msra.mxu0 0.0
        %792 = vmatprep.subr.mxu0 0.0
        %793 = vmatpush2.msra.mxu0 0.0
        %794 = vmatprep.subr.mxu0 0.0
        %795 = vmatpush2.msra.mxu0 0.0
        %796 = vmatprep.subr.mxu0 0.0
        %797 = vmatpush2.msra.mxu0 0.0
        %798 = vmatprep.subr.mxu0 0.0
        %799 = vmatpush2.msra.mxu0 0.0
        %800 = vmatprep.subr.mxu0 0.0
        %801 = vmatpush2.msra.mxu0 0.0
        %802 = vmatprep.subr.mxu0 0.0
        %803 = vmatpush2.msra.mxu0 0.0
        %804 = vmatprep.subr.mxu0 0.0
        %805 = vmatpush2.msra.mxu0 0.0
        %806 = vmatprep.subr.mxu0 0.0
        %807 = vmatpush2.msra.mxu0 0.0
        %808 = vmatprep.subr.mxu0 0.0
        %809 = vmatpush2.msra.mxu0 0.0
        %810 = vmatprep.subr.mxu0 0.0
        %811 = vmatpush2.msra.mxu0 0.0
        %812 = vmatprep.mubr.f32.mxu0 0.0
        %813 = vmatmul.mubr.f32.gmra.mxu0 %v746
        %v814 = vpop.f32.mrf.mxu0
        %v815 = vadd.f32 %v743, %v814
        %v816 = vpop.f32.mrf.mxu0
        %817 = vdwg.mxu0
        %s818 = scalar_lea.vmem %s566, 32 [#allocation4]
        %v819 = vld [vmem:[%s818] sm:$0xff]
        %v820 = vld [vmem:[%s818 + $0x8] sm:$0xff]
        %v821 = vld [vmem:[%s818 + $0x10] sm:$0xff]
        %v822 = vld [vmem:[%s818 + $0x18] sm:$0xff]
        %v823 = vlaneseq
        %v824 = vshrl.u32 %v823, 7
        %v825 = vsub.s32 1, %v824
        %v826 = vrot.slane %v732, %v825
        %827 = vmatprep.subr.mxu0 0.0
        %828 = vmatpush1.msra.mxu0 0.0
        %829 = vmatprep.subr.mxu0 0.0
        %830 = vmatpush1.msra.mxu0 0.0
        %831 = vmatprep.subr.mxu0 0.0
        %832 = vmatpush1.msra.mxu0 0.0
        %833 = vmatprep.subr.mxu0 0.0
        %834 = vmatpush1.msra.mxu0 0.0
        %835 = vmatprep.subr.mxu0 0.0
        %836 = vmatpush1.msra.mxu0 0.0
        %837 = vmatprep.subr.mxu0 0.0
        %838 = vmatpush1.msra.mxu0 0.0
        %839 = vmatprep.subr.mxu0 0.0
        %840 = vmatpush1.msra.mxu0 0.0
        %841 = vmatprep.subr.mxu0 0.0
        %842 = vmatpush1.msra.mxu0 0.0
        %843 = vmatprep.subr.mxu0 0.0
        %844 = vmatpush1.msra.mxu0 0.0
        %845 = vmatprep.subr.mxu0 0.0
        %846 = vmatpush1.msra.mxu0 0.0
        %847 = vmatprep.subr.mxu0 0.0
        %848 = vmatpush1.msra.mxu0 0.0
        %849 = vmatprep.subr.mxu0 0.0
        %850 = vmatpush1.msra.mxu0 0.0
        %851 = vmatprep.subr.mxu0 0.0
        %852 = vmatpush1.msra.mxu0 %v822
        %853 = vmatprep.subr.mxu0 0.0
        %854 = vmatpush1.msra.mxu0 %v821
        %855 = vmatprep.subr.mxu0 0.0
        %856 = vmatpush1.msra.mxu0 %v820
        %857 = vmatprep.subr.mxu0 0.0
        %858 = vmatpush1.msra.mxu0 %v819
        %859 = vmatprep.subr.mxu0 0.0
        %860 = vmatpush2.msra.mxu0 0.0
        %861 = vmatprep.subr.mxu0 0.0
        %862 = vmatpush2.msra.mxu0 0.0
        %863 = vmatprep.subr.mxu0 0.0
        %864 = vmatpush2.msra.mxu0 0.0
        %865 = vmatprep.subr.mxu0 0.0
        %866 = vmatpush2.msra.mxu0 0.0
        %867 = vmatprep.subr.mxu0 0.0
        %868 = vmatpush2.msra.mxu0 0.0
        %869 = vmatprep.subr.mxu0 0.0
        %870 = vmatpush2.msra.mxu0 0.0
        %871 = vmatprep.subr.mxu0 0.0
        %872 = vmatpush2.msra.mxu0 0.0
        %873 = vmatprep.subr.mxu0 0.0
        %874 = vmatpush2.msra.mxu0 0.0
        %875 = vmatprep.subr.mxu0 0.0
        %876 = vmatpush2.msra.mxu0 0.0
        %877 = vmatprep.subr.mxu0 0.0
        %878 = vmatpush2.msra.mxu0 0.0
        %879 = vmatprep.subr.mxu0 0.0
        %880 = vmatpush2.msra.mxu0 0.0
        %881 = vmatprep.subr.mxu0 0.0
        %882 = vmatpush2.msra.mxu0 0.0
        %883 = vmatprep.subr.mxu0 0.0
        %884 = vmatpush2.msra.mxu0 0.0
        %885 = vmatprep.subr.mxu0 0.0
        %886 = vmatpush2.msra.mxu0 0.0
        %887 = vmatprep.subr.mxu0 0.0
        %888 = vmatpush2.msra.mxu0 0.0
        %889 = vmatprep.subr.mxu0 0.0
        %890 = vmatpush2.msra.mxu0 0.0
        %891 = vmatprep.mubr.f32.mxu0 0.0
        %892 = vmatmul.mubr.f32.gmra.mxu0 %v746
        %v893 = vpop.f32.mrf.mxu0
        %v894 = vadd.f32 %v826, %v893
        %v895 = vpop.f32.mrf.mxu0
        %896 = vdwg.mxu0
        %s897 = scalar_lea.vmem %s566, 64 [#allocation4]
        %v898 = vld [vmem:[%s897] sm:$0xff]
        %v899 = vld [vmem:[%s897 + $0x8] sm:$0xff]
        %v900 = vld [vmem:[%s897 + $0x10] sm:$0xff]
        %v901 = vld [vmem:[%s897 + $0x18] sm:$0xff]
        %v902 = vlaneseq
        %v903 = vshrl.u32 %v902, 7
        %v904 = vsub.s32 2, %v903
        %v905 = vrot.slane %v732, %v904
        %v907 = vsel %vm744, %v726, 0
        %909 = vmatprep.subr.mxu0 0.0
        %910 = vmatpush1.msra.mxu0 0.0
        %911 = vmatprep.subr.mxu0 0.0
        %912 = vmatpush1.msra.mxu0 0.0
        %913 = vmatprep.subr.mxu0 0.0
        %914 = vmatpush1.msra.mxu0 0.0
        %915 = vmatprep.subr.mxu0 0.0
        %916 = vmatpush1.msra.mxu0 0.0
        %917 = vmatprep.subr.mxu0 0.0
        %918 = vmatpush1.msra.mxu0 0.0
        %919 = vmatprep.subr.mxu0 0.0
        %920 = vmatpush1.msra.mxu0 0.0
        %921 = vmatprep.subr.mxu0 0.0
        %922 = vmatpush1.msra.mxu0 0.0
        %923 = vmatprep.subr.mxu0 0.0
        %924 = vmatpush1.msra.mxu0 0.0
        %925 = vmatprep.subr.mxu0 0.0
        %926 = vmatpush1.msra.mxu0 0.0
        %927 = vmatprep.subr.mxu0 0.0
        %928 = vmatpush1.msra.mxu0 0.0
        %929 = vmatprep.subr.mxu0 0.0
        %930 = vmatpush1.msra.mxu0 0.0
        %931 = vmatprep.subr.mxu0 0.0
        %932 = vmatpush1.msra.mxu0 0.0
        %933 = vmatprep.subr.mxu0 0.0
        %934 = vmatpush1.msra.mxu0 %v901
        %935 = vmatprep.subr.mxu0 0.0
        %936 = vmatpush1.msra.mxu0 %v900
        %937 = vmatprep.subr.mxu0 0.0
        %938 = vmatpush1.msra.mxu0 %v899
        %939 = vmatprep.subr.mxu0 0.0
        %940 = vmatpush1.msra.mxu0 %v898
        %941 = vmatprep.subr.mxu0 0.0
        %942 = vmatpush2.msra.mxu0 0.0
        %943 = vmatprep.subr.mxu0 0.0
        %944 = vmatpush2.msra.mxu0 0.0
        %945 = vmatprep.subr.mxu0 0.0
        %946 = vmatpush2.msra.mxu0 0.0
        %947 = vmatprep.subr.mxu0 0.0
        %948 = vmatpush2.msra.mxu0 0.0
        %949 = vmatprep.subr.mxu0 0.0
        %950 = vmatpush2.msra.mxu0 0.0
        %951 = vmatprep.subr.mxu0 0.0
        %952 = vmatpush2.msra.mxu0 0.0
        %953 = vmatprep.subr.mxu0 0.0
        %954 = vmatpush2.msra.mxu0 0.0
        %955 = vmatprep.subr.mxu0 0.0
        %956 = vmatpush2.msra.mxu0 0.0
        %957 = vmatprep.subr.mxu0 0.0
        %958 = vmatpush2.msra.mxu0 0.0
        %959 = vmatprep.subr.mxu0 0.0
        %960 = vmatpush2.msra.mxu0 0.0
        %961 = vmatprep.subr.mxu0 0.0
        %962 = vmatpush2.msra.mxu0 0.0
        %963 = vmatprep.subr.mxu0 0.0
        %964 = vmatpush2.msra.mxu0 0.0
        %965 = vmatprep.subr.mxu0 0.0
        %966 = vmatpush2.msra.mxu0 0.0
        %967 = vmatprep.subr.mxu0 0.0
        %968 = vmatpush2.msra.mxu0 0.0
        %969 = vmatprep.subr.mxu0 0.0
        %970 = vmatpush2.msra.mxu0 0.0
        %971 = vmatprep.subr.mxu0 0.0
        %972 = vmatpush2.msra.mxu0 0.0
        %973 = vmatprep.mubr.f32.mxu0 0.0
        %974 = vmatmul.mubr.f32.gmra.mxu0 %v907
        %v975 = vpop.f32.mrf.mxu0
        %v976 = vadd.f32 %v905, %v975
        %v977 = vpop.f32.mrf.mxu0
        %978 = vdwg.mxu0
        %s979 = scalar_lea.vmem %s566, 96 [#allocation4]
        %v980 = vld [vmem:[%s979] sm:$0xff]
        %v981 = vld [vmem:[%s979 + $0x8] sm:$0xff]
        %v982 = vld [vmem:[%s979 + $0x10] sm:$0xff]
        %v983 = vld [vmem:[%s979 + $0x18] sm:$0xff]
        %vm984 = vcmask 64512
        %v986 = vsel %vm984, %v815, 0
        %v989 = vsel %vm984, %v894, 0
        %991 = vmatprep.subr.mxu0 0.0
        %992 = vmatpush1.xpose.msra.mxu0 0.0
        %993 = vmatprep.subr.mxu0 0.0
        %994 = vmatpush1.xpose.msra.mxu0 0.0
        %995 = vmatprep.subr.mxu0 0.0
        %996 = vmatpush1.xpose.msra.mxu0 0.0
        %997 = vmatprep.subr.mxu0 0.0
        %998 = vmatpush1.xpose.msra.mxu0 0.0
        %999 = vmatprep.subr.mxu0 0.0
        %1000 = vmatpush1.xpose.msra.mxu0 0.0
        %1001 = vmatprep.subr.mxu0 0.0
        %1002 = vmatpush1.xpose.msra.mxu0 0.0
        %1003 = vmatprep.subr.mxu0 0.0
        %1004 = vmatpush1.xpose.msra.mxu0 0.0
        %1005 = vmatprep.subr.mxu0 0.0
        %1006 = vmatpush1.xpose.msra.mxu0 0.0
        %1007 = vmatprep.subr.mxu0 0.0
        %1008 = vmatpush1.xpose.msra.mxu0 0.0
        %1009 = vmatprep.subr.mxu0 0.0
        %1010 = vmatpush1.xpose.msra.mxu0 0.0
        %1011 = vmatprep.subr.mxu0 0.0
        %1012 = vmatpush1.xpose.msra.mxu0 0.0
        %1013 = vmatprep.subr.mxu0 0.0
        %1014 = vmatpush1.xpose.msra.mxu0 0.0
        %1015 = vmatprep.subr.mxu0 0.0
        %1016 = vmatpush1.xpose.msra.mxu0 0.0
        %1017 = vmatprep.subr.mxu0 0.0
        %1018 = vmatpush1.xpose.msra.mxu0 0.0
        %1019 = vmatprep.subr.mxu0 0.0
        %1020 = vmatpush1.xpose.msra.mxu0 0.0
        %1021 = vmatprep.subr.mxu0 0.0
        %1022 = vmatpush1.xpose.msra.mxu0 %v989
        %1023 = vmatprep.subr.mxu0 0.0
        %1024 = vmatpush2.xpose.msra.mxu0 0.0
        %1025 = vmatprep.subr.mxu0 0.0
        %1026 = vmatpush2.xpose.msra.mxu0 0.0
        %1027 = vmatprep.subr.mxu0 0.0
        %1028 = vmatpush2.xpose.msra.mxu0 0.0
        %1029 = vmatprep.subr.mxu0 0.0
        %1030 = vmatpush2.xpose.msra.mxu0 0.0
        %1031 = vmatprep.subr.mxu0 0.0
        %1032 = vmatpush2.xpose.msra.mxu0 0.0
        %1033 = vmatprep.subr.mxu0 0.0
        %1034 = vmatpush2.xpose.msra.mxu0 0.0
        %1035 = vmatprep.subr.mxu0 0.0
        %1036 = vmatpush2.xpose.msra.mxu0 0.0
        %1037 = vmatprep.subr.mxu0 0.0
        %1038 = vmatpush2.xpose.msra.mxu0 0.0
        %1039 = vmatprep.subr.mxu0 0.0
        %1040 = vmatpush2.xpose.msra.mxu0 0.0
        %1041 = vmatprep.subr.mxu0 0.0
        %1042 = vmatpush2.xpose.msra.mxu0 0.0
        %1043 = vmatprep.subr.mxu0 0.0
        %1044 = vmatpush2.xpose.msra.mxu0 0.0
        %1045 = vmatprep.subr.mxu0 0.0
        %1046 = vmatpush2.xpose.msra.mxu0 0.0
        %1047 = vmatprep.subr.mxu0 0.0
        %1048 = vmatpush2.xpose.msra.mxu0 0.0
        %1049 = vmatprep.subr.mxu0 0.0
        %1050 = vmatpush2.xpose.msra.mxu0 0.0
        %1051 = vmatprep.subr.mxu0 0.0
        %1052 = vmatpush2.xpose.msra.mxu0 0.0
        %1053 = vmatprep.subr.mxu0 0.0
        %1054 = vmatpush2.xpose.msra.mxu0 0.0
        %1055 = vmatprep.mubr.f32.mxu0 0.0
        %1056 = vmatmul.mubr.f32.gmra.mxu0 %v986
        %v1057 = vpop.f32.mrf.mxu0
        %v1058 = vadd.f32 0.0, %v1057
        %v1059 = vpop.f32.mrf.mxu0
        %1060 = vdwg.mxu0
        %v1061 = vmul.f32 %v1058, 0.35355338
        %v1062 = vsel %vm984, %v1061, -inf
        %1063 = vmax.xlane.f32.xlu0 %v1062
        %v1064 = vpop.xlane.xlu0 %1063
        %v1065 = vsub.f32 %v1061, %v1064
        %v1066 = vmul.f32 %v1065, 1.442695
        %v1067 = vpow.pop %v1066
        %v1068 = vsel %vm984, %v1067, 0.0
        %1069 = vadd.xlane.f32.xlu0 %v1068
        %v1070 = vpop.xlane.xlu0 %1069
        %v1071 = vrcp.pop %v1070
        %v1072 = vmul.f32 %v1067, %v1071
        %v1074 = vsel %vm984, %v1072, 0
        %1076 = vmatprep.subr.mxu0 0.0
        %1077 = vmatpush1.msra.mxu0 0.0
        %1078 = vmatprep.subr.mxu0 0.0
        %1079 = vmatpush1.msra.mxu0 0.0
        %1080 = vmatprep.subr.mxu0 0.0
        %1081 = vmatpush1.msra.mxu0 0.0
        %1082 = vmatprep.subr.mxu0 0.0
        %1083 = vmatpush1.msra.mxu0 0.0
        %1084 = vmatprep.subr.mxu0 0.0
        %1085 = vmatpush1.msra.mxu0 0.0
        %1086 = vmatprep.subr.mxu0 0.0
        %1087 = vmatpush1.msra.mxu0 0.0
        %1088 = vmatprep.subr.mxu0 0.0
        %1089 = vmatpush1.msra.mxu0 0.0
        %1090 = vmatprep.subr.mxu0 0.0
        %1091 = vmatpush1.msra.mxu0 0.0
        %1092 = vmatprep.subr.mxu0 0.0
        %1093 = vmatpush1.msra.mxu0 0.0
        %1094 = vmatprep.subr.mxu0 0.0
        %1095 = vmatpush1.msra.mxu0 0.0
        %1096 = vmatprep.subr.mxu0 0.0
        %1097 = vmatpush1.msra.mxu0 0.0
        %1098 = vmatprep.subr.mxu0 0.0
        %1099 = vmatpush1.msra.mxu0 0.0
        %1100 = vmatprep.subr.mxu0 0.0
        %1101 = vmatpush1.msra.mxu0 0.0
        %1102 = vmatprep.subr.mxu0 0.0
        %1103 = vmatpush1.msra.mxu0 0.0
        %1104 = vmatprep.subr.mxu0 0.0
        %1105 = vmatpush1.msra.mxu0 0.0
        %1106 = vmatprep.subr.mxu0 0.0
        %1107 = vmatpush1.msra.mxu0 %v976
        %1108 = vmatprep.subr.mxu0 0.0
        %1109 = vmatpush2.msra.mxu0 0.0
        %1110 = vmatprep.subr.mxu0 0.0
        %1111 = vmatpush2.msra.mxu0 0.0
        %1112 = vmatprep.subr.mxu0 0.0
        %1113 = vmatpush2.msra.mxu0 0.0
        %1114 = vmatprep.subr.mxu0 0.0
        %1115 = vmatpush2.msra.mxu0 0.0
        %1116 = vmatprep.subr.mxu0 0.0
        %1117 = vmatpush2.msra.mxu0 0.0
        %1118 = vmatprep.subr.mxu0 0.0
        %1119 = vmatpush2.msra.mxu0 0.0
        %1120 = vmatprep.subr.mxu0 0.0
        %1121 = vmatpush2.msra.mxu0 0.0
        %1122 = vmatprep.subr.mxu0 0.0
        %1123 = vmatpush2.msra.mxu0 0.0
        %1124 = vmatprep.subr.mxu0 0.0
        %1125 = vmatpush2.msra.mxu0 0.0
        %1126 = vmatprep.subr.mxu0 0.0
        %1127 = vmatpush2.msra.mxu0 0.0
        %1128 = vmatprep.subr.mxu0 0.0
        %1129 = vmatpush2.msra.mxu0 0.0
        %1130 = vmatprep.subr.mxu0 0.0
        %1131 = vmatpush2.msra.mxu0 0.0
        %1132 = vmatprep.subr.mxu0 0.0
        %1133 = vmatpush2.msra.mxu0 0.0
        %1134 = vmatprep.subr.mxu0 0.0
        %1135 = vmatpush2.msra.mxu0 0.0
        %1136 = vmatprep.subr.mxu0 0.0
        %1137 = vmatpush2.msra.mxu0 0.0
        %1138 = vmatprep.subr.mxu0 0.0
        %1139 = vmatpush2.msra.mxu0 0.0
        %1140 = vmatprep.mubr.f32.mxu0 0.0
        %1141 = vmatmul.mubr.f32.gmra.mxu0 %v1074
        %v1142 = vpop.f32.mrf.mxu0
        %v1143 = vadd.f32 0.0, %v1142
        %v1144 = vpop.f32.mrf.mxu0
        %1145 = vdwg.mxu0
        %1146 = vrot.lane.b32.xlu0 %v815, 120
        %v1147 = vpop.permute.xlu0 %1146
        %1148 = vrot.lane.b32.xlu0 %v894, 120
        %v1149 = vpop.permute.xlu0 %1148
        %v1150 = vsel %vm984, %v1147, 0
        %v1152 = vsel %vm984, %v1149, 0
        %1154 = vmatprep.subr.mxu0 0.0
        %1155 = vmatpush1.xpose.msra.mxu0 0.0
        %1156 = vmatprep.subr.mxu0 0.0
        %1157 = vmatpush1.xpose.msra.mxu0 0.0
        %1158 = vmatprep.subr.mxu0 0.0
        %1159 = vmatpush1.xpose.msra.mxu0 0.0
        %1160 = vmatprep.subr.mxu0 0.0
        %1161 = vmatpush1.xpose.msra.mxu0 0.0
        %1162 = vmatprep.subr.mxu0 0.0
        %1163 = vmatpush1.xpose.msra.mxu0 0.0
        %1164 = vmatprep.subr.mxu0 0.0
        %1165 = vmatpush1.xpose.msra.mxu0 0.0
        %1166 = vmatprep.subr.mxu0 0.0
        %1167 = vmatpush1.xpose.msra.mxu0 0.0
        %1168 = vmatprep.subr.mxu0 0.0
        %1169 = vmatpush1.xpose.msra.mxu0 0.0
        %1170 = vmatprep.subr.mxu0 0.0
        %1171 = vmatpush1.xpose.msra.mxu0 0.0
        %1172 = vmatprep.subr.mxu0 0.0
        %1173 = vmatpush1.xpose.msra.mxu0 0.0
        %1174 = vmatprep.subr.mxu0 0.0
        %1175 = vmatpush1.xpose.msra.mxu0 0.0
        %1176 = vmatprep.subr.mxu0 0.0
        %1177 = vmatpush1.xpose.msra.mxu0 0.0
        %1178 = vmatprep.subr.mxu0 0.0
        %1179 = vmatpush1.xpose.msra.mxu0 0.0
        %1180 = vmatprep.subr.mxu0 0.0
        %1181 = vmatpush1.xpose.msra.mxu0 0.0
        %1182 = vmatprep.subr.mxu0 0.0
        %1183 = vmatpush1.xpose.msra.mxu0 0.0
        %1184 = vmatprep.subr.mxu0 0.0
        %1185 = vmatpush1.xpose.msra.mxu0 %v1152
        %1186 = vmatprep.subr.mxu0 0.0
        %1187 = vmatpush2.xpose.msra.mxu0 0.0
        %1188 = vmatprep.subr.mxu0 0.0
        %1189 = vmatpush2.xpose.msra.mxu0 0.0
        %1190 = vmatprep.subr.mxu0 0.0
        %1191 = vmatpush2.xpose.msra.mxu0 0.0
        %1192 = vmatprep.subr.mxu0 0.0
        %1193 = vmatpush2.xpose.msra.mxu0 0.0
        %1194 = vmatprep.subr.mxu0 0.0
        %1195 = vmatpush2.xpose.msra.mxu0 0.0
        %1196 = vmatprep.subr.mxu0 0.0
        %1197 = vmatpush2.xpose.msra.mxu0 0.0
        %1198 = vmatprep.subr.mxu0 0.0
        %1199 = vmatpush2.xpose.msra.mxu0 0.0
        %1200 = vmatprep.subr.mxu0 0.0
        %1201 = vmatpush2.xpose.msra.mxu0 0.0
        %1202 = vmatprep.subr.mxu0 0.0
        %1203 = vmatpush2.xpose.msra.mxu0 0.0
        %1204 = vmatprep.subr.mxu0 0.0
        %1205 = vmatpush2.xpose.msra.mxu0 0.0
        %1206 = vmatprep.subr.mxu0 0.0
        %1207 = vmatpush2.xpose.msra.mxu0 0.0
        %1208 = vmatprep.subr.mxu0 0.0
        %1209 = vmatpush2.xpose.msra.mxu0 0.0
        %1210 = vmatprep.subr.mxu0 0.0
        %1211 = vmatpush2.xpose.msra.mxu0 0.0
        %1212 = vmatprep.subr.mxu0 0.0
        %1213 = vmatpush2.xpose.msra.mxu0 0.0
        %1214 = vmatprep.subr.mxu0 0.0
        %1215 = vmatpush2.xpose.msra.mxu0 0.0
        %1216 = vmatprep.subr.mxu0 0.0
        %1217 = vmatpush2.xpose.msra.mxu0 0.0
        %1218 = vmatprep.mubr.f32.mxu0 0.0
        %1219 = vmatmul.mubr.f32.gmra.mxu0 %v1150
        %v1220 = vpop.f32.mrf.mxu0
        %v1221 = vadd.f32 0.0, %v1220
        %v1222 = vpop.f32.mrf.mxu0
        %1223 = vdwg.mxu0
        %v1224 = vmul.f32 %v1221, 0.35355338
        %v1225 = vsel %vm984, %v1224, -inf
        %1226 = vmax.xlane.f32.xlu0 %v1225
        %v1227 = vpop.xlane.xlu0 %1226
        %v1228 = vsub.f32 %v1224, %v1227
        %v1229 = vmul.f32 %v1228, 1.442695
        %v1230 = vpow.pop %v1229
        %v1231 = vsel %vm984, %v1230, 0.0
        %1232 = vadd.xlane.f32.xlu0 %v1231
        %v1233 = vpop.xlane.xlu0 %1232
        %v1234 = vrcp.pop %v1233
        %v1235 = vmul.f32 %v1230, %v1234
        %1237 = vrot.lane.b32.xlu0 %v976, 120
        %v1238 = vpop.permute.xlu0 %1237
        %v1241 = vsel %vm984, %v1235, 0
        %1243 = vmatprep.subr.mxu0 0.0
        %1244 = vmatpush1.msra.mxu0 0.0
        %1245 = vmatprep.subr.mxu0 0.0
        %1246 = vmatpush1.msra.mxu0 0.0
        %1247 = vmatprep.subr.mxu0 0.0
        %1248 = vmatpush1.msra.mxu0 0.0
        %1249 = vmatprep.subr.mxu0 0.0
        %1250 = vmatpush1.msra.mxu0 0.0
        %1251 = vmatprep.subr.mxu0 0.0
        %1252 = vmatpush1.msra.mxu0 0.0
        %1253 = vmatprep.subr.mxu0 0.0
        %1254 = vmatpush1.msra.mxu0 0.0
        %1255 = vmatprep.subr.mxu0 0.0
        %1256 = vmatpush1.msra.mxu0 0.0
        %1257 = vmatprep.subr.mxu0 0.0
        %1258 = vmatpush1.msra.mxu0 0.0
        %1259 = vmatprep.subr.mxu0 0.0
        %1260 = vmatpush1.msra.mxu0 0.0
        %1261 = vmatprep.subr.mxu0 0.0
        %1262 = vmatpush1.msra.mxu0 0.0
        %1263 = vmatprep.subr.mxu0 0.0
        %1264 = vmatpush1.msra.mxu0 0.0
        %1265 = vmatprep.subr.mxu0 0.0
        %1266 = vmatpush1.msra.mxu0 0.0
        %1267 = vmatprep.subr.mxu0 0.0
        %1268 = vmatpush1.msra.mxu0 0.0
        %1269 = vmatprep.subr.mxu0 0.0
        %1270 = vmatpush1.msra.mxu0 0.0
        %1271 = vmatprep.subr.mxu0 0.0
        %1272 = vmatpush1.msra.mxu0 0.0
        %1273 = vmatprep.subr.mxu0 0.0
        %1274 = vmatpush1.msra.mxu0 %v1238
        %1275 = vmatprep.subr.mxu0 0.0
        %1276 = vmatpush2.msra.mxu0 0.0
        %1277 = vmatprep.subr.mxu0 0.0
        %1278 = vmatpush2.msra.mxu0 0.0
        %1279 = vmatprep.subr.mxu0 0.0
        %1280 = vmatpush2.msra.mxu0 0.0
        %1281 = vmatprep.subr.mxu0 0.0
        %1282 = vmatpush2.msra.mxu0 0.0
        %1283 = vmatprep.subr.mxu0 0.0
        %1284 = vmatpush2.msra.mxu0 0.0
        %1285 = vmatprep.subr.mxu0 0.0
        %1286 = vmatpush2.msra.mxu0 0.0
        %1287 = vmatprep.subr.mxu0 0.0
        %1288 = vmatpush2.msra.mxu0 0.0
        %1289 = vmatprep.subr.mxu0 0.0
        %1290 = vmatpush2.msra.mxu0 0.0
        %1291 = vmatprep.subr.mxu0 0.0
        %1292 = vmatpush2.msra.mxu0 0.0
        %1293 = vmatprep.subr.mxu0 0.0
        %1294 = vmatpush2.msra.mxu0 0.0
        %1295 = vmatprep.subr.mxu0 0.0
        %1296 = vmatpush2.msra.mxu0 0.0
        %1297 = vmatprep.subr.mxu0 0.0
        %1298 = vmatpush2.msra.mxu0 0.0
        %1299 = vmatprep.subr.mxu0 0.0
        %1300 = vmatpush2.msra.mxu0 0.0
        %1301 = vmatprep.subr.mxu0 0.0
        %1302 = vmatpush2.msra.mxu0 0.0
        %1303 = vmatprep.subr.mxu0 0.0
        %1304 = vmatpush2.msra.mxu0 0.0
        %1305 = vmatprep.subr.mxu0 0.0
        %1306 = vmatpush2.msra.mxu0 0.0
        %1307 = vmatprep.mubr.f32.mxu0 0.0
        %1308 = vmatmul.mubr.f32.gmra.mxu0 %v1241
        %v1309 = vpop.f32.mrf.mxu0
        %v1310 = vadd.f32 0.0, %v1309
        %v1311 = vpop.f32.mrf.mxu0
        %1312 = vdwg.mxu0
        %v1314 = vsel %vm984, %v1310, 0
        %1316 = vmatprep.subr.mxu0 0.0
        %1317 = vmatpush1.msra.mxu0 0.0
        %1318 = vmatprep.subr.mxu0 0.0
        %1319 = vmatpush1.msra.mxu0 0.0
        %1320 = vmatprep.subr.mxu0 0.0
        %1321 = vmatpush1.msra.mxu0 0.0
        %1322 = vmatprep.subr.mxu0 0.0
        %1323 = vmatpush1.msra.mxu0 0.0
        %1324 = vmatprep.subr.mxu0 0.0
        %1325 = vmatpush1.msra.mxu0 0.0
        %1326 = vmatprep.subr.mxu0 0.0
        %1327 = vmatpush1.msra.mxu0 0.0
        %1328 = vmatprep.subr.mxu0 0.0
        %1329 = vmatpush1.msra.mxu0 0.0
        %1330 = vmatprep.subr.mxu0 0.0
        %1331 = vmatpush1.msra.mxu0 0.0
        %1332 = vmatprep.subr.mxu0 0.0
        %1333 = vmatpush1.msra.mxu0 0.0
        %1334 = vmatprep.subr.mxu0 0.0
        %1335 = vmatpush1.msra.mxu0 0.0
        %1336 = vmatprep.subr.mxu0 0.0
        %1337 = vmatpush1.msra.mxu0 0.0
        %1338 = vmatprep.subr.mxu0 0.0
        %1339 = vmatpush1.msra.mxu0 0.0
        %1340 = vmatprep.subr.mxu0 0.0
        %1341 = vmatpush1.msra.mxu0 0.0
        %1342 = vmatprep.subr.mxu0 0.0
        %1343 = vmatpush1.msra.mxu0 0.0
        %1344 = vmatprep.subr.mxu0 0.0
        %1345 = vmatpush1.msra.mxu0 0.0
        %1346 = vmatprep.subr.mxu0 0.0
        %1347 = vmatpush1.msra.mxu0 %v981
        %1348 = vmatprep.subr.mxu0 0.0
        %1349 = vmatpush2.msra.mxu0 0.0
        %1350 = vmatprep.subr.mxu0 0.0
        %1351 = vmatpush2.msra.mxu0 0.0
        %1352 = vmatprep.subr.mxu0 0.0
        %1353 = vmatpush2.msra.mxu0 0.0
        %1354 = vmatprep.subr.mxu0 0.0
        %1355 = vmatpush2.msra.mxu0 0.0
        %1356 = vmatprep.subr.mxu0 0.0
        %1357 = vmatpush2.msra.mxu0 0.0
        %1358 = vmatprep.subr.mxu0 0.0
        %1359 = vmatpush2.msra.mxu0 0.0
        %1360 = vmatprep.subr.mxu0 0.0
        %1361 = vmatpush2.msra.mxu0 0.0
        %1362 = vmatprep.subr.mxu0 0.0
        %1363 = vmatpush2.msra.mxu0 0.0
        %1364 = vmatprep.subr.mxu0 0.0
        %1365 = vmatpush2.msra.mxu0 0.0
        %1366 = vmatprep.subr.mxu0 0.0
        %1367 = vmatpush2.msra.mxu0 0.0
        %1368 = vmatprep.subr.mxu0 0.0
        %1369 = vmatpush2.msra.mxu0 0.0
        %1370 = vmatprep.subr.mxu0 0.0
        %1371 = vmatpush2.msra.mxu0 0.0
        %1372 = vmatprep.subr.mxu0 0.0
        %1373 = vmatpush2.msra.mxu0 0.0
        %1374 = vmatprep.subr.mxu0 0.0
        %1375 = vmatpush2.msra.mxu0 0.0
        %1376 = vmatprep.subr.mxu0 0.0
        %1377 = vmatpush2.msra.mxu0 0.0
        %1378 = vmatprep.subr.mxu0 0.0
        %1379 = vmatpush2.msra.mxu0 0.0
        %1380 = vmatprep.mubr.f32.mxu0 0.0
        %1381 = vmatmul.mubr.f32.gmra.mxu0 %v1314
        %v1382 = vpop.f32.mrf.mxu0
        %v1383 = vadd.f32 0.0, %v1382
        %v1384 = vpop.f32.mrf.mxu0
        %1385 = vdwg.mxu0
        %v1387 = vsel %vm984, %v1143, 0
        %1389 = vmatprep.subr.mxu0 0.0
        %1390 = vmatpush1.msra.mxu0 0.0
        %1391 = vmatprep.subr.mxu0 0.0
        %1392 = vmatpush1.msra.mxu0 0.0
        %1393 = vmatprep.subr.mxu0 0.0
        %1394 = vmatpush1.msra.mxu0 0.0
        %1395 = vmatprep.subr.mxu0 0.0
        %1396 = vmatpush1.msra.mxu0 0.0
        %1397 = vmatprep.subr.mxu0 0.0
        %1398 = vmatpush1.msra.mxu0 0.0
        %1399 = vmatprep.subr.mxu0 0.0
        %1400 = vmatpush1.msra.mxu0 0.0
        %1401 = vmatprep.subr.mxu0 0.0
        %1402 = vmatpush1.msra.mxu0 0.0
        %1403 = vmatprep.subr.mxu0 0.0
        %1404 = vmatpush1.msra.mxu0 0.0
        %1405 = vmatprep.subr.mxu0 0.0
        %1406 = vmatpush1.msra.mxu0 0.0
        %1407 = vmatprep.subr.mxu0 0.0
        %1408 = vmatpush1.msra.mxu0 0.0
        %1409 = vmatprep.subr.mxu0 0.0
        %1410 = vmatpush1.msra.mxu0 0.0
        %1411 = vmatprep.subr.mxu0 0.0
        %1412 = vmatpush1.msra.mxu0 0.0
        %1413 = vmatprep.subr.mxu0 0.0
        %1414 = vmatpush1.msra.mxu0 0.0
        %1415 = vmatprep.subr.mxu0 0.0
        %1416 = vmatpush1.msra.mxu0 0.0
        %1417 = vmatprep.subr.mxu0 0.0
        %1418 = vmatpush1.msra.mxu0 0.0
        %1419 = vmatprep.subr.mxu0 0.0
        %1420 = vmatpush1.msra.mxu0 %v980
        %1421 = vmatprep.subr.mxu0 0.0
        %1422 = vmatpush2.msra.mxu0 0.0
        %1423 = vmatprep.subr.mxu0 0.0
        %1424 = vmatpush2.msra.mxu0 0.0
        %1425 = vmatprep.subr.mxu0 0.0
        %1426 = vmatpush2.msra.mxu0 0.0
        %1427 = vmatprep.subr.mxu0 0.0
        %1428 = vmatpush2.msra.mxu0 0.0
        %1429 = vmatprep.subr.mxu0 0.0
        %1430 = vmatpush2.msra.mxu0 0.0
        %1431 = vmatprep.subr.mxu0 0.0
        %1432 = vmatpush2.msra.mxu0 0.0
        %1433 = vmatprep.subr.mxu0 0.0
        %1434 = vmatpush2.msra.mxu0 0.0
        %1435 = vmatprep.subr.mxu0 0.0
        %1436 = vmatpush2.msra.mxu0 0.0
        %1437 = vmatprep.subr.mxu0 0.0
        %1438 = vmatpush2.msra.mxu0 0.0
        %1439 = vmatprep.subr.mxu0 0.0
        %1440 = vmatpush2.msra.mxu0 0.0
        %1441 = vmatprep.subr.mxu0 0.0
        %1442 = vmatpush2.msra.mxu0 0.0
        %1443 = vmatprep.subr.mxu0 0.0
        %1444 = vmatpush2.msra.mxu0 0.0
        %1445 = vmatprep.subr.mxu0 0.0
        %1446 = vmatpush2.msra.mxu0 0.0
        %1447 = vmatprep.subr.mxu0 0.0
        %1448 = vmatpush2.msra.mxu0 0.0
        %1449 = vmatprep.subr.mxu0 0.0
        %1450 = vmatpush2.msra.mxu0 0.0
        %1451 = vmatprep.subr.mxu0 0.0
        %1452 = vmatpush2.msra.mxu0 0.0
        %1453 = vmatprep.mubr.f32.mxu0 0.0
        %1454 = vmatmul.mubr.f32.gmra.mxu0 %v1387
        %v1455 = vpop.f32.mrf.mxu0
        %v1456 = vadd.f32 %v1383, %v1455
        %v1457 = vpop.f32.mrf.mxu0
        %1458 = vdwg.mxu0
        %1459 = vrot.lane.b32.xlu0 %v815, 112
        %v1460 = vpop.permute.xlu0 %1459
        %1461 = vrot.lane.b32.xlu0 %v894, 112
        %v1462 = vpop.permute.xlu0 %1461
        %v1463 = vsel %vm984, %v1460, 0
        %v1465 = vsel %vm984, %v1462, 0
        %1467 = vmatprep.subr.mxu0 0.0
        %1468 = vmatpush1.xpose.msra.mxu0 0.0
        %1469 = vmatprep.subr.mxu0 0.0
        %1470 = vmatpush1.xpose.msra.mxu0 0.0
        %1471 = vmatprep.subr.mxu0 0.0
        %1472 = vmatpush1.xpose.msra.mxu0 0.0
        %1473 = vmatprep.subr.mxu0 0.0
        %1474 = vmatpush1.xpose.msra.mxu0 0.0
        %1475 = vmatprep.subr.mxu0 0.0
        %1476 = vmatpush1.xpose.msra.mxu0 0.0
        %1477 = vmatprep.subr.mxu0 0.0
        %1478 = vmatpush1.xpose.msra.mxu0 0.0
        %1479 = vmatprep.subr.mxu0 0.0
        %1480 = vmatpush1.xpose.msra.mxu0 0.0
        %1481 = vmatprep.subr.mxu0 0.0
        %1482 = vmatpush1.xpose.msra.mxu0 0.0
        %1483 = vmatprep.subr.mxu0 0.0
        %1484 = vmatpush1.xpose.msra.mxu0 0.0
        %1485 = vmatprep.subr.mxu0 0.0
        %1486 = vmatpush1.xpose.msra.mxu0 0.0
        %1487 = vmatprep.subr.mxu0 0.0
        %1488 = vmatpush1.xpose.msra.mxu0 0.0
        %1489 = vmatprep.subr.mxu0 0.0
        %1490 = vmatpush1.xpose.msra.mxu0 0.0
        %1491 = vmatprep.subr.mxu0 0.0
        %1492 = vmatpush1.xpose.msra.mxu0 0.0
        %1493 = vmatprep.subr.mxu0 0.0
        %1494 = vmatpush1.xpose.msra.mxu0 0.0
        %1495 = vmatprep.subr.mxu0 0.0
        %1496 = vmatpush1.xpose.msra.mxu0 0.0
        %1497 = vmatprep.subr.mxu0 0.0
        %1498 = vmatpush1.xpose.msra.mxu0 %v1465
        %1499 = vmatprep.subr.mxu0 0.0
        %1500 = vmatpush2.xpose.msra.mxu0 0.0
        %1501 = vmatprep.subr.mxu0 0.0
        %1502 = vmatpush2.xpose.msra.mxu0 0.0
        %1503 = vmatprep.subr.mxu0 0.0
        %1504 = vmatpush2.xpose.msra.mxu0 0.0
        %1505 = vmatprep.subr.mxu0 0.0
        %1506 = vmatpush2.xpose.msra.mxu0 0.0
        %1507 = vmatprep.subr.mxu0 0.0
        %1508 = vmatpush2.xpose.msra.mxu0 0.0
        %1509 = vmatprep.subr.mxu0 0.0
        %1510 = vmatpush2.xpose.msra.mxu0 0.0
        %1511 = vmatprep.subr.mxu0 0.0
        %1512 = vmatpush2.xpose.msra.mxu0 0.0
        %1513 = vmatprep.subr.mxu0 0.0
        %1514 = vmatpush2.xpose.msra.mxu0 0.0
        %1515 = vmatprep.subr.mxu0 0.0
        %1516 = vmatpush2.xpose.msra.mxu0 0.0
        %1517 = vmatprep.subr.mxu0 0.0
        %1518 = vmatpush2.xpose.msra.mxu0 0.0
        %1519 = vmatprep.subr.mxu0 0.0
        %1520 = vmatpush2.xpose.msra.mxu0 0.0
        %1521 = vmatprep.subr.mxu0 0.0
        %1522 = vmatpush2.xpose.msra.mxu0 0.0
        %1523 = vmatprep.subr.mxu0 0.0
        %1524 = vmatpush2.xpose.msra.mxu0 0.0
        %1525 = vmatprep.subr.mxu0 0.0
        %1526 = vmatpush2.xpose.msra.mxu0 0.0
        %1527 = vmatprep.subr.mxu0 0.0
        %1528 = vmatpush2.xpose.msra.mxu0 0.0
        %1529 = vmatprep.subr.mxu0 0.0
        %1530 = vmatpush2.xpose.msra.mxu0 0.0
        %1531 = vmatprep.mubr.f32.mxu0 0.0
        %1532 = vmatmul.mubr.f32.gmra.mxu0 %v1463
        %v1533 = vpop.f32.mrf.mxu0
        %v1534 = vadd.f32 0.0, %v1533
        %v1535 = vpop.f32.mrf.mxu0
        %1536 = vdwg.mxu0
        %v1537 = vmul.f32 %v1534, 0.35355338
        %v1538 = vsel %vm984, %v1537, -inf
        %1539 = vmax.xlane.f32.xlu0 %v1538
        %v1540 = vpop.xlane.xlu0 %1539
        %v1541 = vsub.f32 %v1537, %v1540
        %v1542 = vmul.f32 %v1541, 1.442695
        %v1543 = vpow.pop %v1542
        %v1544 = vsel %vm984, %v1543, 0.0
        %1545 = vadd.xlane.f32.xlu0 %v1544
        %v1546 = vpop.xlane.xlu0 %1545
        %v1547 = vrcp.pop %v1546
        %v1548 = vmul.f32 %v1543, %v1547
        %1549 = vrot.lane.b32.xlu0 %v976, 112
        %v1550 = vpop.permute.xlu0 %1549
        %v1553 = vsel %vm984, %v1548, 0
        %1555 = vmatprep.subr.mxu0 0.0
        %1556 = vmatpush1.msra.mxu0 0.0
        %1557 = vmatprep.subr.mxu0 0.0
        %1558 = vmatpush1.msra.mxu0 0.0
        %1559 = vmatprep.subr.mxu0 0.0
        %1560 = vmatpush1.msra.mxu0 0.0
        %1561 = vmatprep.subr.mxu0 0.0
        %1562 = vmatpush1.msra.mxu0 0.0
        %1563 = vmatprep.subr.mxu0 0.0
        %1564 = vmatpush1.msra.mxu0 0.0
        %1565 = vmatprep.subr.mxu0 0.0
        %1566 = vmatpush1.msra.mxu0 0.0
        %1567 = vmatprep.subr.mxu0 0.0
        %1568 = vmatpush1.msra.mxu0 0.0
        %1569 = vmatprep.subr.mxu0 0.0
        %1570 = vmatpush1.msra.mxu0 0.0
        %1571 = vmatprep.subr.mxu0 0.0
        %1572 = vmatpush1.msra.mxu0 0.0
        %1573 = vmatprep.subr.mxu0 0.0
        %1574 = vmatpush1.msra.mxu0 0.0
        %1575 = vmatprep.subr.mxu0 0.0
        %1576 = vmatpush1.msra.mxu0 0.0
        %1577 = vmatprep.subr.mxu0 0.0
        %1578 = vmatpush1.msra.mxu0 0.0
        %1579 = vmatprep.subr.mxu0 0.0
        %1580 = vmatpush1.msra.mxu0 0.0
        %1581 = vmatprep.subr.mxu0 0.0
        %1582 = vmatpush1.msra.mxu0 0.0
        %1583 = vmatprep.subr.mxu0 0.0
        %1584 = vmatpush1.msra.mxu0 0.0
        %1585 = vmatprep.subr.mxu0 0.0
        %1586 = vmatpush1.msra.mxu0 %v1550
        %1587 = vmatprep.subr.mxu0 0.0
        %1588 = vmatpush2.msra.mxu0 0.0
        %1589 = vmatprep.subr.mxu0 0.0
        %1590 = vmatpush2.msra.mxu0 0.0
        %1591 = vmatprep.subr.mxu0 0.0
        %1592 = vmatpush2.msra.mxu0 0.0
        %1593 = vmatprep.subr.mxu0 0.0
        %1594 = vmatpush2.msra.mxu0 0.0
        %1595 = vmatprep.subr.mxu0 0.0
        %1596 = vmatpush2.msra.mxu0 0.0
        %1597 = vmatprep.subr.mxu0 0.0
        %1598 = vmatpush2.msra.mxu0 0.0
        %1599 = vmatprep.subr.mxu0 0.0
        %1600 = vmatpush2.msra.mxu0 0.0
        %1601 = vmatprep.subr.mxu0 0.0
        %1602 = vmatpush2.msra.mxu0 0.0
        %1603 = vmatprep.subr.mxu0 0.0
        %1604 = vmatpush2.msra.mxu0 0.0
        %1605 = vmatprep.subr.mxu0 0.0
        %1606 = vmatpush2.msra.mxu0 0.0
        %1607 = vmatprep.subr.mxu0 0.0
        %1608 = vmatpush2.msra.mxu0 0.0
        %1609 = vmatprep.subr.mxu0 0.0
        %1610 = vmatpush2.msra.mxu0 0.0
        %1611 = vmatprep.subr.mxu0 0.0
        %1612 = vmatpush2.msra.mxu0 0.0
        %1613 = vmatprep.subr.mxu0 0.0
        %1614 = vmatpush2.msra.mxu0 0.0
        %1615 = vmatprep.subr.mxu0 0.0
        %1616 = vmatpush2.msra.mxu0 0.0
        %1617 = vmatprep.subr.mxu0 0.0
        %1618 = vmatpush2.msra.mxu0 0.0
        %1619 = vmatprep.mubr.f32.mxu0 0.0
        %1620 = vmatmul.mubr.f32.gmra.mxu0 %v1553
        %v1621 = vpop.f32.mrf.mxu0
        %v1622 = vadd.f32 0.0, %v1621
        %v1623 = vpop.f32.mrf.mxu0
        %1624 = vdwg.mxu0
        %v1626 = vsel %vm984, %v1622, 0
        %1628 = vmatprep.subr.mxu0 0.0
        %1629 = vmatpush1.msra.mxu0 0.0
        %1630 = vmatprep.subr.mxu0 0.0
        %1631 = vmatpush1.msra.mxu0 0.0
        %1632 = vmatprep.subr.mxu0 0.0
        %1633 = vmatpush1.msra.mxu0 0.0
        %1634 = vmatprep.subr.mxu0 0.0
        %1635 = vmatpush1.msra.mxu0 0.0
        %1636 = vmatprep.subr.mxu0 0.0
        %1637 = vmatpush1.msra.mxu0 0.0
        %1638 = vmatprep.subr.mxu0 0.0
        %1639 = vmatpush1.msra.mxu0 0.0
        %1640 = vmatprep.subr.mxu0 0.0
        %1641 = vmatpush1.msra.mxu0 0.0
        %1642 = vmatprep.subr.mxu0 0.0
        %1643 = vmatpush1.msra.mxu0 0.0
        %1644 = vmatprep.subr.mxu0 0.0
        %1645 = vmatpush1.msra.mxu0 0.0
        %1646 = vmatprep.subr.mxu0 0.0
        %1647 = vmatpush1.msra.mxu0 0.0
        %1648 = vmatprep.subr.mxu0 0.0
        %1649 = vmatpush1.msra.mxu0 0.0
        %1650 = vmatprep.subr.mxu0 0.0
        %1651 = vmatpush1.msra.mxu0 0.0
        %1652 = vmatprep.subr.mxu0 0.0
        %1653 = vmatpush1.msra.mxu0 0.0
        %1654 = vmatprep.subr.mxu0 0.0
        %1655 = vmatpush1.msra.mxu0 0.0
        %1656 = vmatprep.subr.mxu0 0.0
        %1657 = vmatpush1.msra.mxu0 0.0
        %1658 = vmatprep.subr.mxu0 0.0
        %1659 = vmatpush1.msra.mxu0 %v982
        %1660 = vmatprep.subr.mxu0 0.0
        %1661 = vmatpush2.msra.mxu0 0.0
        %1662 = vmatprep.subr.mxu0 0.0
        %1663 = vmatpush2.msra.mxu0 0.0
        %1664 = vmatprep.subr.mxu0 0.0
        %1665 = vmatpush2.msra.mxu0 0.0
        %1666 = vmatprep.subr.mxu0 0.0
        %1667 = vmatpush2.msra.mxu0 0.0
        %1668 = vmatprep.subr.mxu0 0.0
        %1669 = vmatpush2.msra.mxu0 0.0
        %1670 = vmatprep.subr.mxu0 0.0
        %1671 = vmatpush2.msra.mxu0 0.0
        %1672 = vmatprep.subr.mxu0 0.0
        %1673 = vmatpush2.msra.mxu0 0.0
        %1674 = vmatprep.subr.mxu0 0.0
        %1675 = vmatpush2.msra.mxu0 0.0
        %1676 = vmatprep.subr.mxu0 0.0
        %1677 = vmatpush2.msra.mxu0 0.0
        %1678 = vmatprep.subr.mxu0 0.0
        %1679 = vmatpush2.msra.mxu0 0.0
        %1680 = vmatprep.subr.mxu0 0.0
        %1681 = vmatpush2.msra.mxu0 0.0
        %1682 = vmatprep.subr.mxu0 0.0
        %1683 = vmatpush2.msra.mxu0 0.0
        %1684 = vmatprep.subr.mxu0 0.0
        %1685 = vmatpush2.msra.mxu0 0.0
        %1686 = vmatprep.subr.mxu0 0.0
        %1687 = vmatpush2.msra.mxu0 0.0
        %1688 = vmatprep.subr.mxu0 0.0
        %1689 = vmatpush2.msra.mxu0 0.0
        %1690 = vmatprep.subr.mxu0 0.0
        %1691 = vmatpush2.msra.mxu0 0.0
        %1692 = vmatprep.mubr.f32.mxu0 0.0
        %1693 = vmatmul.mubr.f32.gmra.mxu0 %v1626
        %v1694 = vpop.f32.mrf.mxu0
        %v1695 = vadd.f32 0.0, %v1694
        %v1696 = vpop.f32.mrf.mxu0
        %1697 = vdwg.mxu0
        %v1698 = vadd.f32 %v1456, %v1695
        %1699 = vrot.lane.b32.xlu0 %v815, 104
        %v1700 = vpop.permute.xlu0 %1699
        %1701 = vrot.lane.b32.xlu0 %v894, 104
        %v1702 = vpop.permute.xlu0 %1701
        %v1703 = vsel %vm984, %v1700, 0
        %v1705 = vsel %vm984, %v1702, 0
        %1707 = vmatprep.subr.mxu0 0.0
        %1708 = vmatpush1.xpose.msra.mxu0 0.0
        %1709 = vmatprep.subr.mxu0 0.0
        %1710 = vmatpush1.xpose.msra.mxu0 0.0
        %1711 = vmatprep.subr.mxu0 0.0
        %1712 = vmatpush1.xpose.msra.mxu0 0.0
        %1713 = vmatprep.subr.mxu0 0.0
        %1714 = vmatpush1.xpose.msra.mxu0 0.0
        %1715 = vmatprep.subr.mxu0 0.0
        %1716 = vmatpush1.xpose.msra.mxu0 0.0
        %1717 = vmatprep.subr.mxu0 0.0
        %1718 = vmatpush1.xpose.msra.mxu0 0.0
        %1719 = vmatprep.subr.mxu0 0.0
        %1720 = vmatpush1.xpose.msra.mxu0 0.0
        %1721 = vmatprep.subr.mxu0 0.0
        %1722 = vmatpush1.xpose.msra.mxu0 0.0
        %1723 = vmatprep.subr.mxu0 0.0
        %1724 = vmatpush1.xpose.msra.mxu0 0.0
        %1725 = vmatprep.subr.mxu0 0.0
        %1726 = vmatpush1.xpose.msra.mxu0 0.0
        %1727 = vmatprep.subr.mxu0 0.0
        %1728 = vmatpush1.xpose.msra.mxu0 0.0
        %1729 = vmatprep.subr.mxu0 0.0
        %1730 = vmatpush1.xpose.msra.mxu0 0.0
        %1731 = vmatprep.subr.mxu0 0.0
        %1732 = vmatpush1.xpose.msra.mxu0 0.0
        %1733 = vmatprep.subr.mxu0 0.0
        %1734 = vmatpush1.xpose.msra.mxu0 0.0
        %1735 = vmatprep.subr.mxu0 0.0
        %1736 = vmatpush1.xpose.msra.mxu0 0.0
        %1737 = vmatprep.subr.mxu0 0.0
        %1738 = vmatpush1.xpose.msra.mxu0 %v1705
        %1739 = vmatprep.subr.mxu0 0.0
        %1740 = vmatpush2.xpose.msra.mxu0 0.0
        %1741 = vmatprep.subr.mxu0 0.0
        %1742 = vmatpush2.xpose.msra.mxu0 0.0
        %1743 = vmatprep.subr.mxu0 0.0
        %1744 = vmatpush2.xpose.msra.mxu0 0.0
        %1745 = vmatprep.subr.mxu0 0.0
        %1746 = vmatpush2.xpose.msra.mxu0 0.0
        %1747 = vmatprep.subr.mxu0 0.0
        %1748 = vmatpush2.xpose.msra.mxu0 0.0
        %1749 = vmatprep.subr.mxu0 0.0
        %1750 = vmatpush2.xpose.msra.mxu0 0.0
        %1751 = vmatprep.subr.mxu0 0.0
        %1752 = vmatpush2.xpose.msra.mxu0 0.0
        %1753 = vmatprep.subr.mxu0 0.0
        %1754 = vmatpush2.xpose.msra.mxu0 0.0
        %1755 = vmatprep.subr.mxu0 0.0
        %1756 = vmatpush2.xpose.msra.mxu0 0.0
        %1757 = vmatprep.subr.mxu0 0.0
        %1758 = vmatpush2.xpose.msra.mxu0 0.0
        %1759 = vmatprep.subr.mxu0 0.0
        %1760 = vmatpush2.xpose.msra.mxu0 0.0
        %1761 = vmatprep.subr.mxu0 0.0
        %1762 = vmatpush2.xpose.msra.mxu0 0.0
        %1763 = vmatprep.subr.mxu0 0.0
        %1764 = vmatpush2.xpose.msra.mxu0 0.0
        %1765 = vmatprep.subr.mxu0 0.0
        %1766 = vmatpush2.xpose.msra.mxu0 0.0
        %1767 = vmatprep.subr.mxu0 0.0
        %1768 = vmatpush2.xpose.msra.mxu0 0.0
        %1769 = vmatprep.subr.mxu0 0.0
        %1770 = vmatpush2.xpose.msra.mxu0 0.0
        %1771 = vmatprep.mubr.f32.mxu0 0.0
        %1772 = vmatmul.mubr.f32.gmra.mxu0 %v1703
        %v1773 = vpop.f32.mrf.mxu0
        %v1774 = vadd.f32 0.0, %v1773
        %v1775 = vpop.f32.mrf.mxu0
        %1776 = vdwg.mxu0
        %v1777 = vmul.f32 %v1774, 0.35355338
        %v1778 = vsel %vm984, %v1777, -inf
        %1779 = vmax.xlane.f32.xlu0 %v1778
        %v1780 = vpop.xlane.xlu0 %1779
        %v1781 = vsub.f32 %v1777, %v1780
        %v1782 = vmul.f32 %v1781, 1.442695
        %v1783 = vpow.pop %v1782
        %v1784 = vsel %vm984, %v1783, 0.0
        %1785 = vadd.xlane.f32.xlu0 %v1784
        %v1786 = vpop.xlane.xlu0 %1785
        %v1787 = vrcp.pop %v1786
        %v1788 = vmul.f32 %v1783, %v1787
        %1789 = vrot.lane.b32.xlu0 %v976, 104
        %v1790 = vpop.permute.xlu0 %1789
        %v1793 = vsel %vm984, %v1788, 0
        %1795 = vmatprep.subr.mxu0 0.0
        %1796 = vmatpush1.msra.mxu0 0.0
        %1797 = vmatprep.subr.mxu0 0.0
        %1798 = vmatpush1.msra.mxu0 0.0
        %1799 = vmatprep.subr.mxu0 0.0
        %1800 = vmatpush1.msra.mxu0 0.0
        %1801 = vmatprep.subr.mxu0 0.0
        %1802 = vmatpush1.msra.mxu0 0.0
        %1803 = vmatprep.subr.mxu0 0.0
        %1804 = vmatpush1.msra.mxu0 0.0
        %1805 = vmatprep.subr.mxu0 0.0
        %1806 = vmatpush1.msra.mxu0 0.0
        %1807 = vmatprep.subr.mxu0 0.0
        %1808 = vmatpush1.msra.mxu0 0.0
        %1809 = vmatprep.subr.mxu0 0.0
        %1810 = vmatpush1.msra.mxu0 0.0
        %1811 = vmatprep.subr.mxu0 0.0
        %1812 = vmatpush1.msra.mxu0 0.0
        %1813 = vmatprep.subr.mxu0 0.0
        %1814 = vmatpush1.msra.mxu0 0.0
        %1815 = vmatprep.subr.mxu0 0.0
        %1816 = vmatpush1.msra.mxu0 0.0
        %1817 = vmatprep.subr.mxu0 0.0
        %1818 = vmatpush1.msra.mxu0 0.0
        %1819 = vmatprep.subr.mxu0 0.0
        %1820 = vmatpush1.msra.mxu0 0.0
        %1821 = vmatprep.subr.mxu0 0.0
        %1822 = vmatpush1.msra.mxu0 0.0
        %1823 = vmatprep.subr.mxu0 0.0
        %1824 = vmatpush1.msra.mxu0 0.0
        %1825 = vmatprep.subr.mxu0 0.0
        %1826 = vmatpush1.msra.mxu0 %v1790
        %1827 = vmatprep.subr.mxu0 0.0
        %1828 = vmatpush2.msra.mxu0 0.0
        %1829 = vmatprep.subr.mxu0 0.0
        %1830 = vmatpush2.msra.mxu0 0.0
        %1831 = vmatprep.subr.mxu0 0.0
        %1832 = vmatpush2.msra.mxu0 0.0
        %1833 = vmatprep.subr.mxu0 0.0
        %1834 = vmatpush2.msra.mxu0 0.0
        %1835 = vmatprep.subr.mxu0 0.0
        %1836 = vmatpush2.msra.mxu0 0.0
        %1837 = vmatprep.subr.mxu0 0.0
        %1838 = vmatpush2.msra.mxu0 0.0
        %1839 = vmatprep.subr.mxu0 0.0
        %1840 = vmatpush2.msra.mxu0 0.0
        %1841 = vmatprep.subr.mxu0 0.0
        %1842 = vmatpush2.msra.mxu0 0.0
        %1843 = vmatprep.subr.mxu0 0.0
        %1844 = vmatpush2.msra.mxu0 0.0
        %1845 = vmatprep.subr.mxu0 0.0
        %1846 = vmatpush2.msra.mxu0 0.0
        %1847 = vmatprep.subr.mxu0 0.0
        %1848 = vmatpush2.msra.mxu0 0.0
        %1849 = vmatprep.subr.mxu0 0.0
        %1850 = vmatpush2.msra.mxu0 0.0
        %1851 = vmatprep.subr.mxu0 0.0
        %1852 = vmatpush2.msra.mxu0 0.0
        %1853 = vmatprep.subr.mxu0 0.0
        %1854 = vmatpush2.msra.mxu0 0.0
        %1855 = vmatprep.subr.mxu0 0.0
        %1856 = vmatpush2.msra.mxu0 0.0
        %1857 = vmatprep.subr.mxu0 0.0
        %1858 = vmatpush2.msra.mxu0 0.0
        %1859 = vmatprep.mubr.f32.mxu0 0.0
        %1860 = vmatmul.mubr.f32.gmra.mxu0 %v1793
        %v1861 = vpop.f32.mrf.mxu0
        %v1862 = vadd.f32 0.0, %v1861
        %v1863 = vpop.f32.mrf.mxu0
        %1864 = vdwg.mxu0
        %v1866 = vsel %vm984, %v1862, 0
        %1868 = vmatprep.subr.mxu0 0.0
        %1869 = vmatpush1.msra.mxu0 0.0
        %1870 = vmatprep.subr.mxu0 0.0
        %1871 = vmatpush1.msra.mxu0 0.0
        %1872 = vmatprep.subr.mxu0 0.0
        %1873 = vmatpush1.msra.mxu0 0.0
        %1874 = vmatprep.subr.mxu0 0.0
        %1875 = vmatpush1.msra.mxu0 0.0
        %1876 = vmatprep.subr.mxu0 0.0
        %1877 = vmatpush1.msra.mxu0 0.0
        %1878 = vmatprep.subr.mxu0 0.0
        %1879 = vmatpush1.msra.mxu0 0.0
        %1880 = vmatprep.subr.mxu0 0.0
        %1881 = vmatpush1.msra.mxu0 0.0
        %1882 = vmatprep.subr.mxu0 0.0
        %1883 = vmatpush1.msra.mxu0 0.0
        %1884 = vmatprep.subr.mxu0 0.0
        %1885 = vmatpush1.msra.mxu0 0.0
        %1886 = vmatprep.subr.mxu0 0.0
        %1887 = vmatpush1.msra.mxu0 0.0
        %1888 = vmatprep.subr.mxu0 0.0
        %1889 = vmatpush1.msra.mxu0 0.0
        %1890 = vmatprep.subr.mxu0 0.0
        %1891 = vmatpush1.msra.mxu0 0.0
        %1892 = vmatprep.subr.mxu0 0.0
        %1893 = vmatpush1.msra.mxu0 0.0
        %1894 = vmatprep.subr.mxu0 0.0
        %1895 = vmatpush1.msra.mxu0 0.0
        %1896 = vmatprep.subr.mxu0 0.0
        %1897 = vmatpush1.msra.mxu0 0.0
        %1898 = vmatprep.subr.mxu0 0.0
        %1899 = vmatpush1.msra.mxu0 %v983
        %1900 = vmatprep.subr.mxu0 0.0
        %1901 = vmatpush2.msra.mxu0 0.0
        %1902 = vmatprep.subr.mxu0 0.0
        %1903 = vmatpush2.msra.mxu0 0.0
        %1904 = vmatprep.subr.mxu0 0.0
        %1905 = vmatpush2.msra.mxu0 0.0
        %1906 = vmatprep.subr.mxu0 0.0
        %1907 = vmatpush2.msra.mxu0 0.0
        %1908 = vmatprep.subr.mxu0 0.0
        %1909 = vmatpush2.msra.mxu0 0.0
        %1910 = vmatprep.subr.mxu0 0.0
        %1911 = vmatpush2.msra.mxu0 0.0
        %1912 = vmatprep.subr.mxu0 0.0
        %1913 = vmatpush2.msra.mxu0 0.0
        %1914 = vmatprep.subr.mxu0 0.0
        %1915 = vmatpush2.msra.mxu0 0.0
        %1916 = vmatprep.subr.mxu0 0.0
        %1917 = vmatpush2.msra.mxu0 0.0
        %1918 = vmatprep.subr.mxu0 0.0
        %1919 = vmatpush2.msra.mxu0 0.0
        %1920 = vmatprep.subr.mxu0 0.0
        %1921 = vmatpush2.msra.mxu0 0.0
        %1922 = vmatprep.subr.mxu0 0.0
        %1923 = vmatpush2.msra.mxu0 0.0
        %1924 = vmatprep.subr.mxu0 0.0
        %1925 = vmatpush2.msra.mxu0 0.0
        %1926 = vmatprep.subr.mxu0 0.0
        %1927 = vmatpush2.msra.mxu0 0.0
        %1928 = vmatprep.subr.mxu0 0.0
        %1929 = vmatpush2.msra.mxu0 0.0
        %1930 = vmatprep.subr.mxu0 0.0
        %1931 = vmatpush2.msra.mxu0 0.0
        %1932 = vmatprep.mubr.f32.mxu0 0.0
        %1933 = vmatmul.mubr.f32.gmra.mxu0 %v1866
        %v1934 = vpop.f32.mrf.mxu0
        %v1935 = vadd.f32 0.0, %v1934
        %v1936 = vpop.f32.mrf.mxu0
        %1937 = vdwg.mxu0
        %v1938 = vadd.f32 %v1698, %v1935
        %v1939 = vlaneseq
        %v1940 = vshrl.u32 %v1939, 7
        %v1941 = vsub.s32 3, %v1940
        %v1942 = vrot.slane %v732, %v1941
        %v1943 = vadd.f32 %v1938, %v1942
        %v1944 = vadd.f32 %v726, %v1943
        %v1945 = vsel %vm744, %v1944, 0.0
        %1946 = vadd.xlane.f32.xlu0 %v1945
        %v1947 = vpop.xlane.xlu0 %1946
        %v1948 = vrcp.pop 32.0
        %v1949 = vmul.f32 %v1947, %v1948
        %v1950 = vsub.f32 %v1944, %v1949
        %v1951 = vmul.f32 %v1950, %v1950
        %v1952 = vsel %vm744, %v1951, 0.0
        %1953 = vadd.xlane.f32.xlu0 %v1952
        %v1954 = vpop.xlane.xlu0 %1953
        %v1955 = vmul.f32 %v1954, %v1948
        %v1956 = vadd.f32 %v1955, 1e-05
        %v1957 = vrsqrt.pop %v1956
        %v1958 = vmul.f32 %v1950, %v1957
        %v1959 = vlaneseq
        %v1960 = vshrl.u32 %v1959, 7
        %v1961 = vsub.s32 5, %v1960
        %v1962 = vrot.slane %v733, %v1961
        %v1963 = vmul.f32 %v1958, %v1962
        %v1964 = vlaneseq
        %v1965 = vshrl.u32 %v1964, 7
        %v1966 = vsub.s32 6, %v1965
        %v1967 = vrot.slane %v733, %v1966
        %v1968 = vadd.f32 %v1963, %v1967
        %v1969 = vadd.f32 %v1968, %v727
        %s1970 = scalar_lea.vmem %s566, 128 [#allocation4]
        %v1971 = vld [vmem:[%s1970] sm:$0xff]
        %v1972 = vld [vmem:[%s1970 + $0x8] sm:$0xff]
        %v1973 = vld [vmem:[%s1970 + $0x10] sm:$0xff]
        %v1974 = vld [vmem:[%s1970 + $0x18] sm:$0xff]
        %v1975 = vlaneseq
        %v1976 = vshrl.u32 %v1975, 7
        %v1977 = vsub.s32 4, %v1976
        %v1978 = vrot.slane %v732, %v1977
        %v1980 = vsel %vm744, %v1969, 0
        %1982 = vmatprep.subr.mxu0 0.0
        %1983 = vmatpush1.msra.mxu0 0.0
        %1984 = vmatprep.subr.mxu0 0.0
        %1985 = vmatpush1.msra.mxu0 0.0
        %1986 = vmatprep.subr.mxu0 0.0
        %1987 = vmatpush1.msra.mxu0 0.0
        %1988 = vmatprep.subr.mxu0 0.0
        %1989 = vmatpush1.msra.mxu0 0.0
        %1990 = vmatprep.subr.mxu0 0.0
        %1991 = vmatpush1.msra.mxu0 0.0
        %1992 = vmatprep.subr.mxu0 0.0
        %1993 = vmatpush1.msra.mxu0 0.0
        %1994 = vmatprep.subr.mxu0 0.0
        %1995 = vmatpush1.msra.mxu0 0.0
        %1996 = vmatprep.subr.mxu0 0.0
        %1997 = vmatpush1.msra.mxu0 0.0
        %1998 = vmatprep.subr.mxu0 0.0
        %1999 = vmatpush1.msra.mxu0 0.0
        %2000 = vmatprep.subr.mxu0 0.0
        %2001 = vmatpush1.msra.mxu0 0.0
        %2002 = vmatprep.subr.mxu0 0.0
        %2003 = vmatpush1.msra.mxu0 0.0
        %2004 = vmatprep.subr.mxu0 0.0
        %2005 = vmatpush1.msra.mxu0 0.0
        %2006 = vmatprep.subr.mxu0 0.0
        %2007 = vmatpush1.msra.mxu0 %v1974
        %2008 = vmatprep.subr.mxu0 0.0
        %2009 = vmatpush1.msra.mxu0 %v1973
        %2010 = vmatprep.subr.mxu0 0.0
        %2011 = vmatpush1.msra.mxu0 %v1972
        %2012 = vmatprep.subr.mxu0 0.0
        %2013 = vmatpush1.msra.mxu0 %v1971
        %2014 = vmatprep.subr.mxu0 0.0
        %2015 = vmatpush2.msra.mxu0 0.0
        %2016 = vmatprep.subr.mxu0 0.0
        %2017 = vmatpush2.msra.mxu0 0.0
        %2018 = vmatprep.subr.mxu0 0.0
        %2019 = vmatpush2.msra.mxu0 0.0
        %2020 = vmatprep.subr.mxu0 0.0
        %2021 = vmatpush2.msra.mxu0 0.0
        %2022 = vmatprep.subr.mxu0 0.0
        %2023 = vmatpush2.msra.mxu0 0.0
        %2024 = vmatprep.subr.mxu0 0.0
        %2025 = vmatpush2.msra.mxu0 0.0
        %2026 = vmatprep.subr.mxu0 0.0
        %2027 = vmatpush2.msra.mxu0 0.0
        %2028 = vmatprep.subr.mxu0 0.0
        %2029 = vmatpush2.msra.mxu0 0.0
        %2030 = vmatprep.subr.mxu0 0.0
        %2031 = vmatpush2.msra.mxu0 0.0
        %2032 = vmatprep.subr.mxu0 0.0
        %2033 = vmatpush2.msra.mxu0 0.0
        %2034 = vmatprep.subr.mxu0 0.0
        %2035 = vmatpush2.msra.mxu0 0.0
        %2036 = vmatprep.subr.mxu0 0.0
        %2037 = vmatpush2.msra.mxu0 0.0
        %2038 = vmatprep.subr.mxu0 0.0
        %2039 = vmatpush2.msra.mxu0 0.0
        %2040 = vmatprep.subr.mxu0 0.0
        %2041 = vmatpush2.msra.mxu0 0.0
        %2042 = vmatprep.subr.mxu0 0.0
        %2043 = vmatpush2.msra.mxu0 0.0
        %2044 = vmatprep.subr.mxu0 0.0
        %2045 = vmatpush2.msra.mxu0 0.0
        %2046 = vmatprep.mubr.f32.mxu0 0.0
        %2047 = vmatmul.mubr.f32.gmra.mxu0 %v1980
        %v2048 = vpop.f32.mrf.mxu0
        %v2049 = vadd.f32 %v1978, %v2048
        %v2050 = vpop.f32.mrf.mxu0
        %2051 = vdwg.mxu0
        %s2052 = scalar_lea.vmem %s566, 160 [#allocation4]
        %v2053 = vld [vmem:[%s2052] sm:$0xff]
        %v2054 = vld [vmem:[%s2052 + $0x8] sm:$0xff]
        %v2055 = vld [vmem:[%s2052 + $0x10] sm:$0xff]
        %v2056 = vld [vmem:[%s2052 + $0x18] sm:$0xff]
        %v2057 = vlaneseq
        %v2058 = vshrl.u32 %v2057, 7
        %v2059 = vsub.s32 5, %v2058
        %v2060 = vrot.slane %v732, %v2059
        %v2062 = vsel %vm744, %v728, 0
        %v2065 = vsel %vm744, %v729, 0
        %2067 = vmatprep.subr.mxu0 0.0
        %2068 = vmatpush1.msra.mxu0 0.0
        %2069 = vmatprep.subr.mxu0 0.0
        %2070 = vmatpush1.msra.mxu0 0.0
        %2071 = vmatprep.subr.mxu0 0.0
        %2072 = vmatpush1.msra.mxu0 0.0
        %2073 = vmatprep.subr.mxu0 0.0
        %2074 = vmatpush1.msra.mxu0 0.0
        %2075 = vmatprep.subr.mxu0 0.0
        %2076 = vmatpush1.msra.mxu0 0.0
        %2077 = vmatprep.subr.mxu0 0.0
        %2078 = vmatpush1.msra.mxu0 0.0
        %2079 = vmatprep.subr.mxu0 0.0
        %2080 = vmatpush1.msra.mxu0 0.0
        %2081 = vmatprep.subr.mxu0 0.0
        %2082 = vmatpush1.msra.mxu0 0.0
        %2083 = vmatprep.subr.mxu0 0.0
        %2084 = vmatpush1.msra.mxu0 0.0
        %2085 = vmatprep.subr.mxu0 0.0
        %2086 = vmatpush1.msra.mxu0 0.0
        %2087 = vmatprep.subr.mxu0 0.0
        %2088 = vmatpush1.msra.mxu0 0.0
        %2089 = vmatprep.subr.mxu0 0.0
        %2090 = vmatpush1.msra.mxu0 0.0
        %2091 = vmatprep.subr.mxu0 0.0
        %2092 = vmatpush1.msra.mxu0 %v2056
        %2093 = vmatprep.subr.mxu0 0.0
        %2094 = vmatpush1.msra.mxu0 %v2055
        %2095 = vmatprep.subr.mxu0 0.0
        %2096 = vmatpush1.msra.mxu0 %v2054
        %2097 = vmatprep.subr.mxu0 0.0
        %2098 = vmatpush1.msra.mxu0 %v2053
        %2099 = vmatprep.subr.mxu0 0.0
        %2100 = vmatpush2.msra.mxu0 0.0
        %2101 = vmatprep.subr.mxu0 0.0
        %2102 = vmatpush2.msra.mxu0 0.0
        %2103 = vmatprep.subr.mxu0 0.0
        %2104 = vmatpush2.msra.mxu0 0.0
        %2105 = vmatprep.subr.mxu0 0.0
        %2106 = vmatpush2.msra.mxu0 0.0
        %2107 = vmatprep.subr.mxu0 0.0
        %2108 = vmatpush2.msra.mxu0 0.0
        %2109 = vmatprep.subr.mxu0 0.0
        %2110 = vmatpush2.msra.mxu0 0.0
        %2111 = vmatprep.subr.mxu0 0.0
        %2112 = vmatpush2.msra.mxu0 0.0
        %2113 = vmatprep.subr.mxu0 0.0
        %2114 = vmatpush2.msra.mxu0 0.0
        %2115 = vmatprep.subr.mxu0 0.0
        %2116 = vmatpush2.msra.mxu0 0.0
        %2117 = vmatprep.subr.mxu0 0.0
        %2118 = vmatpush2.msra.mxu0 0.0
        %2119 = vmatprep.subr.mxu0 0.0
        %2120 = vmatpush2.msra.mxu0 0.0
        %2121 = vmatprep.subr.mxu0 0.0
        %2122 = vmatpush2.msra.mxu0 0.0
        %2123 = vmatprep.subr.mxu0 0.0
        %2124 = vmatpush2.msra.mxu0 0.0
        %2125 = vmatprep.subr.mxu0 0.0
        %2126 = vmatpush2.msra.mxu0 0.0
        %2127 = vmatprep.subr.mxu0 0.0
        %2128 = vmatpush2.msra.mxu0 0.0
        %2129 = vmatprep.subr.mxu0 0.0
        %2130 = vmatpush2.msra.mxu0 0.0
        %2131 = vmatprep.mubr.f32.mxu0 0.0
        %2132 = vmatmul.mubr.f32.gmra.mxu0 %v2062
        %v2133 = vpop.f32.mrf.mxu0
        %v2134 = vadd.f32 %v2060, %v2133
        %v2135 = vpop.f32.mrf.mxu0
        %2136 = vmatprep.mubr.f32.mxu0 0.0
        %2137 = vmatmul.mubr.f32.gmra.mxu0 %v2065
        %v2138 = vpop.f32.mrf.mxu0
        %v2139 = vadd.f32 %v2060, %v2138
        %v2140 = vpop.f32.mrf.mxu0
        %2141 = vdwg.mxu0
        %s2142 = scalar_lea.vmem %s566, 192 [#allocation4]
        %v2143 = vld [vmem:[%s2142] sm:$0xff]
        %v2144 = vld [vmem:[%s2142 + $0x8] sm:$0xff]
        %v2145 = vld [vmem:[%s2142 + $0x10] sm:$0xff]
        %v2146 = vld [vmem:[%s2142 + $0x18] sm:$0xff]
        %v2147 = vlaneseq
        %v2148 = vshrl.u32 %v2147, 7
        %v2149 = vsub.s32 6, %v2148
        %v2150 = vrot.slane %v732, %v2149
        %v2152 = vsel %vm744, %v730, 0
        %v2155 = vsel %vm744, %v731, 0
        %2157 = vmatprep.subr.mxu0 0.0
        %2158 = vmatpush1.msra.mxu0 0.0
        %2159 = vmatprep.subr.mxu0 0.0
        %2160 = vmatpush1.msra.mxu0 0.0
        %2161 = vmatprep.subr.mxu0 0.0
        %2162 = vmatpush1.msra.mxu0 0.0
        %2163 = vmatprep.subr.mxu0 0.0
        %2164 = vmatpush1.msra.mxu0 0.0
        %2165 = vmatprep.subr.mxu0 0.0
        %2166 = vmatpush1.msra.mxu0 0.0
        %2167 = vmatprep.subr.mxu0 0.0
        %2168 = vmatpush1.msra.mxu0 0.0
        %2169 = vmatprep.subr.mxu0 0.0
        %2170 = vmatpush1.msra.mxu0 0.0
        %2171 = vmatprep.subr.mxu0 0.0
        %2172 = vmatpush1.msra.mxu0 0.0
        %2173 = vmatprep.subr.mxu0 0.0
        %2174 = vmatpush1.msra.mxu0 0.0
        %2175 = vmatprep.subr.mxu0 0.0
        %2176 = vmatpush1.msra.mxu0 0.0
        %2177 = vmatprep.subr.mxu0 0.0
        %2178 = vmatpush1.msra.mxu0 0.0
        %2179 = vmatprep.subr.mxu0 0.0
        %2180 = vmatpush1.msra.mxu0 0.0
        %2181 = vmatprep.subr.mxu0 0.0
        %2182 = vmatpush1.msra.mxu0 %v2146
        %2183 = vmatprep.subr.mxu0 0.0
        %2184 = vmatpush1.msra.mxu0 %v2145
        %2185 = vmatprep.subr.mxu0 0.0
        %2186 = vmatpush1.msra.mxu0 %v2144
        %2187 = vmatprep.subr.mxu0 0.0
        %2188 = vmatpush1.msra.mxu0 %v2143
        %2189 = vmatprep.subr.mxu0 0.0
        %2190 = vmatpush2.msra.mxu0 0.0
        %2191 = vmatprep.subr.mxu0 0.0
        %2192 = vmatpush2.msra.mxu0 0.0
        %2193 = vmatprep.subr.mxu0 0.0
        %2194 = vmatpush2.msra.mxu0 0.0
        %2195 = vmatprep.subr.mxu0 0.0
        %2196 = vmatpush2.msra.mxu0 0.0
        %2197 = vmatprep.subr.mxu0 0.0
        %2198 = vmatpush2.msra.mxu0 0.0
        %2199 = vmatprep.subr.mxu0 0.0
        %2200 = vmatpush2.msra.mxu0 0.0
        %2201 = vmatprep.subr.mxu0 0.0
        %2202 = vmatpush2.msra.mxu0 0.0
        %2203 = vmatprep.subr.mxu0 0.0
        %2204 = vmatpush2.msra.mxu0 0.0
        %2205 = vmatprep.subr.mxu0 0.0
        %2206 = vmatpush2.msra.mxu0 0.0
        %2207 = vmatprep.subr.mxu0 0.0
        %2208 = vmatpush2.msra.mxu0 0.0
        %2209 = vmatprep.subr.mxu0 0.0
        %2210 = vmatpush2.msra.mxu0 0.0
        %2211 = vmatprep.subr.mxu0 0.0
        %2212 = vmatpush2.msra.mxu0 0.0
        %2213 = vmatprep.subr.mxu0 0.0
        %2214 = vmatpush2.msra.mxu0 0.0
        %2215 = vmatprep.subr.mxu0 0.0
        %2216 = vmatpush2.msra.mxu0 0.0
        %2217 = vmatprep.subr.mxu0 0.0
        %2218 = vmatpush2.msra.mxu0 0.0
        %2219 = vmatprep.subr.mxu0 0.0
        %2220 = vmatpush2.msra.mxu0 0.0
        %2221 = vmatprep.mubr.f32.mxu0 0.0
        %2222 = vmatmul.mubr.f32.gmra.mxu0 %v2152
        %v2223 = vpop.f32.mrf.mxu0
        %v2224 = vadd.f32 %v2150, %v2223
        %v2225 = vpop.f32.mrf.mxu0
        %2226 = vmatprep.mubr.f32.mxu0 0.0
        %2227 = vmatmul.mubr.f32.gmra.mxu0 %v2155
        %v2228 = vpop.f32.mrf.mxu0
        %v2229 = vadd.f32 %v2150, %v2228
        %v2230 = vpop.f32.mrf.mxu0
        %2231 = vdwg.mxu0
        %s2232 = scalar_lea.vmem %s566, 224 [#allocation4]
        %v2233 = vld [vmem:[%s2232] sm:$0xff]
        %v2234 = vld [vmem:[%s2232 + $0x8] sm:$0xff]
        %v2235 = vld [vmem:[%s2232 + $0x10] sm:$0xff]
        %v2236 = vld [vmem:[%s2232 + $0x18] sm:$0xff]
        %v2238 = vsel %vm984, %v2049, 0
        %v2241 = vsel %vm984, %v2134, 0
        %v2244 = vsel %vm984, %v2139, 0
        %2246 = vmatprep.subr.mxu0 0.0
        %2247 = vmatpush1.xpose.msra.mxu0 0.0
        %2248 = vmatprep.subr.mxu0 0.0
        %2249 = vmatpush1.xpose.msra.mxu0 0.0
        %2250 = vmatprep.subr.mxu0 0.0
        %2251 = vmatpush1.xpose.msra.mxu0 0.0
        %2252 = vmatprep.subr.mxu0 0.0
        %2253 = vmatpush1.xpose.msra.mxu0 0.0
        %2254 = vmatprep.subr.mxu0 0.0
        %2255 = vmatpush1.xpose.msra.mxu0 0.0
        %2256 = vmatprep.subr.mxu0 0.0
        %2257 = vmatpush1.xpose.msra.mxu0 0.0
        %2258 = vmatprep.subr.mxu0 0.0
        %2259 = vmatpush1.xpose.msra.mxu0 0.0
        %2260 = vmatprep.subr.mxu0 0.0
        %2261 = vmatpush1.xpose.msra.mxu0 0.0
        %2262 = vmatprep.subr.mxu0 0.0
        %2263 = vmatpush1.xpose.msra.mxu0 0.0
        %2264 = vmatprep.subr.mxu0 0.0
        %2265 = vmatpush1.xpose.msra.mxu0 0.0
        %2266 = vmatprep.subr.mxu0 0.0
        %2267 = vmatpush1.xpose.msra.mxu0 0.0
        %2268 = vmatprep.subr.mxu0 0.0
        %2269 = vmatpush1.xpose.msra.mxu0 0.0
        %2270 = vmatprep.subr.mxu0 0.0
        %2271 = vmatpush1.xpose.msra.mxu0 0.0
        %2272 = vmatprep.subr.mxu0 0.0
        %2273 = vmatpush1.xpose.msra.mxu0 0.0
        %2274 = vmatprep.subr.mxu0 0.0
        %2275 = vmatpush1.xpose.msra.mxu0 %v2244
        %2276 = vmatprep.subr.mxu0 0.0
        %2277 = vmatpush1.xpose.msra.mxu0 %v2241
        %2278 = vmatprep.subr.mxu0 0.0
        %2279 = vmatpush2.xpose.msra.mxu0 0.0
        %2280 = vmatprep.subr.mxu0 0.0
        %2281 = vmatpush2.xpose.msra.mxu0 0.0
        %2282 = vmatprep.subr.mxu0 0.0
        %2283 = vmatpush2.xpose.msra.mxu0 0.0
        %2284 = vmatprep.subr.mxu0 0.0
        %2285 = vmatpush2.xpose.msra.mxu0 0.0
        %2286 = vmatprep.subr.mxu0 0.0
        %2287 = vmatpush2.xpose.msra.mxu0 0.0
        %2288 = vmatprep.subr.mxu0 0.0
        %2289 = vmatpush2.xpose.msra.mxu0 0.0
        %2290 = vmatprep.subr.mxu0 0.0
        %2291 = vmatpush2.xpose.msra.mxu0 0.0
        %2292 = vmatprep.subr.mxu0 0.0
        %2293 = vmatpush2.xpose.msra.mxu0 0.0
        %2294 = vmatprep.subr.mxu0 0.0
        %2295 = vmatpush2.xpose.msra.mxu0 0.0
        %2296 = vmatprep.subr.mxu0 0.0
        %2297 = vmatpush2.xpose.msra.mxu0 0.0
        %2298 = vmatprep.subr.mxu0 0.0
        %2299 = vmatpush2.xpose.msra.mxu0 0.0
        %2300 = vmatprep.subr.mxu0 0.0
        %2301 = vmatpush2.xpose.msra.mxu0 0.0
        %2302 = vmatprep.subr.mxu0 0.0
        %2303 = vmatpush2.xpose.msra.mxu0 0.0
        %2304 = vmatprep.subr.mxu0 0.0
        %2305 = vmatpush2.xpose.msra.mxu0 0.0
        %2306 = vmatprep.subr.mxu0 0.0
        %2307 = vmatpush2.xpose.msra.mxu0 0.0
        %2308 = vmatprep.subr.mxu0 0.0
        %2309 = vmatpush2.xpose.msra.mxu0 0.0
        %2310 = vmatprep.mubr.f32.mxu0 0.0
        %2311 = vmatmul.mubr.f32.gmra.mxu0 %v2238
        %v2312 = vpop.f32.mrf.mxu0
        %v2313 = vadd.f32 0.0, %v2312
        %v2314 = vpop.f32.mrf.mxu0
        %2315 = vdwg.mxu0
        %v2316 = vmul.f32 %v2313, 0.35355338
        %v2317 = vld [vmem:[%s684] sm:$0x1]
        %v2319 = vlaneseq
        %v2320 = vshrl.u32 %v2319, 7
        %v2321 = vsub.s32 0, %v2320
        %v2322 = vrot.slane %v2317, %v2321
        %v2324 = vadd.f32 %v2316, %v2322
        %vm2325 = vcmask 130048
        %v2326 = vsel %vm2325, %v2324, -inf
        %2327 = vmax.xlane.f32.xlu0 %v2326
        %v2328 = vpop.xlane.xlu0 %2327
        %v2329 = vsub.f32 %v2324, %v2328
        %v2330 = vmul.f32 %v2329, 1.442695
        %v2331 = vpow.pop %v2330
        %v2332 = vsel %vm2325, %v2331, 0.0
        %2333 = vadd.xlane.f32.xlu0 %v2332
        %v2334 = vpop.xlane.xlu0 %2333
        %v2335 = vrcp.pop %v2334
        %v2336 = vmul.f32 %v2331, %v2335
        %v2338 = vsel %vm2325, %v2336, 0
        %2340 = vmatprep.subr.mxu0 0.0
        %2341 = vmatpush1.msra.mxu0 0.0
        %2342 = vmatprep.subr.mxu0 0.0
        %2343 = vmatpush1.msra.mxu0 0.0
        %2344 = vmatprep.subr.mxu0 0.0
        %2345 = vmatpush1.msra.mxu0 0.0
        %2346 = vmatprep.subr.mxu0 0.0
        %2347 = vmatpush1.msra.mxu0 0.0
        %2348 = vmatprep.subr.mxu0 0.0
        %2349 = vmatpush1.msra.mxu0 0.0
        %2350 = vmatprep.subr.mxu0 0.0
        %2351 = vmatpush1.msra.mxu0 0.0
        %2352 = vmatprep.subr.mxu0 0.0
        %2353 = vmatpush1.msra.mxu0 0.0
        %2354 = vmatprep.subr.mxu0 0.0
        %2355 = vmatpush1.msra.mxu0 0.0
        %2356 = vmatprep.subr.mxu0 0.0
        %2357 = vmatpush1.msra.mxu0 0.0
        %2358 = vmatprep.subr.mxu0 0.0
        %2359 = vmatpush1.msra.mxu0 0.0
        %2360 = vmatprep.subr.mxu0 0.0
        %2361 = vmatpush1.msra.mxu0 0.0
        %2362 = vmatprep.subr.mxu0 0.0
        %2363 = vmatpush1.msra.mxu0 0.0
        %2364 = vmatprep.subr.mxu0 0.0
        %2365 = vmatpush1.msra.mxu0 0.0
        %2366 = vmatprep.subr.mxu0 0.0
        %2367 = vmatpush1.msra.mxu0 0.0
        %2368 = vmatprep.subr.mxu0 0.0
        %2369 = vmatpush1.msra.mxu0 %v2229
        %2370 = vmatprep.subr.mxu0 0.0
        %2371 = vmatpush1.msra.mxu0 %v2224
        %2372 = vmatprep.subr.mxu0 0.0
        %2373 = vmatpush2.msra.mxu0 0.0
        %2374 = vmatprep.subr.mxu0 0.0
        %2375 = vmatpush2.msra.mxu0 0.0
        %2376 = vmatprep.subr.mxu0 0.0
        %2377 = vmatpush2.msra.mxu0 0.0
        %2378 = vmatprep.subr.mxu0 0.0
        %2379 = vmatpush2.msra.mxu0 0.0
        %2380 = vmatprep.subr.mxu0 0.0
        %2381 = vmatpush2.msra.mxu0 0.0
        %2382 = vmatprep.subr.mxu0 0.0
        %2383 = vmatpush2.msra.mxu0 0.0
        %2384 = vmatprep.subr.mxu0 0.0
        %2385 = vmatpush2.msra.mxu0 0.0
        %2386 = vmatprep.subr.mxu0 0.0
        %2387 = vmatpush2.msra.mxu0 0.0
        %2388 = vmatprep.subr.mxu0 0.0
        %2389 = vmatpush2.msra.mxu0 0.0
        %2390 = vmatprep.subr.mxu0 0.0
        %2391 = vmatpush2.msra.mxu0 0.0
        %2392 = vmatprep.subr.mxu0 0.0
        %2393 = vmatpush2.msra.mxu0 0.0
        %2394 = vmatprep.subr.mxu0 0.0
        %2395 = vmatpush2.msra.mxu0 0.0
        %2396 = vmatprep.subr.mxu0 0.0
        %2397 = vmatpush2.msra.mxu0 0.0
        %2398 = vmatprep.subr.mxu0 0.0
        %2399 = vmatpush2.msra.mxu0 0.0
        %2400 = vmatprep.subr.mxu0 0.0
        %2401 = vmatpush2.msra.mxu0 0.0
        %2402 = vmatprep.subr.mxu0 0.0
        %2403 = vmatpush2.msra.mxu0 0.0
        %2404 = vmatprep.mubr.f32.mxu0 0.0
        %2405 = vmatmul.mubr.f32.gmra.mxu0 %v2338
        %v2406 = vpop.f32.mrf.mxu0
        %v2407 = vadd.f32 0.0, %v2406
        %v2408 = vpop.f32.mrf.mxu0
        %2409 = vdwg.mxu0
        %2410 = vrot.lane.b32.xlu0 %v2049, 120
        %v2411 = vpop.permute.xlu0 %2410
        %2412 = vrot.lane.b32.xlu0 %v2134, 120
        %v2413 = vpop.permute.xlu0 %2412
        %2414 = vrot.lane.b32.xlu0 %v2139, 120
        %v2415 = vpop.permute.xlu0 %2414
        %v2416 = vsel %vm984, %v2411, 0
        %v2418 = vsel %vm984, %v2413, 0
        %v2420 = vsel %vm984, %v2415, 0
        %2422 = vmatprep.subr.mxu0 0.0
        %2423 = vmatpush1.xpose.msra.mxu0 0.0
        %2424 = vmatprep.subr.mxu0 0.0
        %2425 = vmatpush1.xpose.msra.mxu0 0.0
        %2426 = vmatprep.subr.mxu0 0.0
        %2427 = vmatpush1.xpose.msra.mxu0 0.0
        %2428 = vmatprep.subr.mxu0 0.0
        %2429 = vmatpush1.xpose.msra.mxu0 0.0
        %2430 = vmatprep.subr.mxu0 0.0
        %2431 = vmatpush1.xpose.msra.mxu0 0.0
        %2432 = vmatprep.subr.mxu0 0.0
        %2433 = vmatpush1.xpose.msra.mxu0 0.0
        %2434 = vmatprep.subr.mxu0 0.0
        %2435 = vmatpush1.xpose.msra.mxu0 0.0
        %2436 = vmatprep.subr.mxu0 0.0
        %2437 = vmatpush1.xpose.msra.mxu0 0.0
        %2438 = vmatprep.subr.mxu0 0.0
        %2439 = vmatpush1.xpose.msra.mxu0 0.0
        %2440 = vmatprep.subr.mxu0 0.0
        %2441 = vmatpush1.xpose.msra.mxu0 0.0
        %2442 = vmatprep.subr.mxu0 0.0
        %2443 = vmatpush1.xpose.msra.mxu0 0.0
        %2444 = vmatprep.subr.mxu0 0.0
        %2445 = vmatpush1.xpose.msra.mxu0 0.0
        %2446 = vmatprep.subr.mxu0 0.0
        %2447 = vmatpush1.xpose.msra.mxu0 0.0
        %2448 = vmatprep.subr.mxu0 0.0
        %2449 = vmatpush1.xpose.msra.mxu0 0.0
        %2450 = vmatprep.subr.mxu0 0.0
        %2451 = vmatpush1.xpose.msra.mxu0 %v2420
        %2452 = vmatprep.subr.mxu0 0.0
        %2453 = vmatpush1.xpose.msra.mxu0 %v2418
        %2454 = vmatprep.subr.mxu0 0.0
        %2455 = vmatpush2.xpose.msra.mxu0 0.0
        %2456 = vmatprep.subr.mxu0 0.0
        %2457 = vmatpush2.xpose.msra.mxu0 0.0
        %2458 = vmatprep.subr.mxu0 0.0
        %2459 = vmatpush2.xpose.msra.mxu0 0.0
        %2460 = vmatprep.subr.mxu0 0.0
        %2461 = vmatpush2.xpose.msra.mxu0 0.0
        %2462 = vmatprep.subr.mxu0 0.0
        %2463 = vmatpush2.xpose.msra.mxu0 0.0
        %2464 = vmatprep.subr.mxu0 0.0
        %2465 = vmatpush2.xpose.msra.mxu0 0.0
        %2466 = vmatprep.subr.mxu0 0.0
        %2467 = vmatpush2.xpose.msra.mxu0 0.0
        %2468 = vmatprep.subr.mxu0 0.0
        %2469 = vmatpush2.xpose.msra.mxu0 0.0
        %2470 = vmatprep.subr.mxu0 0.0
        %2471 = vmatpush2.xpose.msra.mxu0 0.0
        %2472 = vmatprep.subr.mxu0 0.0
        %2473 = vmatpush2.xpose.msra.mxu0 0.0
        %2474 = vmatprep.subr.mxu0 0.0
        %2475 = vmatpush2.xpose.msra.mxu0 0.0
        %2476 = vmatprep.subr.mxu0 0.0
        %2477 = vmatpush2.xpose.msra.mxu0 0.0
        %2478 = vmatprep.subr.mxu0 0.0
        %2479 = vmatpush2.xpose.msra.mxu0 0.0
        %2480 = vmatprep.subr.mxu0 0.0
        %2481 = vmatpush2.xpose.msra.mxu0 0.0
        %2482 = vmatprep.subr.mxu0 0.0
        %2483 = vmatpush2.xpose.msra.mxu0 0.0
        %2484 = vmatprep.subr.mxu0 0.0
        %2485 = vmatpush2.xpose.msra.mxu0 0.0
        %2486 = vmatprep.mubr.f32.mxu0 0.0
        %2487 = vmatmul.mubr.f32.gmra.mxu0 %v2416
        %v2488 = vpop.f32.mrf.mxu0
        %v2489 = vadd.f32 0.0, %v2488
        %v2490 = vpop.f32.mrf.mxu0
        %2491 = vdwg.mxu0
        %v2492 = vmul.f32 %v2489, 0.35355338
        %v2493 = vadd.f32 %v2492, %v2322
        %v2494 = vsel %vm2325, %v2493, -inf
        %2495 = vmax.xlane.f32.xlu0 %v2494
        %v2496 = vpop.xlane.xlu0 %2495
        %v2497 = vsub.f32 %v2493, %v2496
        %v2498 = vmul.f32 %v2497, 1.442695
        %v2499 = vpow.pop %v2498
        %v2500 = vsel %vm2325, %v2499, 0.0
        %2501 = vadd.xlane.f32.xlu0 %v2500
        %v2502 = vpop.xlane.xlu0 %2501
        %v2503 = vrcp.pop %v2502
        %v2504 = vmul.f32 %v2499, %v2503
        %2507 = vrot.lane.b32.xlu0 %v2224, 120
        %v2508 = vpop.permute.xlu0 %2507
        %2509 = vrot.lane.b32.xlu0 %v2229, 120
        %v2510 = vpop.permute.xlu0 %2509
        %v2514 = vsel %vm2325, %v2504, 0
        %2516 = vmatprep.subr.mxu0 0.0
        %2517 = vmatpush1.msra.mxu0 0.0
        %2518 = vmatprep.subr.mxu0 0.0
        %2519 = vmatpush1.msra.mxu0 0.0
        %2520 = vmatprep.subr.mxu0 0.0
        %2521 = vmatpush1.msra.mxu0 0.0
        %2522 = vmatprep.subr.mxu0 0.0
        %2523 = vmatpush1.msra.mxu0 0.0
        %2524 = vmatprep.subr.mxu0 0.0
        %2525 = vmatpush1.msra.mxu0 0.0
        %2526 = vmatprep.subr.mxu0 0.0
        %2527 = vmatpush1.msra.mxu0 0.0
        %2528 = vmatprep.subr.mxu0 0.0
        %2529 = vmatpush1.msra.mxu0 0.0
        %2530 = vmatprep.subr.mxu0 0.0
        %2531 = vmatpush1.msra.mxu0 0.0
        %2532 = vmatprep.subr.mxu0 0.0
        %2533 = vmatpush1.msra.mxu0 0.0
        %2534 = vmatprep.subr.mxu0 0.0
        %2535 = vmatpush1.msra.mxu0 0.0
        %2536 = vmatprep.subr.mxu0 0.0
        %2537 = vmatpush1.msra.mxu0 0.0
        %2538 = vmatprep.subr.mxu0 0.0
        %2539 = vmatpush1.msra.mxu0 0.0
        %2540 = vmatprep.subr.mxu0 0.0
        %2541 = vmatpush1.msra.mxu0 0.0
        %2542 = vmatprep.subr.mxu0 0.0
        %2543 = vmatpush1.msra.mxu0 0.0
        %2544 = vmatprep.subr.mxu0 0.0
        %2545 = vmatpush1.msra.mxu0 %v2510
        %2546 = vmatprep.subr.mxu0 0.0
        %2547 = vmatpush1.msra.mxu0 %v2508
        %2548 = vmatprep.subr.mxu0 0.0
        %2549 = vmatpush2.msra.mxu0 0.0
        %2550 = vmatprep.subr.mxu0 0.0
        %2551 = vmatpush2.msra.mxu0 0.0
        %2552 = vmatprep.subr.mxu0 0.0
        %2553 = vmatpush2.msra.mxu0 0.0
        %2554 = vmatprep.subr.mxu0 0.0
        %2555 = vmatpush2.msra.mxu0 0.0
        %2556 = vmatprep.subr.mxu0 0.0
        %2557 = vmatpush2.msra.mxu0 0.0
        %2558 = vmatprep.subr.mxu0 0.0
        %2559 = vmatpush2.msra.mxu0 0.0
        %2560 = vmatprep.subr.mxu0 0.0
        %2561 = vmatpush2.msra.mxu0 0.0
        %2562 = vmatprep.subr.mxu0 0.0
        %2563 = vmatpush2.msra.mxu0 0.0
        %2564 = vmatprep.subr.mxu0 0.0
        %2565 = vmatpush2.msra.mxu0 0.0
        %2566 = vmatprep.subr.mxu0 0.0
        %2567 = vmatpush2.msra.mxu0 0.0
        %2568 = vmatprep.subr.mxu0 0.0
        %2569 = vmatpush2.msra.mxu0 0.0
        %2570 = vmatprep.subr.mxu0 0.0
        %2571 = vmatpush2.msra.mxu0 0.0
        %2572 = vmatprep.subr.mxu0 0.0
        %2573 = vmatpush2.msra.mxu0 0.0
        %2574 = vmatprep.subr.mxu0 0.0
        %2575 = vmatpush2.msra.mxu0 0.0
        %2576 = vmatprep.subr.mxu0 0.0
        %2577 = vmatpush2.msra.mxu0 0.0
        %2578 = vmatprep.subr.mxu0 0.0
        %2579 = vmatpush2.msra.mxu0 0.0
        %2580 = vmatprep.mubr.f32.mxu0 0.0
        %2581 = vmatmul.mubr.f32.gmra.mxu0 %v2514
        %v2582 = vpop.f32.mrf.mxu0
        %v2583 = vadd.f32 0.0, %v2582
        %v2584 = vpop.f32.mrf.mxu0
        %2585 = vdwg.mxu0
        %v2587 = vsel %vm984, %v2583, 0
        %2589 = vmatprep.subr.mxu0 0.0
        %2590 = vmatpush1.msra.mxu0 0.0
        %2591 = vmatprep.subr.mxu0 0.0
        %2592 = vmatpush1.msra.mxu0 0.0
        %2593 = vmatprep.subr.mxu0 0.0
        %2594 = vmatpush1.msra.mxu0 0.0
        %2595 = vmatprep.subr.mxu0 0.0
        %2596 = vmatpush1.msra.mxu0 0.0
        %2597 = vmatprep.subr.mxu0 0.0
        %2598 = vmatpush1.msra.mxu0 0.0
        %2599 = vmatprep.subr.mxu0 0.0
        %2600 = vmatpush1.msra.mxu0 0.0
        %2601 = vmatprep.subr.mxu0 0.0
        %2602 = vmatpush1.msra.mxu0 0.0
        %2603 = vmatprep.subr.mxu0 0.0
        %2604 = vmatpush1.msra.mxu0 0.0
        %2605 = vmatprep.subr.mxu0 0.0
        %2606 = vmatpush1.msra.mxu0 0.0
        %2607 = vmatprep.subr.mxu0 0.0
        %2608 = vmatpush1.msra.mxu0 0.0
        %2609 = vmatprep.subr.mxu0 0.0
        %2610 = vmatpush1.msra.mxu0 0.0
        %2611 = vmatprep.subr.mxu0 0.0
        %2612 = vmatpush1.msra.mxu0 0.0
        %2613 = vmatprep.subr.mxu0 0.0
        %2614 = vmatpush1.msra.mxu0 0.0
        %2615 = vmatprep.subr.mxu0 0.0
        %2616 = vmatpush1.msra.mxu0 0.0
        %2617 = vmatprep.subr.mxu0 0.0
        %2618 = vmatpush1.msra.mxu0 0.0
        %2619 = vmatprep.subr.mxu0 0.0
        %2620 = vmatpush1.msra.mxu0 %v2234
        %2621 = vmatprep.subr.mxu0 0.0
        %2622 = vmatpush2.msra.mxu0 0.0
        %2623 = vmatprep.subr.mxu0 0.0
        %2624 = vmatpush2.msra.mxu0 0.0
        %2625 = vmatprep.subr.mxu0 0.0
        %2626 = vmatpush2.msra.mxu0 0.0
        %2627 = vmatprep.subr.mxu0 0.0
        %2628 = vmatpush2.msra.mxu0 0.0
        %2629 = vmatprep.subr.mxu0 0.0
        %2630 = vmatpush2.msra.mxu0 0.0
        %2631 = vmatprep.subr.mxu0 0.0
        %2632 = vmatpush2.msra.mxu0 0.0
        %2633 = vmatprep.subr.mxu0 0.0
        %2634 = vmatpush2.msra.mxu0 0.0
        %2635 = vmatprep.subr.mxu0 0.0
        %2636 = vmatpush2.msra.mxu0 0.0
        %2637 = vmatprep.subr.mxu0 0.0
        %2638 = vmatpush2.msra.mxu0 0.0
        %2639 = vmatprep.subr.mxu0 0.0
        %2640 = vmatpush2.msra.mxu0 0.0
        %2641 = vmatprep.subr.mxu0 0.0
        %2642 = vmatpush2.msra.mxu0 0.0
        %2643 = vmatprep.subr.mxu0 0.0
        %2644 = vmatpush2.msra.mxu0 0.0
        %2645 = vmatprep.subr.mxu0 0.0
        %2646 = vmatpush2.msra.mxu0 0.0
        %2647 = vmatprep.subr.mxu0 0.0
        %2648 = vmatpush2.msra.mxu0 0.0
        %2649 = vmatprep.subr.mxu0 0.0
        %2650 = vmatpush2.msra.mxu0 0.0
        %2651 = vmatprep.subr.mxu0 0.0
        %2652 = vmatpush2.msra.mxu0 0.0
        %2653 = vmatprep.mubr.f32.mxu0 0.0
        %2654 = vmatmul.mubr.f32.gmra.mxu0 %v2587
        %v2655 = vpop.f32.mrf.mxu0
        %v2656 = vadd.f32 0.0, %v2655
        %v2657 = vpop.f32.mrf.mxu0
        %2658 = vdwg.mxu0
        %v2660 = vsel %vm984, %v2407, 0
        %2662 = vmatprep.subr.mxu0 0.0
        %2663 = vmatpush1.msra.mxu0 0.0
        %2664 = vmatprep.subr.mxu0 0.0
        %2665 = vmatpush1.msra.mxu0 0.0
        %2666 = vmatprep.subr.mxu0 0.0
        %2667 = vmatpush1.msra.mxu0 0.0
        %2668 = vmatprep.subr.mxu0 0.0
        %2669 = vmatpush1.msra.mxu0 0.0
        %2670 = vmatprep.subr.mxu0 0.0
        %2671 = vmatpush1.msra.mxu0 0.0
        %2672 = vmatprep.subr.mxu0 0.0
        %2673 = vmatpush1.msra.mxu0 0.0
        %2674 = vmatprep.subr.mxu0 0.0
        %2675 = vmatpush1.msra.mxu0 0.0
        %2676 = vmatprep.subr.mxu0 0.0
        %2677 = vmatpush1.msra.mxu0 0.0
        %2678 = vmatprep.subr.mxu0 0.0
        %2679 = vmatpush1.msra.mxu0 0.0
        %2680 = vmatprep.subr.mxu0 0.0
        %2681 = vmatpush1.msra.mxu0 0.0
        %2682 = vmatprep.subr.mxu0 0.0
        %2683 = vmatpush1.msra.mxu0 0.0
        %2684 = vmatprep.subr.mxu0 0.0
        %2685 = vmatpush1.msra.mxu0 0.0
        %2686 = vmatprep.subr.mxu0 0.0
        %2687 = vmatpush1.msra.mxu0 0.0
        %2688 = vmatprep.subr.mxu0 0.0
        %2689 = vmatpush1.msra.mxu0 0.0
        %2690 = vmatprep.subr.mxu0 0.0
        %2691 = vmatpush1.msra.mxu0 0.0
        %2692 = vmatprep.subr.mxu0 0.0
        %2693 = vmatpush1.msra.mxu0 %v2233
        %2694 = vmatprep.subr.mxu0 0.0
        %2695 = vmatpush2.msra.mxu0 0.0
        %2696 = vmatprep.subr.mxu0 0.0
        %2697 = vmatpush2.msra.mxu0 0.0
        %2698 = vmatprep.subr.mxu0 0.0
        %2699 = vmatpush2.msra.mxu0 0.0
        %2700 = vmatprep.subr.mxu0 0.0
        %2701 = vmatpush2.msra.mxu0 0.0
        %2702 = vmatprep.subr.mxu0 0.0
        %2703 = vmatpush2.msra.mxu0 0.0
        %2704 = vmatprep.subr.mxu0 0.0
        %2705 = vmatpush2.msra.mxu0 0.0
        %2706 = vmatprep.subr.mxu0 0.0
        %2707 = vmatpush2.msra.mxu0 0.0
        %2708 = vmatprep.subr.mxu0 0.0
        %2709 = vmatpush2.msra.mxu0 0.0
        %2710 = vmatprep.subr.mxu0 0.0
        %2711 = vmatpush2.msra.mxu0 0.0
        %2712 = vmatprep.subr.mxu0 0.0
        %2713 = vmatpush2.msra.mxu0 0.0
        %2714 = vmatprep.subr.mxu0 0.0
        %2715 = vmatpush2.msra.mxu0 0.0
        %2716 = vmatprep.subr.mxu0 0.0
        %2717 = vmatpush2.msra.mxu0 0.0
        %2718 = vmatprep.subr.mxu0 0.0
        %2719 = vmatpush2.msra.mxu0 0.0
        %2720 = vmatprep.subr.mxu0 0.0
        %2721 = vmatpush2.msra.mxu0 0.0
        %2722 = vmatprep.subr.mxu0 0.0
        %2723 = vmatpush2.msra.mxu0 0.0
        %2724 = vmatprep.subr.mxu0 0.0
        %2725 = vmatpush2.msra.mxu0 0.0
        %2726 = vmatprep.mubr.f32.mxu0 0.0
        %2727 = vmatmul.mubr.f32.gmra.mxu0 %v2660
        %v2728 = vpop.f32.mrf.mxu0
        %v2729 = vadd.f32 %v2656, %v2728
        %v2730 = vpop.f32.mrf.mxu0
        %2731 = vdwg.mxu0
        %2732 = vrot.lane.b32.xlu0 %v2049, 112
        %v2733 = vpop.permute.xlu0 %2732
        %2734 = vrot.lane.b32.xlu0 %v2134, 112
        %v2735 = vpop.permute.xlu0 %2734
        %2736 = vrot.lane.b32.xlu0 %v2139, 112
        %v2737 = vpop.permute.xlu0 %2736
        %v2738 = vsel %vm984, %v2733, 0
        %v2740 = vsel %vm984, %v2735, 0
        %v2742 = vsel %vm984, %v2737, 0
        %2744 = vmatprep.subr.mxu0 0.0
        %2745 = vmatpush1.xpose.msra.mxu0 0.0
        %2746 = vmatprep.subr.mxu0 0.0
        %2747 = vmatpush1.xpose.msra.mxu0 0.0
        %2748 = vmatprep.subr.mxu0 0.0
        %2749 = vmatpush1.xpose.msra.mxu0 0.0
        %2750 = vmatprep.subr.mxu0 0.0
        %2751 = vmatpush1.xpose.msra.mxu0 0.0
        %2752 = vmatprep.subr.mxu0 0.0
        %2753 = vmatpush1.xpose.msra.mxu0 0.0
        %2754 = vmatprep.subr.mxu0 0.0
        %2755 = vmatpush1.xpose.msra.mxu0 0.0
        %2756 = vmatprep.subr.mxu0 0.0
        %2757 = vmatpush1.xpose.msra.mxu0 0.0
        %2758 = vmatprep.subr.mxu0 0.0
        %2759 = vmatpush1.xpose.msra.mxu0 0.0
        %2760 = vmatprep.subr.mxu0 0.0
        %2761 = vmatpush1.xpose.msra.mxu0 0.0
        %2762 = vmatprep.subr.mxu0 0.0
        %2763 = vmatpush1.xpose.msra.mxu0 0.0
        %2764 = vmatprep.subr.mxu0 0.0
        %2765 = vmatpush1.xpose.msra.mxu0 0.0
        %2766 = vmatprep.subr.mxu0 0.0
        %2767 = vmatpush1.xpose.msra.mxu0 0.0
        %2768 = vmatprep.subr.mxu0 0.0
        %2769 = vmatpush1.xpose.msra.mxu0 0.0
        %2770 = vmatprep.subr.mxu0 0.0
        %2771 = vmatpush1.xpose.msra.mxu0 0.0
        %2772 = vmatprep.subr.mxu0 0.0
        %2773 = vmatpush1.xpose.msra.mxu0 %v2742
        %2774 = vmatprep.subr.mxu0 0.0
        %2775 = vmatpush1.xpose.msra.mxu0 %v2740
        %2776 = vmatprep.subr.mxu0 0.0
        %2777 = vmatpush2.xpose.msra.mxu0 0.0
        %2778 = vmatprep.subr.mxu0 0.0
        %2779 = vmatpush2.xpose.msra.mxu0 0.0
        %2780 = vmatprep.subr.mxu0 0.0
        %2781 = vmatpush2.xpose.msra.mxu0 0.0
        %2782 = vmatprep.subr.mxu0 0.0
        %2783 = vmatpush2.xpose.msra.mxu0 0.0
        %2784 = vmatprep.subr.mxu0 0.0
        %2785 = vmatpush2.xpose.msra.mxu0 0.0
        %2786 = vmatprep.subr.mxu0 0.0
        %2787 = vmatpush2.xpose.msra.mxu0 0.0
        %2788 = vmatprep.subr.mxu0 0.0
        %2789 = vmatpush2.xpose.msra.mxu0 0.0
        %2790 = vmatprep.subr.mxu0 0.0
        %2791 = vmatpush2.xpose.msra.mxu0 0.0
        %2792 = vmatprep.subr.mxu0 0.0
        %2793 = vmatpush2.xpose.msra.mxu0 0.0
        %2794 = vmatprep.subr.mxu0 0.0
        %2795 = vmatpush2.xpose.msra.mxu0 0.0
        %2796 = vmatprep.subr.mxu0 0.0
        %2797 = vmatpush2.xpose.msra.mxu0 0.0
        %2798 = vmatprep.subr.mxu0 0.0
        %2799 = vmatpush2.xpose.msra.mxu0 0.0
        %2800 = vmatprep.subr.mxu0 0.0
        %2801 = vmatpush2.xpose.msra.mxu0 0.0
        %2802 = vmatprep.subr.mxu0 0.0
        %2803 = vmatpush2.xpose.msra.mxu0 0.0
        %2804 = vmatprep.subr.mxu0 0.0
        %2805 = vmatpush2.xpose.msra.mxu0 0.0
        %2806 = vmatprep.subr.mxu0 0.0
        %2807 = vmatpush2.xpose.msra.mxu0 0.0
        %2808 = vmatprep.mubr.f32.mxu0 0.0
        %2809 = vmatmul.mubr.f32.gmra.mxu0 %v2738
        %v2810 = vpop.f32.mrf.mxu0
        %v2811 = vadd.f32 0.0, %v2810
        %v2812 = vpop.f32.mrf.mxu0
        %2813 = vdwg.mxu0
        %v2814 = vmul.f32 %v2811, 0.35355338
        %v2815 = vadd.f32 %v2814, %v2322
        %v2816 = vsel %vm2325, %v2815, -inf
        %2817 = vmax.xlane.f32.xlu0 %v2816
        %v2818 = vpop.xlane.xlu0 %2817
        %v2819 = vsub.f32 %v2815, %v2818
        %v2820 = vmul.f32 %v2819, 1.442695
        %v2821 = vpow.pop %v2820
        %v2822 = vsel %vm2325, %v2821, 0.0
        %2823 = vadd.xlane.f32.xlu0 %v2822
        %v2824 = vpop.xlane.xlu0 %2823
        %v2825 = vrcp.pop %v2824
        %v2826 = vmul.f32 %v2821, %v2825
        %2827 = vrot.lane.b32.xlu0 %v2224, 112
        %v2828 = vpop.permute.xlu0 %2827
        %2829 = vrot.lane.b32.xlu0 %v2229, 112
        %v2830 = vpop.permute.xlu0 %2829
        %v2834 = vsel %vm2325, %v2826, 0
        %2836 = vmatprep.subr.mxu0 0.0
        %2837 = vmatpush1.msra.mxu0 0.0
        %2838 = vmatprep.subr.mxu0 0.0
        %2839 = vmatpush1.msra.mxu0 0.0
        %2840 = vmatprep.subr.mxu0 0.0
        %2841 = vmatpush1.msra.mxu0 0.0
        %2842 = vmatprep.subr.mxu0 0.0
        %2843 = vmatpush1.msra.mxu0 0.0
        %2844 = vmatprep.subr.mxu0 0.0
        %2845 = vmatpush1.msra.mxu0 0.0
        %2846 = vmatprep.subr.mxu0 0.0
        %2847 = vmatpush1.msra.mxu0 0.0
        %2848 = vmatprep.subr.mxu0 0.0
        %2849 = vmatpush1.msra.mxu0 0.0
        %2850 = vmatprep.subr.mxu0 0.0
        %2851 = vmatpush1.msra.mxu0 0.0
        %2852 = vmatprep.subr.mxu0 0.0
        %2853 = vmatpush1.msra.mxu0 0.0
        %2854 = vmatprep.subr.mxu0 0.0
        %2855 = vmatpush1.msra.mxu0 0.0
        %2856 = vmatprep.subr.mxu0 0.0
        %2857 = vmatpush1.msra.mxu0 0.0
        %2858 = vmatprep.subr.mxu0 0.0
        %2859 = vmatpush1.msra.mxu0 0.0
        %2860 = vmatprep.subr.mxu0 0.0
        %2861 = vmatpush1.msra.mxu0 0.0
        %2862 = vmatprep.subr.mxu0 0.0
        %2863 = vmatpush1.msra.mxu0 0.0
        %2864 = vmatprep.subr.mxu0 0.0
        %2865 = vmatpush1.msra.mxu0 %v2830
        %2866 = vmatprep.subr.mxu0 0.0
        %2867 = vmatpush1.msra.mxu0 %v2828
        %2868 = vmatprep.subr.mxu0 0.0
        %2869 = vmatpush2.msra.mxu0 0.0
        %2870 = vmatprep.subr.mxu0 0.0
        %2871 = vmatpush2.msra.mxu0 0.0
        %2872 = vmatprep.subr.mxu0 0.0
        %2873 = vmatpush2.msra.mxu0 0.0
        %2874 = vmatprep.subr.mxu0 0.0
        %2875 = vmatpush2.msra.mxu0 0.0
        %2876 = vmatprep.subr.mxu0 0.0
        %2877 = vmatpush2.msra.mxu0 0.0
        %2878 = vmatprep.subr.mxu0 0.0
        %2879 = vmatpush2.msra.mxu0 0.0
        %2880 = vmatprep.subr.mxu0 0.0
        %2881 = vmatpush2.msra.mxu0 0.0
        %2882 = vmatprep.subr.mxu0 0.0
        %2883 = vmatpush2.msra.mxu0 0.0
        %2884 = vmatprep.subr.mxu0 0.0
        %2885 = vmatpush2.msra.mxu0 0.0
        %2886 = vmatprep.subr.mxu0 0.0
        %2887 = vmatpush2.msra.mxu0 0.0
        %2888 = vmatprep.subr.mxu0 0.0
        %2889 = vmatpush2.msra.mxu0 0.0
        %2890 = vmatprep.subr.mxu0 0.0
        %2891 = vmatpush2.msra.mxu0 0.0
        %2892 = vmatprep.subr.mxu0 0.0
        %2893 = vmatpush2.msra.mxu0 0.0
        %2894 = vmatprep.subr.mxu0 0.0
        %2895 = vmatpush2.msra.mxu0 0.0
        %2896 = vmatprep.subr.mxu0 0.0
        %2897 = vmatpush2.msra.mxu0 0.0
        %2898 = vmatprep.subr.mxu0 0.0
        %2899 = vmatpush2.msra.mxu0 0.0
        %2900 = vmatprep.mubr.f32.mxu0 0.0
        %2901 = vmatmul.mubr.f32.gmra.mxu0 %v2834
        %v2902 = vpop.f32.mrf.mxu0
        %v2903 = vadd.f32 0.0, %v2902
        %v2904 = vpop.f32.mrf.mxu0
        %2905 = vdwg.mxu0
        %v2907 = vsel %vm984, %v2903, 0
        %2909 = vmatprep.subr.mxu0 0.0
        %2910 = vmatpush1.msra.mxu0 0.0
        %2911 = vmatprep.subr.mxu0 0.0
        %2912 = vmatpush1.msra.mxu0 0.0
        %2913 = vmatprep.subr.mxu0 0.0
        %2914 = vmatpush1.msra.mxu0 0.0
        %2915 = vmatprep.subr.mxu0 0.0
        %2916 = vmatpush1.msra.mxu0 0.0
        %2917 = vmatprep.subr.mxu0 0.0
        %2918 = vmatpush1.msra.mxu0 0.0
        %2919 = vmatprep.subr.mxu0 0.0
        %2920 = vmatpush1.msra.mxu0 0.0
        %2921 = vmatprep.subr.mxu0 0.0
        %2922 = vmatpush1.msra.mxu0 0.0
        %2923 = vmatprep.subr.mxu0 0.0
        %2924 = vmatpush1.msra.mxu0 0.0
        %2925 = vmatprep.subr.mxu0 0.0
        %2926 = vmatpush1.msra.mxu0 0.0
        %2927 = vmatprep.subr.mxu0 0.0
        %2928 = vmatpush1.msra.mxu0 0.0
        %2929 = vmatprep.subr.mxu0 0.0
        %2930 = vmatpush1.msra.mxu0 0.0
        %2931 = vmatprep.subr.mxu0 0.0
        %2932 = vmatpush1.msra.mxu0 0.0
        %2933 = vmatprep.subr.mxu0 0.0
        %2934 = vmatpush1.msra.mxu0 0.0
        %2935 = vmatprep.subr.mxu0 0.0
        %2936 = vmatpush1.msra.mxu0 0.0
        %2937 = vmatprep.subr.mxu0 0.0
        %2938 = vmatpush1.msra.mxu0 0.0
        %2939 = vmatprep.subr.mxu0 0.0
        %2940 = vmatpush1.msra.mxu0 %v2235
        %2941 = vmatprep.subr.mxu0 0.0
        %2942 = vmatpush2.msra.mxu0 0.0
        %2943 = vmatprep.subr.mxu0 0.0
        %2944 = vmatpush2.msra.mxu0 0.0
        %2945 = vmatprep.subr.mxu0 0.0
        %2946 = vmatpush2.msra.mxu0 0.0
        %2947 = vmatprep.subr.mxu0 0.0
        %2948 = vmatpush2.msra.mxu0 0.0
        %2949 = vmatprep.subr.mxu0 0.0
        %2950 = vmatpush2.msra.mxu0 0.0
        %2951 = vmatprep.subr.mxu0 0.0
        %2952 = vmatpush2.msra.mxu0 0.0
        %2953 = vmatprep.subr.mxu0 0.0
        %2954 = vmatpush2.msra.mxu0 0.0
        %2955 = vmatprep.subr.mxu0 0.0
        %2956 = vmatpush2.msra.mxu0 0.0
        %2957 = vmatprep.subr.mxu0 0.0
        %2958 = vmatpush2.msra.mxu0 0.0
        %2959 = vmatprep.subr.mxu0 0.0
        %2960 = vmatpush2.msra.mxu0 0.0
        %2961 = vmatprep.subr.mxu0 0.0
        %2962 = vmatpush2.msra.mxu0 0.0
        %2963 = vmatprep.subr.mxu0 0.0
        %2964 = vmatpush2.msra.mxu0 0.0
        %2965 = vmatprep.subr.mxu0 0.0
        %2966 = vmatpush2.msra.mxu0 0.0
        %2967 = vmatprep.subr.mxu0 0.0
        %2968 = vmatpush2.msra.mxu0 0.0
        %2969 = vmatprep.subr.mxu0 0.0
        %2970 = vmatpush2.msra.mxu0 0.0
        %2971 = vmatprep.subr.mxu0 0.0
        %2972 = vmatpush2.msra.mxu0 0.0
        %2973 = vmatprep.mubr.f32.mxu0 0.0
        %2974 = vmatmul.mubr.f32.gmra.mxu0 %v2907
        %v2975 = vpop.f32.mrf.mxu0
        %v2976 = vadd.f32 0.0, %v2975
        %v2977 = vpop.f32.mrf.mxu0
        %2978 = vdwg.mxu0
        %v2979 = vadd.f32 %v2729, %v2976
        %2980 = vrot.lane.b32.xlu0 %v2049, 104
        %v2981 = vpop.permute.xlu0 %2980
        %2982 = vrot.lane.b32.xlu0 %v2134, 104
        %v2983 = vpop.permute.xlu0 %2982
        %2984 = vrot.lane.b32.xlu0 %v2139, 104
        %v2985 = vpop.permute.xlu0 %2984
        %v2986 = vsel %vm984, %v2981, 0
        %v2988 = vsel %vm984, %v2983, 0
        %v2990 = vsel %vm984, %v2985, 0
        %2992 = vmatprep.subr.mxu0 0.0
        %2993 = vmatpush1.xpose.msra.mxu0 0.0
        %2994 = vmatprep.subr.mxu0 0.0
        %2995 = vmatpush1.xpose.msra.mxu0 0.0
        %2996 = vmatprep.subr.mxu0 0.0
        %2997 = vmatpush1.xpose.msra.mxu0 0.0
        %2998 = vmatprep.subr.mxu0 0.0
        %2999 = vmatpush1.xpose.msra.mxu0 0.0
        %3000 = vmatprep.subr.mxu0 0.0
        %3001 = vmatpush1.xpose.msra.mxu0 0.0
        %3002 = vmatprep.subr.mxu0 0.0
        %3003 = vmatpush1.xpose.msra.mxu0 0.0
        %3004 = vmatprep.subr.mxu0 0.0
        %3005 = vmatpush1.xpose.msra.mxu0 0.0
        %3006 = vmatprep.subr.mxu0 0.0
        %3007 = vmatpush1.xpose.msra.mxu0 0.0
        %3008 = vmatprep.subr.mxu0 0.0
        %3009 = vmatpush1.xpose.msra.mxu0 0.0
        %3010 = vmatprep.subr.mxu0 0.0
        %3011 = vmatpush1.xpose.msra.mxu0 0.0
        %3012 = vmatprep.subr.mxu0 0.0
        %3013 = vmatpush1.xpose.msra.mxu0 0.0
        %3014 = vmatprep.subr.mxu0 0.0
        %3015 = vmatpush1.xpose.msra.mxu0 0.0
        %3016 = vmatprep.subr.mxu0 0.0
        %3017 = vmatpush1.xpose.msra.mxu0 0.0
        %3018 = vmatprep.subr.mxu0 0.0
        %3019 = vmatpush1.xpose.msra.mxu0 0.0
        %3020 = vmatprep.subr.mxu0 0.0
        %3021 = vmatpush1.xpose.msra.mxu0 %v2990
        %3022 = vmatprep.subr.mxu0 0.0
        %3023 = vmatpush1.xpose.msra.mxu0 %v2988
        %3024 = vmatprep.subr.mxu0 0.0
        %3025 = vmatpush2.xpose.msra.mxu0 0.0
        %3026 = vmatprep.subr.mxu0 0.0
        %3027 = vmatpush2.xpose.msra.mxu0 0.0
        %3028 = vmatprep.subr.mxu0 0.0
        %3029 = vmatpush2.xpose.msra.mxu0 0.0
        %3030 = vmatprep.subr.mxu0 0.0
        %3031 = vmatpush2.xpose.msra.mxu0 0.0
        %3032 = vmatprep.subr.mxu0 0.0
        %3033 = vmatpush2.xpose.msra.mxu0 0.0
        %3034 = vmatprep.subr.mxu0 0.0
        %3035 = vmatpush2.xpose.msra.mxu0 0.0
        %3036 = vmatprep.subr.mxu0 0.0
        %3037 = vmatpush2.xpose.msra.mxu0 0.0
        %3038 = vmatprep.subr.mxu0 0.0
        %3039 = vmatpush2.xpose.msra.mxu0 0.0
        %3040 = vmatprep.subr.mxu0 0.0
        %3041 = vmatpush2.xpose.msra.mxu0 0.0
        %3042 = vmatprep.subr.mxu0 0.0
        %3043 = vmatpush2.xpose.msra.mxu0 0.0
        %3044 = vmatprep.subr.mxu0 0.0
        %3045 = vmatpush2.xpose.msra.mxu0 0.0
        %3046 = vmatprep.subr.mxu0 0.0
        %3047 = vmatpush2.xpose.msra.mxu0 0.0
        %3048 = vmatprep.subr.mxu0 0.0
        %3049 = vmatpush2.xpose.msra.mxu0 0.0
        %3050 = vmatprep.subr.mxu0 0.0
        %3051 = vmatpush2.xpose.msra.mxu0 0.0
        %3052 = vmatprep.subr.mxu0 0.0
        %3053 = vmatpush2.xpose.msra.mxu0 0.0
        %3054 = vmatprep.subr.mxu0 0.0
        %3055 = vmatpush2.xpose.msra.mxu0 0.0
        %3056 = vmatprep.mubr.f32.mxu0 0.0
        %3057 = vmatmul.mubr.f32.gmra.mxu0 %v2986
        %v3058 = vpop.f32.mrf.mxu0
        %v3059 = vadd.f32 0.0, %v3058
        %v3060 = vpop.f32.mrf.mxu0
        %3061 = vdwg.mxu0
        %v3062 = vmul.f32 %v3059, 0.35355338
        %v3063 = vadd.f32 %v3062, %v2322
        %v3064 = vsel %vm2325, %v3063, -inf
        %3065 = vmax.xlane.f32.xlu0 %v3064
        %v3066 = vpop.xlane.xlu0 %3065
        %v3067 = vsub.f32 %v3063, %v3066
        %v3068 = vmul.f32 %v3067, 1.442695
        %v3069 = vpow.pop %v3068
        %v3070 = vsel %vm2325, %v3069, 0.0
        %3071 = vadd.xlane.f32.xlu0 %v3070
        %v3072 = vpop.xlane.xlu0 %3071
        %v3073 = vrcp.pop %v3072
        %v3074 = vmul.f32 %v3069, %v3073
        %3075 = vrot.lane.b32.xlu0 %v2224, 104
        %v3076 = vpop.permute.xlu0 %3075
        %3077 = vrot.lane.b32.xlu0 %v2229, 104
        %v3078 = vpop.permute.xlu0 %3077
        %v3082 = vsel %vm2325, %v3074, 0
        %3084 = vmatprep.subr.mxu0 0.0
        %3085 = vmatpush1.msra.mxu0 0.0
        %3086 = vmatprep.subr.mxu0 0.0
        %3087 = vmatpush1.msra.mxu0 0.0
        %3088 = vmatprep.subr.mxu0 0.0
        %3089 = vmatpush1.msra.mxu0 0.0
        %3090 = vmatprep.subr.mxu0 0.0
        %3091 = vmatpush1.msra.mxu0 0.0
        %3092 = vmatprep.subr.mxu0 0.0
        %3093 = vmatpush1.msra.mxu0 0.0
        %3094 = vmatprep.subr.mxu0 0.0
        %3095 = vmatpush1.msra.mxu0 0.0
        %3096 = vmatprep.subr.mxu0 0.0
        %3097 = vmatpush1.msra.mxu0 0.0
        %3098 = vmatprep.subr.mxu0 0.0
        %3099 = vmatpush1.msra.mxu0 0.0
        %3100 = vmatprep.subr.mxu0 0.0
        %3101 = vmatpush1.msra.mxu0 0.0
        %3102 = vmatprep.subr.mxu0 0.0
        %3103 = vmatpush1.msra.mxu0 0.0
        %3104 = vmatprep.subr.mxu0 0.0
        %3105 = vmatpush1.msra.mxu0 0.0
        %3106 = vmatprep.subr.mxu0 0.0
        %3107 = vmatpush1.msra.mxu0 0.0
        %3108 = vmatprep.subr.mxu0 0.0
        %3109 = vmatpush1.msra.mxu0 0.0
        %3110 = vmatprep.subr.mxu0 0.0
        %3111 = vmatpush1.msra.mxu0 0.0
        %3112 = vmatprep.subr.mxu0 0.0
        %3113 = vmatpush1.msra.mxu0 %v3078
        %3114 = vmatprep.subr.mxu0 0.0
        %3115 = vmatpush1.msra.mxu0 %v3076
        %3116 = vmatprep.subr.mxu0 0.0
        %3117 = vmatpush2.msra.mxu0 0.0
        %3118 = vmatprep.subr.mxu0 0.0
        %3119 = vmatpush2.msra.mxu0 0.0
        %3120 = vmatprep.subr.mxu0 0.0
        %3121 = vmatpush2.msra.mxu0 0.0
        %3122 = vmatprep.subr.mxu0 0.0
        %3123 = vmatpush2.msra.mxu0 0.0
        %3124 = vmatprep.subr.mxu0 0.0
        %3125 = vmatpush2.msra.mxu0 0.0
        %3126 = vmatprep.subr.mxu0 0.0
        %3127 = vmatpush2.msra.mxu0 0.0
        %3128 = vmatprep.subr.mxu0 0.0
        %3129 = vmatpush2.msra.mxu0 0.0
        %3130 = vmatprep.subr.mxu0 0.0
        %3131 = vmatpush2.msra.mxu0 0.0
        %3132 = vmatprep.subr.mxu0 0.0
        %3133 = vmatpush2.msra.mxu0 0.0
        %3134 = vmatprep.subr.mxu0 0.0
        %3135 = vmatpush2.msra.mxu0 0.0
        %3136 = vmatprep.subr.mxu0 0.0
        %3137 = vmatpush2.msra.mxu0 0.0
        %3138 = vmatprep.subr.mxu0 0.0
        %3139 = vmatpush2.msra.mxu0 0.0
        %3140 = vmatprep.subr.mxu0 0.0
        %3141 = vmatpush2.msra.mxu0 0.0
        %3142 = vmatprep.subr.mxu0 0.0
        %3143 = vmatpush2.msra.mxu0 0.0
        %3144 = vmatprep.subr.mxu0 0.0
        %3145 = vmatpush2.msra.mxu0 0.0
        %3146 = vmatprep.subr.mxu0 0.0
        %3147 = vmatpush2.msra.mxu0 0.0
        %3148 = vmatprep.mubr.f32.mxu0 0.0
        %3149 = vmatmul.mubr.f32.gmra.mxu0 %v3082
        %v3150 = vpop.f32.mrf.mxu0
        %v3151 = vadd.f32 0.0, %v3150
        %v3152 = vpop.f32.mrf.mxu0
        %3153 = vdwg.mxu0
        %v3155 = vsel %vm984, %v3151, 0
        %3157 = vmatprep.subr.mxu0 0.0
        %3158 = vmatpush1.msra.mxu0 0.0
        %3159 = vmatprep.subr.mxu0 0.0
        %3160 = vmatpush1.msra.mxu0 0.0
        %3161 = vmatprep.subr.mxu0 0.0
        %3162 = vmatpush1.msra.mxu0 0.0
        %3163 = vmatprep.subr.mxu0 0.0
        %3164 = vmatpush1.msra.mxu0 0.0
        %3165 = vmatprep.subr.mxu0 0.0
        %3166 = vmatpush1.msra.mxu0 0.0
        %3167 = vmatprep.subr.mxu0 0.0
        %3168 = vmatpush1.msra.mxu0 0.0
        %3169 = vmatprep.subr.mxu0 0.0
        %3170 = vmatpush1.msra.mxu0 0.0
        %3171 = vmatprep.subr.mxu0 0.0
        %3172 = vmatpush1.msra.mxu0 0.0
        %3173 = vmatprep.subr.mxu0 0.0
        %3174 = vmatpush1.msra.mxu0 0.0
        %3175 = vmatprep.subr.mxu0 0.0
        %3176 = vmatpush1.msra.mxu0 0.0
        %3177 = vmatprep.subr.mxu0 0.0
        %3178 = vmatpush1.msra.mxu0 0.0
        %3179 = vmatprep.subr.mxu0 0.0
        %3180 = vmatpush1.msra.mxu0 0.0
        %3181 = vmatprep.subr.mxu0 0.0
        %3182 = vmatpush1.msra.mxu0 0.0
        %3183 = vmatprep.subr.mxu0 0.0
        %3184 = vmatpush1.msra.mxu0 0.0
        %3185 = vmatprep.subr.mxu0 0.0
        %3186 = vmatpush1.msra.mxu0 0.0
        %3187 = vmatprep.subr.mxu0 0.0
        %3188 = vmatpush1.msra.mxu0 %v2236
        %3189 = vmatprep.subr.mxu0 0.0
        %3190 = vmatpush2.msra.mxu0 0.0
        %3191 = vmatprep.subr.mxu0 0.0
        %3192 = vmatpush2.msra.mxu0 0.0
        %3193 = vmatprep.subr.mxu0 0.0
        %3194 = vmatpush2.msra.mxu0 0.0
        %3195 = vmatprep.subr.mxu0 0.0
        %3196 = vmatpush2.msra.mxu0 0.0
        %3197 = vmatprep.subr.mxu0 0.0
        %3198 = vmatpush2.msra.mxu0 0.0
        %3199 = vmatprep.subr.mxu0 0.0
        %3200 = vmatpush2.msra.mxu0 0.0
        %3201 = vmatprep.subr.mxu0 0.0
        %3202 = vmatpush2.msra.mxu0 0.0
        %3203 = vmatprep.subr.mxu0 0.0
        %3204 = vmatpush2.msra.mxu0 0.0
        %3205 = vmatprep.subr.mxu0 0.0
        %3206 = vmatpush2.msra.mxu0 0.0
        %3207 = vmatprep.subr.mxu0 0.0
        %3208 = vmatpush2.msra.mxu0 0.0
        %3209 = vmatprep.subr.mxu0 0.0
        %3210 = vmatpush2.msra.mxu0 0.0
        %3211 = vmatprep.subr.mxu0 0.0
        %3212 = vmatpush2.msra.mxu0 0.0
        %3213 = vmatprep.subr.mxu0 0.0
        %3214 = vmatpush2.msra.mxu0 0.0
        %3215 = vmatprep.subr.mxu0 0.0
        %3216 = vmatpush2.msra.mxu0 0.0
        %3217 = vmatprep.subr.mxu0 0.0
        %3218 = vmatpush2.msra.mxu0 0.0
        %3219 = vmatprep.subr.mxu0 0.0
        %3220 = vmatpush2.msra.mxu0 0.0
        %3221 = vmatprep.mubr.f32.mxu0 0.0
        %3222 = vmatmul.mubr.f32.gmra.mxu0 %v3155
        %v3223 = vpop.f32.mrf.mxu0
        %v3224 = vadd.f32 0.0, %v3223
        %v3225 = vpop.f32.mrf.mxu0
        %3226 = vdwg.mxu0
        %v3227 = vadd.f32 %v2979, %v3224
        %v3228 = vlaneseq
        %v3229 = vshrl.u32 %v3228, 7
        %v3230 = vsub.s32 7, %v3229
        %v3231 = vrot.slane %v732, %v3230
        %v3232 = vadd.f32 %v3227, %v3231
        %v3233 = vadd.f32 %v1968, %v3232
        %v3234 = vsel %vm744, %v3233, 0.0
        %3235 = vadd.xlane.f32.xlu0 %v3234
        %v3236 = vpop.xlane.xlu0 %3235
        %v3237 = vmul.f32 %v3236, %v1948
        %v3238 = vsub.f32 %v3233, %v3237
        %v3239 = vmul.f32 %v3238, %v3238
        %v3240 = vsel %vm744, %v3239, 0.0
        %3241 = vadd.xlane.f32.xlu0 %v3240
        %v3242 = vpop.xlane.xlu0 %3241
        %v3243 = vmul.f32 %v3242, %v1948
        %v3244 = vadd.f32 %v3243, 1e-05
        %v3245 = vrsqrt.pop %v3244
        %v3246 = vmul.f32 %v3238, %v3245
        %v3247 = vlaneseq
        %v3248 = vshrl.u32 %v3247, 7
        %v3249 = vsub.s32 7, %v3248
        %v3250 = vrot.slane %v733, %v3249
        %v3251 = vmul.f32 %v3246, %v3250
        %v3252 = vlaneseq
        %v3253 = vshrl.u32 %v3252, 7
        %v3254 = vsub.s32 0, %v3253
        %v3255 = vrot.slane %v734, %v3254
        %v3256 = vadd.f32 %v3251, %v3255
        %v3257 = vld [vmem:[%s698] sm:$0xff]
        %v3258 = vld [vmem:[%s698 + $0x8] sm:$0xff]
        %v3259 = vld [vmem:[%s698 + $0x10] sm:$0xff]
        %v3260 = vld [vmem:[%s698 + $0x18] sm:$0xff]
        %v3261 = vld [vmem:[%s701] sm:$0x1]
        %v3263 = vlaneseq
        %v3264 = vshrl.u32 %v3263, 7
        %v3265 = vsub.s32 0, %v3264
        %v3266 = vrot.slane %v3261, %v3265
        %v3269 = vsel %vm744, %v3256, 0
        %3271 = vmatprep.subr.mxu0 0.0
        %3272 = vmatpush1.msra.mxu0 0.0
        %3273 = vmatprep.subr.mxu0 0.0
        %3274 = vmatpush1.msra.mxu0 0.0
        %3275 = vmatprep.subr.mxu0 0.0
        %3276 = vmatpush1.msra.mxu0 0.0
        %3277 = vmatprep.subr.mxu0 0.0
        %3278 = vmatpush1.msra.mxu0 0.0
        %3279 = vmatprep.subr.mxu0 0.0
        %3280 = vmatpush1.msra.mxu0 0.0
        %3281 = vmatprep.subr.mxu0 0.0
        %3282 = vmatpush1.msra.mxu0 0.0
        %3283 = vmatprep.subr.mxu0 0.0
        %3284 = vmatpush1.msra.mxu0 0.0
        %3285 = vmatprep.subr.mxu0 0.0
        %3286 = vmatpush1.msra.mxu0 0.0
        %3287 = vmatprep.subr.mxu0 0.0
        %3288 = vmatpush1.msra.mxu0 0.0
        %3289 = vmatprep.subr.mxu0 0.0
        %3290 = vmatpush1.msra.mxu0 0.0
        %3291 = vmatprep.subr.mxu0 0.0
        %3292 = vmatpush1.msra.mxu0 0.0
        %3293 = vmatprep.subr.mxu0 0.0
        %3294 = vmatpush1.msra.mxu0 0.0
        %3295 = vmatprep.subr.mxu0 0.0
        %3296 = vmatpush1.msra.mxu0 %v3260
        %3297 = vmatprep.subr.mxu0 0.0
        %3298 = vmatpush1.msra.mxu0 %v3259
        %3299 = vmatprep.subr.mxu0 0.0
        %3300 = vmatpush1.msra.mxu0 %v3258
        %3301 = vmatprep.subr.mxu0 0.0
        %3302 = vmatpush1.msra.mxu0 %v3257
        %3303 = vmatprep.subr.mxu0 0.0
        %3304 = vmatpush2.msra.mxu0 0.0
        %3305 = vmatprep.subr.mxu0 0.0
        %3306 = vmatpush2.msra.mxu0 0.0
        %3307 = vmatprep.subr.mxu0 0.0
        %3308 = vmatpush2.msra.mxu0 0.0
        %3309 = vmatprep.subr.mxu0 0.0
        %3310 = vmatpush2.msra.mxu0 0.0
        %3311 = vmatprep.subr.mxu0 0.0
        %3312 = vmatpush2.msra.mxu0 0.0
        %3313 = vmatprep.subr.mxu0 0.0
        %3314 = vmatpush2.msra.mxu0 0.0
        %3315 = vmatprep.subr.mxu0 0.0
        %3316 = vmatpush2.msra.mxu0 0.0
        %3317 = vmatprep.subr.mxu0 0.0
        %3318 = vmatpush2.msra.mxu0 0.0
        %3319 = vmatprep.subr.mxu0 0.0
        %3320 = vmatpush2.msra.mxu0 0.0
        %3321 = vmatprep.subr.mxu0 0.0
        %3322 = vmatpush2.msra.mxu0 0.0
        %3323 = vmatprep.subr.mxu0 0.0
        %3324 = vmatpush2.msra.mxu0 0.0
        %3325 = vmatprep.subr.mxu0 0.0
        %3326 = vmatpush2.msra.mxu0 0.0
        %3327 = vmatprep.subr.mxu0 0.0
        %3328 = vmatpush2.msra.mxu0 0.0
        %3329 = vmatprep.subr.mxu0 0.0
        %3330 = vmatpush2.msra.mxu0 0.0
        %3331 = vmatprep.subr.mxu0 0.0
        %3332 = vmatpush2.msra.mxu0 0.0
        %3333 = vmatprep.subr.mxu0 0.0
        %3334 = vmatpush2.msra.mxu0 0.0
        %3335 = vmatprep.mubr.f32.mxu0 0.0
        %3336 = vmatmul.mubr.f32.gmra.mxu0 %v3269
        %v3337 = vpop.f32.mrf.mxu0
        %v3338 = vadd.f32 %v3266, %v3337
        %v3339 = vpop.f32.mrf.mxu0
        %3340 = vdwg.mxu0
        %v3341 = vmax.f32 %v3338, 0.0
        %v3342 = vld [vmem:[%s706] sm:$0xff]
        %v3343 = vld [vmem:[%s706 + $0x8] sm:$0xff]
        %v3344 = vld [vmem:[%s706 + $0x10] sm:$0xff]
        %v3345 = vld [vmem:[%s706 + $0x18] sm:$0xff]
        %v3346 = vld [vmem:[%s706 + $0x20] sm:$0xff]
        %v3347 = vld [vmem:[%s706 + $0x28] sm:$0xff]
        %v3348 = vld [vmem:[%s706 + $0x30] sm:$0xff]
        %v3349 = vld [vmem:[%s706 + $0x38] sm:$0xff]
        %v3350 = vlaneseq
        %v3351 = vshrl.u32 %v3350, 7
        %v3352 = vsub.s32 4, %v3351
        %v3353 = vrot.slane %v733, %v3352
        %vm3354 = vcmask 523264
        %v3356 = vsel %vm3354, %v3341, 0
        %3358 = vmatprep.subr.mxu0 0.0
        %3359 = vmatpush1.msra.mxu0 0.0
        %3360 = vmatprep.subr.mxu0 0.0
        %3361 = vmatpush1.msra.mxu0 0.0
        %3362 = vmatprep.subr.mxu0 0.0
        %3363 = vmatpush1.msra.mxu0 0.0
        %3364 = vmatprep.subr.mxu0 0.0
        %3365 = vmatpush1.msra.mxu0 0.0
        %3366 = vmatprep.subr.mxu0 0.0
        %3367 = vmatpush1.msra.mxu0 0.0
        %3368 = vmatprep.subr.mxu0 0.0
        %3369 = vmatpush1.msra.mxu0 0.0
        %3370 = vmatprep.subr.mxu0 0.0
        %3371 = vmatpush1.msra.mxu0 0.0
        %3372 = vmatprep.subr.mxu0 0.0
        %3373 = vmatpush1.msra.mxu0 0.0
        %3374 = vmatprep.subr.mxu0 0.0
        %3375 = vmatpush1.msra.mxu0 %v3349
        %3376 = vmatprep.subr.mxu0 0.0
        %3377 = vmatpush1.msra.mxu0 %v3348
        %3378 = vmatprep.subr.mxu0 0.0
        %3379 = vmatpush1.msra.mxu0 %v3347
        %3380 = vmatprep.subr.mxu0 0.0
        %3381 = vmatpush1.msra.mxu0 %v3346
        %3382 = vmatprep.subr.mxu0 0.0
        %3383 = vmatpush1.msra.mxu0 %v3345
        %3384 = vmatprep.subr.mxu0 0.0
        %3385 = vmatpush1.msra.mxu0 %v3344
        %3386 = vmatprep.subr.mxu0 0.0
        %3387 = vmatpush1.msra.mxu0 %v3343
        %3388 = vmatprep.subr.mxu0 0.0
        %3389 = vmatpush1.msra.mxu0 %v3342
        %3390 = vmatprep.subr.mxu0 0.0
        %3391 = vmatpush2.msra.mxu0 0.0
        %3392 = vmatprep.subr.mxu0 0.0
        %3393 = vmatpush2.msra.mxu0 0.0
        %3394 = vmatprep.subr.mxu0 0.0
        %3395 = vmatpush2.msra.mxu0 0.0
        %3396 = vmatprep.subr.mxu0 0.0
        %3397 = vmatpush2.msra.mxu0 0.0
        %3398 = vmatprep.subr.mxu0 0.0
        %3399 = vmatpush2.msra.mxu0 0.0
        %3400 = vmatprep.subr.mxu0 0.0
        %3401 = vmatpush2.msra.mxu0 0.0
        %3402 = vmatprep.subr.mxu0 0.0
        %3403 = vmatpush2.msra.mxu0 0.0
        %3404 = vmatprep.subr.mxu0 0.0
        %3405 = vmatpush2.msra.mxu0 0.0
        %3406 = vmatprep.subr.mxu0 0.0
        %3407 = vmatpush2.msra.mxu0 0.0
        %3408 = vmatprep.subr.mxu0 0.0
        %3409 = vmatpush2.msra.mxu0 0.0
        %3410 = vmatprep.subr.mxu0 0.0
        %3411 = vmatpush2.msra.mxu0 0.0
        %3412 = vmatprep.subr.mxu0 0.0
        %3413 = vmatpush2.msra.mxu0 0.0
        %3414 = vmatprep.subr.mxu0 0.0
        %3415 = vmatpush2.msra.mxu0 0.0
        %3416 = vmatprep.subr.mxu0 0.0
        %3417 = vmatpush2.msra.mxu0 0.0
        %3418 = vmatprep.subr.mxu0 0.0
        %3419 = vmatpush2.msra.mxu0 0.0
        %3420 = vmatprep.subr.mxu0 0.0
        %3421 = vmatpush2.msra.mxu0 0.0
        %3422 = vmatprep.mubr.f32.mxu0 0.0
        %3423 = vmatmul.mubr.f32.gmra.mxu0 %v3356
        %v3424 = vpop.f32.mrf.mxu0
        %v3425 = vadd.f32 %v3353, %v3424
        %v3426 = vpop.f32.mrf.mxu0
        %3427 = vdwg.mxu0
        %v3428 = vadd.f32 %v3256, %v3425
        %v3429 = vsel %vm744, %v3428, 0.0
        %3430 = vadd.xlane.f32.xlu0 %v3429
        %v3431 = vpop.xlane.xlu0 %3430
        %v3432 = vmul.f32 %v3431, %v1948
        %v3433 = vsub.f32 %v3428, %v3432
        %v3434 = vmul.f32 %v3433, %v3433
        %v3435 = vsel %vm744, %v3434, 0.0
        %3436 = vadd.xlane.f32.xlu0 %v3435
        %v3437 = vpop.xlane.xlu0 %3436
        %v3438 = vmul.f32 %v3437, %v1948
        %v3439 = vadd.f32 %v3438, 1e-05
        %v3440 = vrsqrt.pop %v3439
        %v3441 = vmul.f32 %v3433, %v3440
        %v3442 = vlaneseq
        %v3443 = vshrl.u32 %v3442, 7
        %v3444 = vsub.s32 1, %v3443
        %v3445 = vrot.slane %v734, %v3444
        %v3446 = vmul.f32 %v3441, %v3445
        %v3447 = vlaneseq
        %v3448 = vshrl.u32 %v3447, 7
        %v3449 = vsub.s32 2, %v3448
        %v3450 = vrot.slane %v734, %v3449
        %v3451 = vadd.f32 %v3446, %v3450
        %3452 = vst.msk [vmem:[#allocation2] sm:$0xff] %vm744, %v3451
        %v3453 = vld [vmem:[%s13] sm:$0x1]
        %v3454 = vld [vmem:[%s13 + $0x1] sm:$0x1]
        %v3455 = vsel %vm744, %v3451, 0.0
        %3456 = vadd.xlane.f32.xlu0 %v3455
        %v3457 = vpop.xlane.xlu0 %3456
        %v3458 = vmul.f32 %v3457, %v1948
        %v3459 = vsub.f32 %v3451, %v3458
        %v3460 = vmul.f32 %v3459, %v3459
        %v3461 = vsel %vm744, %v3460, 0.0
        %3462 = vadd.xlane.f32.xlu0 %v3461
        %v3463 = vpop.xlane.xlu0 %3462
        %v3464 = vmul.f32 %v3463, %v1948
        %v3465 = vadd.f32 %v3464, 1e-05
        %v3466 = vrsqrt.pop %v3465
        %v3467 = vmul.f32 %v3459, %v3466
        %v3468 = vlaneseq
        %v3469 = vshrl.u32 %v3468, 7
        %v3470 = vsub.s32 0, %v3469
        %v3471 = vrot.slane %v3453, %v3470
        %v3472 = vmul.f32 %v3467, %v3471
        %v3473 = vlaneseq
        %v3474 = vshrl.u32 %v3473, 7
        %v3475 = vsub.s32 0, %v3474
        %v3476 = vrot.slane %v3454, %v3475
        %v3477 = vadd.f32 %v3472, %v3476
        %v3478 = vld [vmem:[%s715] sm:$0x7]
        %s3479 = scalar_lea.vmem %s566, 256 [#allocation4]
        %v3480 = vld [vmem:[%s3479] sm:$0xff]
        %v3481 = vld [vmem:[%s3479 + $0x8] sm:$0xff]
        %v3482 = vld [vmem:[%s3479 + $0x10] sm:$0xff]
        %v3483 = vld [vmem:[%s3479 + $0x18] sm:$0xff]
        %v3484 = vlaneseq
        %v3485 = vshrl.u32 %v3484, 7
        %v3486 = vsub.s32 0, %v3485
        %v3487 = vrot.slane %v733, %v3486
        %v3489 = vsel %vm744, %v3477, 0
        %3491 = vmatprep.subr.mxu0 0.0
        %3492 = vmatpush1.msra.mxu0 0.0
        %3493 = vmatprep.subr.mxu0 0.0
        %3494 = vmatpush1.msra.mxu0 0.0
        %3495 = vmatprep.subr.mxu0 0.0
        %3496 = vmatpush1.msra.mxu0 0.0
        %3497 = vmatprep.subr.mxu0 0.0
        %3498 = vmatpush1.msra.mxu0 0.0
        %3499 = vmatprep.subr.mxu0 0.0
        %3500 = vmatpush1.msra.mxu0 0.0
        %3501 = vmatprep.subr.mxu0 0.0
        %3502 = vmatpush1.msra.mxu0 0.0
        %3503 = vmatprep.subr.mxu0 0.0
        %3504 = vmatpush1.msra.mxu0 0.0
        %3505 = vmatprep.subr.mxu0 0.0
        %3506 = vmatpush1.msra.mxu0 0.0
        %3507 = vmatprep.subr.mxu0 0.0
        %3508 = vmatpush1.msra.mxu0 0.0
        %3509 = vmatprep.subr.mxu0 0.0
        %3510 = vmatpush1.msra.mxu0 0.0
        %3511 = vmatprep.subr.mxu0 0.0
        %3512 = vmatpush1.msra.mxu0 0.0
        %3513 = vmatprep.subr.mxu0 0.0
        %3514 = vmatpush1.msra.mxu0 0.0
        %3515 = vmatprep.subr.mxu0 0.0
        %3516 = vmatpush1.msra.mxu0 %v3483
        %3517 = vmatprep.subr.mxu0 0.0
        %3518 = vmatpush1.msra.mxu0 %v3482
        %3519 = vmatprep.subr.mxu0 0.0
        %3520 = vmatpush1.msra.mxu0 %v3481
        %3521 = vmatprep.subr.mxu0 0.0
        %3522 = vmatpush1.msra.mxu0 %v3480
        %3523 = vmatprep.subr.mxu0 0.0
        %3524 = vmatpush2.msra.mxu0 0.0
        %3525 = vmatprep.subr.mxu0 0.0
        %3526 = vmatpush2.msra.mxu0 0.0
        %3527 = vmatprep.subr.mxu0 0.0
        %3528 = vmatpush2.msra.mxu0 0.0
        %3529 = vmatprep.subr.mxu0 0.0
        %3530 = vmatpush2.msra.mxu0 0.0
        %3531 = vmatprep.subr.mxu0 0.0
        %3532 = vmatpush2.msra.mxu0 0.0
        %3533 = vmatprep.subr.mxu0 0.0
        %3534 = vmatpush2.msra.mxu0 0.0
        %3535 = vmatprep.subr.mxu0 0.0
        %3536 = vmatpush2.msra.mxu0 0.0
        %3537 = vmatprep.subr.mxu0 0.0
        %3538 = vmatpush2.msra.mxu0 0.0
        %3539 = vmatprep.subr.mxu0 0.0
        %3540 = vmatpush2.msra.mxu0 0.0
        %3541 = vmatprep.subr.mxu0 0.0
        %3542 = vmatpush2.msra.mxu0 0.0
        %3543 = vmatprep.subr.mxu0 0.0
        %3544 = vmatpush2.msra.mxu0 0.0
        %3545 = vmatprep.subr.mxu0 0.0
        %3546 = vmatpush2.msra.mxu0 0.0
        %3547 = vmatprep.subr.mxu0 0.0
        %3548 = vmatpush2.msra.mxu0 0.0
        %3549 = vmatprep.subr.mxu0 0.0
        %3550 = vmatpush2.msra.mxu0 0.0
        %3551 = vmatprep.subr.mxu0 0.0
        %3552 = vmatpush2.msra.mxu0 0.0
        %3553 = vmatprep.subr.mxu0 0.0
        %3554 = vmatpush2.msra.mxu0 0.0
        %3555 = vmatprep.mubr.f32.mxu0 0.0
        %3556 = vmatmul.mubr.f32.gmra.mxu0 %v3489
        %v3557 = vpop.f32.mrf.mxu0
        %v3558 = vadd.f32 %v3487, %v3557
        %v3559 = vpop.f32.mrf.mxu0
        %3560 = vdwg.mxu0
        %v3561 = vmax.f32 %v3558, 0.0
        %s3562 = scalar_lea.vmem %s566, 288 [#allocation4]
        %v3563 = vld [vmem:[%s3562] sm:$0xff]
        %v3564 = vld [vmem:[%s3562 + $0x8] sm:$0xff]
        %v3565 = vld [vmem:[%s3562 + $0x10] sm:$0xff]
        %v3566 = vld [vmem:[%s3562 + $0x18] sm:$0xff]
        %v3567 = vlaneseq
        %v3568 = vshrl.u32 %v3567, 7
        %v3569 = vsub.s32 1, %v3568
        %v3570 = vrot.slane %v733, %v3569
        %v3572 = vsel %vm744, %v3561, 0
        %3574 = vmatprep.subr.mxu0 0.0
        %3575 = vmatpush1.msra.mxu0 0.0
        %3576 = vmatprep.subr.mxu0 0.0
        %3577 = vmatpush1.msra.mxu0 0.0
        %3578 = vmatprep.subr.mxu0 0.0
        %3579 = vmatpush1.msra.mxu0 0.0
        %3580 = vmatprep.subr.mxu0 0.0
        %3581 = vmatpush1.msra.mxu0 0.0
        %3582 = vmatprep.subr.mxu0 0.0
        %3583 = vmatpush1.msra.mxu0 0.0
        %3584 = vmatprep.subr.mxu0 0.0
        %3585 = vmatpush1.msra.mxu0 0.0
        %3586 = vmatprep.subr.mxu0 0.0
        %3587 = vmatpush1.msra.mxu0 0.0
        %3588 = vmatprep.subr.mxu0 0.0
        %3589 = vmatpush1.msra.mxu0 0.0
        %3590 = vmatprep.subr.mxu0 0.0
        %3591 = vmatpush1.msra.mxu0 0.0
        %3592 = vmatprep.subr.mxu0 0.0
        %3593 = vmatpush1.msra.mxu0 0.0
        %3594 = vmatprep.subr.mxu0 0.0
        %3595 = vmatpush1.msra.mxu0 0.0
        %3596 = vmatprep.subr.mxu0 0.0
        %3597 = vmatpush1.msra.mxu0 0.0
        %3598 = vmatprep.subr.mxu0 0.0
        %3599 = vmatpush1.msra.mxu0 %v3566
        %3600 = vmatprep.subr.mxu0 0.0
        %3601 = vmatpush1.msra.mxu0 %v3565
        %3602 = vmatprep.subr.mxu0 0.0
        %3603 = vmatpush1.msra.mxu0 %v3564
        %3604 = vmatprep.subr.mxu0 0.0
        %3605 = vmatpush1.msra.mxu0 %v3563
        %3606 = vmatprep.subr.mxu0 0.0
        %3607 = vmatpush2.msra.mxu0 0.0
        %3608 = vmatprep.subr.mxu0 0.0
        %3609 = vmatpush2.msra.mxu0 0.0
        %3610 = vmatprep.subr.mxu0 0.0
        %3611 = vmatpush2.msra.mxu0 0.0
        %3612 = vmatprep.subr.mxu0 0.0
        %3613 = vmatpush2.msra.mxu0 0.0
        %3614 = vmatprep.subr.mxu0 0.0
        %3615 = vmatpush2.msra.mxu0 0.0
        %3616 = vmatprep.subr.mxu0 0.0
        %3617 = vmatpush2.msra.mxu0 0.0
        %3618 = vmatprep.subr.mxu0 0.0
        %3619 = vmatpush2.msra.mxu0 0.0
        %3620 = vmatprep.subr.mxu0 0.0
        %3621 = vmatpush2.msra.mxu0 0.0
        %3622 = vmatprep.subr.mxu0 0.0
        %3623 = vmatpush2.msra.mxu0 0.0
        %3624 = vmatprep.subr.mxu0 0.0
        %3625 = vmatpush2.msra.mxu0 0.0
        %3626 = vmatprep.subr.mxu0 0.0
        %3627 = vmatpush2.msra.mxu0 0.0
        %3628 = vmatprep.subr.mxu0 0.0
        %3629 = vmatpush2.msra.mxu0 0.0
        %3630 = vmatprep.subr.mxu0 0.0
        %3631 = vmatpush2.msra.mxu0 0.0
        %3632 = vmatprep.subr.mxu0 0.0
        %3633 = vmatpush2.msra.mxu0 0.0
        %3634 = vmatprep.subr.mxu0 0.0
        %3635 = vmatpush2.msra.mxu0 0.0
        %3636 = vmatprep.subr.mxu0 0.0
        %3637 = vmatpush2.msra.mxu0 0.0
        %3638 = vmatprep.mubr.f32.mxu0 0.0
        %3639 = vmatmul.mubr.f32.gmra.mxu0 %v3572
        %v3640 = vpop.f32.mrf.mxu0
        %v3641 = vadd.f32 %v3570, %v3640
        %v3642 = vpop.f32.mrf.mxu0
        %3643 = vdwg.mxu0
        %v3644 = vmax.f32 %v3641, 0.0
        %v3645 = vld [vmem:[%s711] sm:$0xff]
        %v3646 = vld [vmem:[%s711 + $0x8] sm:$0xff]
        %v3647 = vld [vmem:[%s711 + $0x10] sm:$0xff]
        %v3648 = vld [vmem:[%s711 + $0x18] sm:$0xff]
        %v3649 = vlaneseq
        %v3650 = vshrl.u32 %v3649, 7
        %v3651 = vsub.s32 0, %v3650
        %v3652 = vrot.slane %v3478, %v3651
        %v3654 = vsel %vm744, %v3644, 0
        %3656 = vmatprep.subr.mxu0 0.0
        %3657 = vmatpush1.msra.mxu0 0.0
        %3658 = vmatprep.subr.mxu0 0.0
        %3659 = vmatpush1.msra.mxu0 0.0
        %3660 = vmatprep.subr.mxu0 0.0
        %3661 = vmatpush1.msra.mxu0 0.0
        %3662 = vmatprep.subr.mxu0 0.0
        %3663 = vmatpush1.msra.mxu0 0.0
        %3664 = vmatprep.subr.mxu0 0.0
        %3665 = vmatpush1.msra.mxu0 0.0
        %3666 = vmatprep.subr.mxu0 0.0
        %3667 = vmatpush1.msra.mxu0 0.0
        %3668 = vmatprep.subr.mxu0 0.0
        %3669 = vmatpush1.msra.mxu0 0.0
        %3670 = vmatprep.subr.mxu0 0.0
        %3671 = vmatpush1.msra.mxu0 0.0
        %3672 = vmatprep.subr.mxu0 0.0
        %3673 = vmatpush1.msra.mxu0 0.0
        %3674 = vmatprep.subr.mxu0 0.0
        %3675 = vmatpush1.msra.mxu0 0.0
        %3676 = vmatprep.subr.mxu0 0.0
        %3677 = vmatpush1.msra.mxu0 0.0
        %3678 = vmatprep.subr.mxu0 0.0
        %3679 = vmatpush1.msra.mxu0 0.0
        %3680 = vmatprep.subr.mxu0 0.0
        %3681 = vmatpush1.msra.mxu0 %v3648
        %3682 = vmatprep.subr.mxu0 0.0
        %3683 = vmatpush1.msra.mxu0 %v3647
        %3684 = vmatprep.subr.mxu0 0.0
        %3685 = vmatpush1.msra.mxu0 %v3646
        %3686 = vmatprep.subr.mxu0 0.0
        %3687 = vmatpush1.msra.mxu0 %v3645
        %3688 = vmatprep.subr.mxu0 0.0
        %3689 = vmatpush2.msra.mxu0 0.0
        %3690 = vmatprep.subr.mxu0 0.0
        %3691 = vmatpush2.msra.mxu0 0.0
        %3692 = vmatprep.subr.mxu0 0.0
        %3693 = vmatpush2.msra.mxu0 0.0
        %3694 = vmatprep.subr.mxu0 0.0
        %3695 = vmatpush2.msra.mxu0 0.0
        %3696 = vmatprep.subr.mxu0 0.0
        %3697 = vmatpush2.msra.mxu0 0.0
        %3698 = vmatprep.subr.mxu0 0.0
        %3699 = vmatpush2.msra.mxu0 0.0
        %3700 = vmatprep.subr.mxu0 0.0
        %3701 = vmatpush2.msra.mxu0 0.0
        %3702 = vmatprep.subr.mxu0 0.0
        %3703 = vmatpush2.msra.mxu0 0.0
        %3704 = vmatprep.subr.mxu0 0.0
        %3705 = vmatpush2.msra.mxu0 0.0
        %3706 = vmatprep.subr.mxu0 0.0
        %3707 = vmatpush2.msra.mxu0 0.0
        %3708 = vmatprep.subr.mxu0 0.0
        %3709 = vmatpush2.msra.mxu0 0.0
        %3710 = vmatprep.subr.mxu0 0.0
        %3711 = vmatpush2.msra.mxu0 0.0
        %3712 = vmatprep.subr.mxu0 0.0
        %3713 = vmatpush2.msra.mxu0 0.0
        %3714 = vmatprep.subr.mxu0 0.0
        %3715 = vmatpush2.msra.mxu0 0.0
        %3716 = vmatprep.subr.mxu0 0.0
        %3717 = vmatpush2.msra.mxu0 0.0
        %3718 = vmatprep.subr.mxu0 0.0
        %3719 = vmatpush2.msra.mxu0 0.0
        %3720 = vmatprep.mubr.f32.mxu0 0.0
        %3721 = vmatmul.mubr.f32.gmra.mxu0 %v3654
        %v3722 = vpop.f32.mrf.mxu0
        %v3723 = vadd.f32 %v3652, %v3722
        %v3724 = vpop.f32.mrf.mxu0
        %3725 = vdwg.mxu0
        %s3726 = scalar_lea.vmem %s566, 320 [#allocation4]
        %v3727 = vld [vmem:[%s3726] sm:$0xff]
        %v3728 = vld [vmem:[%s3726 + $0x8] sm:$0xff]
        %v3729 = vld [vmem:[%s3726 + $0x10] sm:$0xff]
        %v3730 = vld [vmem:[%s3726 + $0x18] sm:$0xff]
        %v3731 = vlaneseq
        %v3732 = vshrl.u32 %v3731, 7
        %v3733 = vsub.s32 2, %v3732
        %v3734 = vrot.slane %v733, %v3733
        %3735 = vmatprep.subr.mxu0 0.0
        %3736 = vmatpush1.msra.mxu0 0.0
        %3737 = vmatprep.subr.mxu0 0.0
        %3738 = vmatpush1.msra.mxu0 0.0
        %3739 = vmatprep.subr.mxu0 0.0
        %3740 = vmatpush1.msra.mxu0 0.0
        %3741 = vmatprep.subr.mxu0 0.0
        %3742 = vmatpush1.msra.mxu0 0.0
        %3743 = vmatprep.subr.mxu0 0.0
        %3744 = vmatpush1.msra.mxu0 0.0
        %3745 = vmatprep.subr.mxu0 0.0
        %3746 = vmatpush1.msra.mxu0 0.0
        %3747 = vmatprep.subr.mxu0 0.0
        %3748 = vmatpush1.msra.mxu0 0.0
        %3749 = vmatprep.subr.mxu0 0.0
        %3750 = vmatpush1.msra.mxu0 0.0
        %3751 = vmatprep.subr.mxu0 0.0
        %3752 = vmatpush1.msra.mxu0 0.0
        %3753 = vmatprep.subr.mxu0 0.0
        %3754 = vmatpush1.msra.mxu0 0.0
        %3755 = vmatprep.subr.mxu0 0.0
        %3756 = vmatpush1.msra.mxu0 0.0
        %3757 = vmatprep.subr.mxu0 0.0
        %3758 = vmatpush1.msra.mxu0 0.0
        %3759 = vmatprep.subr.mxu0 0.0
        %3760 = vmatpush1.msra.mxu0 %v3730
        %3761 = vmatprep.subr.mxu0 0.0
        %3762 = vmatpush1.msra.mxu0 %v3729
        %3763 = vmatprep.subr.mxu0 0.0
        %3764 = vmatpush1.msra.mxu0 %v3728
        %3765 = vmatprep.subr.mxu0 0.0
        %3766 = vmatpush1.msra.mxu0 %v3727
        %3767 = vmatprep.subr.mxu0 0.0
        %3768 = vmatpush2.msra.mxu0 0.0
        %3769 = vmatprep.subr.mxu0 0.0
        %3770 = vmatpush2.msra.mxu0 0.0
        %3771 = vmatprep.subr.mxu0 0.0
        %3772 = vmatpush2.msra.mxu0 0.0
        %3773 = vmatprep.subr.mxu0 0.0
        %3774 = vmatpush2.msra.mxu0 0.0
        %3775 = vmatprep.subr.mxu0 0.0
        %3776 = vmatpush2.msra.mxu0 0.0
        %3777 = vmatprep.subr.mxu0 0.0
        %3778 = vmatpush2.msra.mxu0 0.0
        %3779 = vmatprep.subr.mxu0 0.0
        %3780 = vmatpush2.msra.mxu0 0.0
        %3781 = vmatprep.subr.mxu0 0.0
        %3782 = vmatpush2.msra.mxu0 0.0
        %3783 = vmatprep.subr.mxu0 0.0
        %3784 = vmatpush2.msra.mxu0 0.0
        %3785 = vmatprep.subr.mxu0 0.0
        %3786 = vmatpush2.msra.mxu0 0.0
        %3787 = vmatprep.subr.mxu0 0.0
        %3788 = vmatpush2.msra.mxu0 0.0
        %3789 = vmatprep.subr.mxu0 0.0
        %3790 = vmatpush2.msra.mxu0 0.0
        %3791 = vmatprep.subr.mxu0 0.0
        %3792 = vmatpush2.msra.mxu0 0.0
        %3793 = vmatprep.subr.mxu0 0.0
        %3794 = vmatpush2.msra.mxu0 0.0
        %3795 = vmatprep.subr.mxu0 0.0
        %3796 = vmatpush2.msra.mxu0 0.0
        %3797 = vmatprep.subr.mxu0 0.0
        %3798 = vmatpush2.msra.mxu0 0.0
        %3799 = vmatprep.mubr.f32.mxu0 0.0
        %3800 = vmatmul.mubr.f32.gmra.mxu0 %v3489
        %v3801 = vpop.f32.mrf.mxu0
        %v3802 = vadd.f32 %v3734, %v3801
        %v3803 = vpop.f32.mrf.mxu0
        %3804 = vdwg.mxu0
        %v3805 = vmax.f32 %v3802, 0.0
        %s3806 = scalar_lea.vmem %s566, 352 [#allocation4]
        %v3807 = vld [vmem:[%s3806] sm:$0xff]
        %v3808 = vld [vmem:[%s3806 + $0x8] sm:$0xff]
        %v3809 = vld [vmem:[%s3806 + $0x10] sm:$0xff]
        %v3810 = vld [vmem:[%s3806 + $0x18] sm:$0xff]
        %v3811 = vlaneseq
        %v3812 = vshrl.u32 %v3811, 7
        %v3813 = vsub.s32 3, %v3812
        %v3814 = vrot.slane %v733, %v3813
        %v3816 = vsel %vm744, %v3805, 0
        %3818 = vmatprep.subr.mxu0 0.0
        %3819 = vmatpush1.msra.mxu0 0.0
        %3820 = vmatprep.subr.mxu0 0.0
        %3821 = vmatpush1.msra.mxu0 0.0
        %3822 = vmatprep.subr.mxu0 0.0
        %3823 = vmatpush1.msra.mxu0 0.0
        %3824 = vmatprep.subr.mxu0 0.0
        %3825 = vmatpush1.msra.mxu0 0.0
        %3826 = vmatprep.subr.mxu0 0.0
        %3827 = vmatpush1.msra.mxu0 0.0
        %3828 = vmatprep.subr.mxu0 0.0
        %3829 = vmatpush1.msra.mxu0 0.0
        %3830 = vmatprep.subr.mxu0 0.0
        %3831 = vmatpush1.msra.mxu0 0.0
        %3832 = vmatprep.subr.mxu0 0.0
        %3833 = vmatpush1.msra.mxu0 0.0
        %3834 = vmatprep.subr.mxu0 0.0
        %3835 = vmatpush1.msra.mxu0 0.0
        %3836 = vmatprep.subr.mxu0 0.0
        %3837 = vmatpush1.msra.mxu0 0.0
        %3838 = vmatprep.subr.mxu0 0.0
        %3839 = vmatpush1.msra.mxu0 0.0
        %3840 = vmatprep.subr.mxu0 0.0
        %3841 = vmatpush1.msra.mxu0 0.0
        %3842 = vmatprep.subr.mxu0 0.0
        %3843 = vmatpush1.msra.mxu0 %v3810
        %3844 = vmatprep.subr.mxu0 0.0
        %3845 = vmatpush1.msra.mxu0 %v3809
        %3846 = vmatprep.subr.mxu0 0.0
        %3847 = vmatpush1.msra.mxu0 %v3808
        %3848 = vmatprep.subr.mxu0 0.0
        %3849 = vmatpush1.msra.mxu0 %v3807
        %3850 = vmatprep.subr.mxu0 0.0
        %3851 = vmatpush2.msra.mxu0 0.0
        %3852 = vmatprep.subr.mxu0 0.0
        %3853 = vmatpush2.msra.mxu0 0.0
        %3854 = vmatprep.subr.mxu0 0.0
        %3855 = vmatpush2.msra.mxu0 0.0
        %3856 = vmatprep.subr.mxu0 0.0
        %3857 = vmatpush2.msra.mxu0 0.0
        %3858 = vmatprep.subr.mxu0 0.0
        %3859 = vmatpush2.msra.mxu0 0.0
        %3860 = vmatprep.subr.mxu0 0.0
        %3861 = vmatpush2.msra.mxu0 0.0
        %3862 = vmatprep.subr.mxu0 0.0
        %3863 = vmatpush2.msra.mxu0 0.0
        %3864 = vmatprep.subr.mxu0 0.0
        %3865 = vmatpush2.msra.mxu0 0.0
        %3866 = vmatprep.subr.mxu0 0.0
        %3867 = vmatpush2.msra.mxu0 0.0
        %3868 = vmatprep.subr.mxu0 0.0
        %3869 = vmatpush2.msra.mxu0 0.0
        %3870 = vmatprep.subr.mxu0 0.0
        %3871 = vmatpush2.msra.mxu0 0.0
        %3872 = vmatprep.subr.mxu0 0.0
        %3873 = vmatpush2.msra.mxu0 0.0
        %3874 = vmatprep.subr.mxu0 0.0
        %3875 = vmatpush2.msra.mxu0 0.0
        %3876 = vmatprep.subr.mxu0 0.0
        %3877 = vmatpush2.msra.mxu0 0.0
        %3878 = vmatprep.subr.mxu0 0.0
        %3879 = vmatpush2.msra.mxu0 0.0
        %3880 = vmatprep.subr.mxu0 0.0
        %3881 = vmatpush2.msra.mxu0 0.0
        %3882 = vmatprep.mubr.f32.mxu0 0.0
        %3883 = vmatmul.mubr.f32.gmra.mxu0 %v3816
        %v3884 = vpop.f32.mrf.mxu0
        %v3885 = vadd.f32 %v3814, %v3884
        %v3886 = vpop.f32.mrf.mxu0
        %3887 = vdwg.mxu0
        %v3888 = vmax.f32 %v3885, 0.0
        %s3889 = scalar_lea.vmem %s711, 32
        %v3890 = vld [vmem:[%s3889] sm:$0xff]
        %v3891 = vld [vmem:[%s3889 + $0x8] sm:$0xff]
        %v3892 = vld [vmem:[%s3889 + $0x10] sm:$0xff]
        %v3893 = vld [vmem:[%s3889 + $0x18] sm:$0xff]
        %v3894 = vlaneseq
        %v3895 = vshrl.u32 %v3894, 7
        %v3896 = vsub.s32 1, %v3895
        %v3897 = vrot.slane %v3478, %v3896
        %v3899 = vsel %vm744, %v3888, 0
        %3901 = vmatprep.subr.mxu0 0.0
        %3902 = vmatpush1.msra.mxu0 0.0
        %3903 = vmatprep.subr.mxu0 0.0
        %3904 = vmatpush1.msra.mxu0 0.0
        %3905 = vmatprep.subr.mxu0 0.0
        %3906 = vmatpush1.msra.mxu0 0.0
        %3907 = vmatprep.subr.mxu0 0.0
        %3908 = vmatpush1.msra.mxu0 0.0
        %3909 = vmatprep.subr.mxu0 0.0
        %3910 = vmatpush1.msra.mxu0 0.0
        %3911 = vmatprep.subr.mxu0 0.0
        %3912 = vmatpush1.msra.mxu0 0.0
        %3913 = vmatprep.subr.mxu0 0.0
        %3914 = vmatpush1.msra.mxu0 0.0
        %3915 = vmatprep.subr.mxu0 0.0
        %3916 = vmatpush1.msra.mxu0 0.0
        %3917 = vmatprep.subr.mxu0 0.0
        %3918 = vmatpush1.msra.mxu0 0.0
        %3919 = vmatprep.subr.mxu0 0.0
        %3920 = vmatpush1.msra.mxu0 0.0
        %3921 = vmatprep.subr.mxu0 0.0
        %3922 = vmatpush1.msra.mxu0 0.0
        %3923 = vmatprep.subr.mxu0 0.0
        %3924 = vmatpush1.msra.mxu0 0.0
        %3925 = vmatprep.subr.mxu0 0.0
        %3926 = vmatpush1.msra.mxu0 %v3893
        %3927 = vmatprep.subr.mxu0 0.0
        %3928 = vmatpush1.msra.mxu0 %v3892
        %3929 = vmatprep.subr.mxu0 0.0
        %3930 = vmatpush1.msra.mxu0 %v3891
        %3931 = vmatprep.subr.mxu0 0.0
        %3932 = vmatpush1.msra.mxu0 %v3890
        %3933 = vmatprep.subr.mxu0 0.0
        %3934 = vmatpush2.msra.mxu0 0.0
        %3935 = vmatprep.subr.mxu0 0.0
        %3936 = vmatpush2.msra.mxu0 0.0
        %3937 = vmatprep.subr.mxu0 0.0
        %3938 = vmatpush2.msra.mxu0 0.0
        %3939 = vmatprep.subr.mxu0 0.0
        %3940 = vmatpush2.msra.mxu0 0.0
        %3941 = vmatprep.subr.mxu0 0.0
        %3942 = vmatpush2.msra.mxu0 0.0
        %3943 = vmatprep.subr.mxu0 0.0
        %3944 = vmatpush2.msra.mxu0 0.0
        %3945 = vmatprep.subr.mxu0 0.0
        %3946 = vmatpush2.msra.mxu0 0.0
        %3947 = vmatprep.subr.mxu0 0.0
        %3948 = vmatpush2.msra.mxu0 0.0
        %3949 = vmatprep.subr.mxu0 0.0
        %3950 = vmatpush2.msra.mxu0 0.0
        %3951 = vmatprep.subr.mxu0 0.0
        %3952 = vmatpush2.msra.mxu0 0.0
        %3953 = vmatprep.subr.mxu0 0.0
        %3954 = vmatpush2.msra.mxu0 0.0
        %3955 = vmatprep.subr.mxu0 0.0
        %3956 = vmatpush2.msra.mxu0 0.0
        %3957 = vmatprep.subr.mxu0 0.0
        %3958 = vmatpush2.msra.mxu0 0.0
        %3959 = vmatprep.subr.mxu0 0.0
        %3960 = vmatpush2.msra.mxu0 0.0
        %3961 = vmatprep.subr.mxu0 0.0
        %3962 = vmatpush2.msra.mxu0 0.0
        %3963 = vmatprep.subr.mxu0 0.0
        %3964 = vmatpush2.msra.mxu0 0.0
        %3965 = vmatprep.mubr.f32.mxu0 0.0
        %3966 = vmatmul.mubr.f32.gmra.mxu0 %v3899
        %v3967 = vpop.f32.mrf.mxu0
        %v3968 = vadd.f32 %v3897, %v3967
        %v3969 = vpop.f32.mrf.mxu0
        %3970 = vdwg.mxu0
        %s3971 = scalar_lea.vmem %s711, 64
        %v3972 = vld [vmem:[%s3971] sm:$0xff]
        %v3973 = vld [vmem:[%s3971 + $0x8] sm:$0xff]
        %v3974 = vld [vmem:[%s3971 + $0x10] sm:$0xff]
        %v3975 = vld [vmem:[%s3971 + $0x18] sm:$0xff]
        %v3976 = vlaneseq
        %v3977 = vshrl.u32 %v3976, 7
        %v3978 = vsub.s32 2, %v3977
        %v3979 = vrot.slane %v3478, %v3978
        %3980 = vmatprep.subr.mxu0 0.0
        %3981 = vmatpush1.msra.mxu0 0.0
        %3982 = vmatprep.subr.mxu0 0.0
        %3983 = vmatpush1.msra.mxu0 0.0
        %3984 = vmatprep.subr.mxu0 0.0
        %3985 = vmatpush1.msra.mxu0 0.0
        %3986 = vmatprep.subr.mxu0 0.0
        %3987 = vmatpush1.msra.mxu0 0.0
        %3988 = vmatprep.subr.mxu0 0.0
        %3989 = vmatpush1.msra.mxu0 0.0
        %3990 = vmatprep.subr.mxu0 0.0
        %3991 = vmatpush1.msra.mxu0 0.0
        %3992 = vmatprep.subr.mxu0 0.0
        %3993 = vmatpush1.msra.mxu0 0.0
        %3994 = vmatprep.subr.mxu0 0.0
        %3995 = vmatpush1.msra.mxu0 0.0
        %3996 = vmatprep.subr.mxu0 0.0
        %3997 = vmatpush1.msra.mxu0 0.0
        %3998 = vmatprep.subr.mxu0 0.0
        %3999 = vmatpush1.msra.mxu0 0.0
        %4000 = vmatprep.subr.mxu0 0.0
        %4001 = vmatpush1.msra.mxu0 0.0
        %4002 = vmatprep.subr.mxu0 0.0
        %4003 = vmatpush1.msra.mxu0 0.0
        %4004 = vmatprep.subr.mxu0 0.0
        %4005 = vmatpush1.msra.mxu0 %v3975
        %4006 = vmatprep.subr.mxu0 0.0
        %4007 = vmatpush1.msra.mxu0 %v3974
        %4008 = vmatprep.subr.mxu0 0.0
        %4009 = vmatpush1.msra.mxu0 %v3973
        %4010 = vmatprep.subr.mxu0 0.0
        %4011 = vmatpush1.msra.mxu0 %v3972
        %4012 = vmatprep.subr.mxu0 0.0
        %4013 = vmatpush2.msra.mxu0 0.0
        %4014 = vmatprep.subr.mxu0 0.0
        %4015 = vmatpush2.msra.mxu0 0.0
        %4016 = vmatprep.subr.mxu0 0.0
        %4017 = vmatpush2.msra.mxu0 0.0
        %4018 = vmatprep.subr.mxu0 0.0
        %4019 = vmatpush2.msra.mxu0 0.0
        %4020 = vmatprep.subr.mxu0 0.0
        %4021 = vmatpush2.msra.mxu0 0.0
        %4022 = vmatprep.subr.mxu0 0.0
        %4023 = vmatpush2.msra.mxu0 0.0
        %4024 = vmatprep.subr.mxu0 0.0
        %4025 = vmatpush2.msra.mxu0 0.0
        %4026 = vmatprep.subr.mxu0 0.0
        %4027 = vmatpush2.msra.mxu0 0.0
        %4028 = vmatprep.subr.mxu0 0.0
        %4029 = vmatpush2.msra.mxu0 0.0
        %4030 = vmatprep.subr.mxu0 0.0
        %4031 = vmatpush2.msra.mxu0 0.0
        %4032 = vmatprep.subr.mxu0 0.0
        %4033 = vmatpush2.msra.mxu0 0.0
        %4034 = vmatprep.subr.mxu0 0.0
        %4035 = vmatpush2.msra.mxu0 0.0
        %4036 = vmatprep.subr.mxu0 0.0
        %4037 = vmatpush2.msra.mxu0 0.0
        %4038 = vmatprep.subr.mxu0 0.0
        %4039 = vmatpush2.msra.mxu0 0.0
        %4040 = vmatprep.subr.mxu0 0.0
        %4041 = vmatpush2.msra.mxu0 0.0
        %4042 = vmatprep.subr.mxu0 0.0
        %4043 = vmatpush2.msra.mxu0 0.0
        %4044 = vmatprep.mubr.f32.mxu0 0.0
        %4045 = vmatmul.mubr.f32.gmra.mxu0 %v3489
        %v4046 = vpop.f32.mrf.mxu0
        %v4047 = vadd.f32 %v3979, %v4046
        %v4048 = vpop.f32.mrf.mxu0
        %4049 = vdwg.mxu0
        %v4050 = vld [vmem:[#allocation3] sm:$0xff]
        %v4051 = vmax.f32 %v4050, 0.0
        %v4052 = vmin.f32 %v4051, 1.0
        %v4053 = vmax.f32 %v4052, 1e-05
        %v4054 = vlog2.pop %v4053
        %v4055 = vmul.f32 %v4054, 0.6931472
        %v4056 = vsub.f32 1.0, %v4052
        %v4057 = vmax.f32 %v4056, 1e-05
        %v4058 = vlog2.pop %v4057
        %v4059 = vmul.f32 %v4058, 0.6931472
        %v4060 = vsub.f32 %v4055, %v4059
        %v4061 = vadd.f32 %v3723, %v4060
        %vm4062 = vcmask 31744
        %4063 = vst.msk [vmem:[%s661] sm:$0xff] %vm4062, %v4061
        %s4064 = scalar_lea.vmem %s661, 8 [#allocation6]
        %4065 = vst.msk [vmem:[%s4064] sm:$0xff] %vm4062, %v3968
        %s4066 = scalar_lea.vmem %s661, 16 [#allocation6]
        %4067 = vst.msk [vmem:[%s4066] sm:$0xff] %vm4062, %v4047
        %s4068 = sand.u32 %s409, 1
        %s4069 = sand.u32 %s409, 1
        %s4070 = smul.addr %s4069, 24
        %s4071 = scalar_lea.vmem [#allocation6], %s4070
        // Predicated region
        $region85: #{tpu_custom_call.1} parent=75 // pred_check
          %p4072 = pneg %p419
        $region86: #{tpu_custom_call.1} parent=75 // pred_check_branch
          %4074 = sbr.rel (%p4072) target = $region88
        $region87: #{tpu_custom_call.1} parent=75 // pred_region
          %s4075 = smul.addr %s33, 6
          %s4076 = sadd.s32 %s32, %s4075
          %s4077 = smul.addr %s4076, 8
          %s4078 = scalar_lea.vmem %s14, %s4077
          // Predicated region
          $region89: #{tpu_custom_call.1} parent=87 // pred_check
            _
          $region90: #{tpu_custom_call.1} parent=87 // pred_check_branch
            %4080 = sbr.rel (0) target = $region92
          $region91: #{tpu_custom_call.1} parent=87 // pred_region
            // Predicated region
            $region93: #{tpu_custom_call.1} parent=91 // pred_check
              _
            $region94: #{tpu_custom_call.1} parent=91 // pred_check_branch
              %4082 = sbr.rel (0) target = $region96
            $region95: #{tpu_custom_call.1} parent=91 // pred_region
              // Predicated region
              $region108: #{tpu_custom_call.1} parent=95 // pred_check
                _
              $region109: #{tpu_custom_call.1} parent=95 // pred_check_branch
                %4102 = sbr.rel (0) target = $region111
              $region110: #{tpu_custom_call.1} parent=95 // pred_region
                loop: start=0, step=1, limit=1
                $region112: #{tpu_custom_call.1} parent=110 // loop_pre_header
                  _
                $region113: #{tpu_custom_call.1} parent=110 // loop_header
                  %s4104 = sphi 0, %s4108
                  %p4105 = scmp.ge.s32.totalorder %s4104, 1
                  %s4109 = sphi %s4071, %s4071
                  %s4110 = sphi %s4078, %s4078
                $region114: #{tpu_custom_call.1} parent=110 // loop_header_branch
                  %4107 = sbr.rel (%p4105) target = $region118
                $region115: #{tpu_custom_call.1} parent=110 // loop_body
                  %v4111 = vld [vmem:[%s4109] sm:$0xff]
                  %4112 = vst [vmem:[%s4110] sm:$0xff] %v4111
                  %v4113 = vld [vmem:[%s4109 + $0x8] sm:$0xff]
                  %4114 = vst [vmem:[%s4110 + $0x10] sm:$0xff] %v4113
                  %v4115 = vld [vmem:[%s4109 + $0x10] sm:$0xff]
                  %4116 = vst [vmem:[%s4110 + $0x20] sm:$0xff] %v4115
                $region116: #{tpu_custom_call.1} parent=110 // loop_footer
                  %s4108 = sadd.s32 1, %s4104
                $region117: #{tpu_custom_call.1} parent=110 // loop_footer_branch
                  %4103 = sbr.rel target = $region113
                $region118: #{tpu_custom_call.1} parent=110 // loop_exit
                  _
              $region111: #{tpu_custom_call.1} parent=95 // pred_fallthru
                _
              // Predicated region
              $region119: #{tpu_custom_call.1} parent=95 // pred_check
                _
              $region120: #{tpu_custom_call.1} parent=95 // pred_check_branch
                %4118 = sbr.rel target = $region122
              $region121: #{tpu_custom_call.1} parent=95 // pred_region
                _
              $region122: #{tpu_custom_call.1} parent=95 // pred_fallthru
                _
            $region96: #{tpu_custom_call.1} parent=91 // pred_fallthru
              _
            // Predicated region
            $region97: #{tpu_custom_call.1} parent=91 // pred_check
              _
            $region98: #{tpu_custom_call.1} parent=91 // pred_check_branch
              %4084 = sbr.rel target = $region100
            $region99: #{tpu_custom_call.1} parent=91 // pred_region
              %s4086 = ssub.s32 256, 1
              loop: start=0, step=1, limit=1
              $region101: #{tpu_custom_call.1} parent=99 // loop_pre_header
                _
              $region102: #{tpu_custom_call.1} parent=99 // loop_header
                %s4088 = sphi 0, %s4092
                %p4089 = scmp.ge.s32.totalorder %s4088, 1
                %s4093 = sphi %s4071, %s4071
                %s4094 = sphi %s4078, %s4078
              $region103: #{tpu_custom_call.1} parent=99 // loop_header_branch
                %4091 = sbr.rel (%p4089) target = $region107
              $region104: #{tpu_custom_call.1} parent=99 // loop_body
                %v4095 = vld [vmem:[%s4093] sm:%s4086]
                %4096 = vst [vmem:[%s4094] sm:%s4086] %v4095
                %v4097 = vld [vmem:[%s4093 + $0x8] sm:%s4086]
                %4098 = vst [vmem:[%s4094 + $0x10] sm:%s4086] %v4097
                %v4099 = vld [vmem:[%s4093 + $0x10] sm:%s4086]
                %4100 = vst [vmem:[%s4094 + $0x20] sm:%s4086] %v4099
              $region105: #{tpu_custom_call.1} parent=99 // loop_footer
                %s4092 = sadd.s32 1, %s4088
              $region106: #{tpu_custom_call.1} parent=99 // loop_footer_branch
                %4087 = sbr.rel target = $region102
              $region107: #{tpu_custom_call.1} parent=99 // loop_exit
                _
            $region100: #{tpu_custom_call.1} parent=91 // pred_fallthru
              _
          $region92: #{tpu_custom_call.1} parent=87 // pred_fallthru
            _
          %4119 = vnop
        $region88: #{tpu_custom_call.1} parent=75 // pred_fallthru
          _
      $region76: #{tpu_custom_call.1} parent=5 // pred_fallthru
        _
      %p4120 = scmp.le.s32.totalorder 2, %s23
      // Predicated region
      $region123: #{tpu_custom_call.1} parent=5 // pred_check
        %p4121 = pneg %p4120
      $region124: #{tpu_custom_call.1} parent=5 // pred_check_branch
        %4123 = sbr.rel (%p4121) target = $region126
      $region125: #{tpu_custom_call.1} parent=5 // pred_region
        %s4124 = ssub.s32 %s23, 2
        // Predicated region
        $region127: #{tpu_custom_call.1} parent=125 // pred_check
          %p4125 = pneg %p425
        $region128: #{tpu_custom_call.1} parent=125 // pred_check_branch
          %4127 = sbr.rel (%p4125) target = $region130
        $region129: #{tpu_custom_call.1} parent=125 // pred_region
          %s4128 = sand.u32 %s410, 1
          %s4129 = sand.u32 %s410, 1
          %s4130 = smul.addr %s4129, 24
          %s4131 = scalar_lea.vmem [#allocation6], %s4130
        $region130: #{tpu_custom_call.1} parent=125 // pred_fallthru
          _
      $region126: #{tpu_custom_call.1} parent=5 // pred_fallthru
        _
    $region6: #{tpu_custom_call.1} parent=1 // loop_footer
      %s27 = sadd.s32 1, %s23
    $region7: #{tpu_custom_call.1} parent=1 // loop_footer_branch
      %22 = sbr.rel target = $region3
    $region8: #{tpu_custom_call.1} parent=1 // loop_exit
      _
    %4132 = vsyncpa [#allocation5], 1
    %s4133 = scalar_lea.sflag [#allocation5], 1
    %4134 = vsyncpa %s4133, 1

</llo_original>
